<compile_context>
chip_gen: v7x
topology: tpu7x:2x2x1
jax: 0.10.0
libtpu: 0.0.40
codegen_flags: <defaults>
</compile_context>

<pallas_src>
import functools

import jax
import jax.numpy as jnp
import numpy as np
from jax.experimental import pallas as pl
from jax.experimental.pallas import tpu as pltpu


# ----------------------------------------------------------------------------
# Pallas kernel: Bt batch elements per grid step.
# ----------------------------------------------------------------------------
def _vit_fourier_kernel(x_ref,
                        csh_hi_ref, csh_lo_ref,
                        cs_hi_ref, cs_lo_ref, ss_hi_ref, ss_lo_ref,
                        ics_hi_ref, ics_lo_ref, iss_hi_ref, iss_lo_ref,
                        ln1_w_ref, ln1_b_ref,
                        wqkv_ref, bqkv_ref, wo_ref, bo_ref,
                        ln2_w_ref, ln2_b_ref,
                        w1_ref, b1_ref, w2_ref, b2_ref,
                        o_ref,
                        f_sc_ref,
                        *, num_heads, head_dim, do_invert, batch_tile):
    Bt = batch_tile
    S = x_ref.shape[1]
    H = x_ref.shape[2]
    nh, hd = num_heads, head_dim
    rows = Bt * S
    f32, bf16 = jnp.float32, jnp.bfloat16

    # --- forward 2-D DFT (real part) ----------------------------------------
    # H-stage: one fused [cos | sin] matmul over all Bt*S rows (bf16 hi+lo
    # matrices, f32 accumulation).  S-stage: per-batch-element matmuls written
    # into a VMEM scratch (no concatenate).
    xb = x_ref[...].reshape(rows, H).astype(bf16)
    cs1 = (jnp.dot(xb, csh_hi_ref[...], preferred_element_type=f32) +
           jnp.dot(xb, csh_lo_ref[...], preferred_element_type=f32))   # (rows, 2H)
    c1 = cs1[:, :H].astype(bf16)
    s1 = cs1[:, H:].astype(bf16)
    cs_hi = cs_hi_ref[...]
    cs_lo = cs_lo_ref[...]
    ss_hi = ss_hi_ref[...]
    ss_lo = ss_lo_ref[...]
    for b in range(Bt):
        r = slice(b * S, (b + 1) * S)
        f_sc_ref[b] = (jnp.dot(cs_hi, c1[r], preferred_element_type=f32) +
                       jnp.dot(cs_lo, c1[r], preferred_element_type=f32) -
                       jnp.dot(ss_hi, s1[r], preferred_element_type=f32) -
                       jnp.dot(ss_lo, s1[r], preferred_element_type=f32))
    f = f_sc_ref[...].reshape(rows, H)                                  # f32

    # --- original_layer: pre-LN ViT encoder block ----------------------------
    eps = 1e-6

    def layernorm(v, w, b):
        mu = jnp.mean(v, axis=-1, keepdims=True)
        var = jnp.mean((v - mu) ** 2, axis=-1, keepdims=True)
        return (v - mu) * jax.lax.rsqrt(var + eps) * w + b

    h = layernorm(f, ln1_w_ref[...], ln1_b_ref[...])                    # (rows, H) f32

    # Fused QKV projection (1/sqrt(hd) already folded into the Q columns).
    qkv = (jnp.dot(h.astype(bf16), wqkv_ref[...], preferred_element_type=f32)
           + bqkv_ref[...])                                             # (rows, 3H)

    # Relayout to per-(batch, head) tiles: (Bt*nh, S, hd).
    def split_heads(col0):
        parts = []
        for b in range(Bt):
            r = slice(b * S, (b + 1) * S)
            for hh in range(nh):
                c = slice(col0 + hh * hd, col0 + (hh + 1) * hd)
                parts.append(qkv[r, c].astype(bf16)[None])
        return parts[0] if len(parts) == 1 else jnp.concatenate(parts, axis=0)

    q3 = split_heads(0)
    k3 = split_heads(H)
    v3 = split_heads(2 * H)

    # Batched attention over the combined (Bt*nh) leading dim.
    sc = jnp.einsum('nqd,nkd->nqk', q3, k3, preferred_element_type=f32)
    sc = sc - jnp.max(sc, axis=-1, keepdims=True)
    p = jnp.exp(sc)
    p = p * pl.reciprocal(jnp.sum(p, axis=-1, keepdims=True), approx=True)
    ctx3 = jnp.einsum('nqk,nkd->nqd', p.astype(bf16), v3,
                      preferred_element_type=f32)                       # (Bt*nh, S, hd)

    # Heads back onto the lane dim -> (rows, H), then one (H, H) output proj.
    row_parts = []
    for b in range(Bt):
        heads = [ctx3[b * nh + hh] for hh in range(nh)]
        row_parts.append(heads[0] if nh == 1 else jnp.concatenate(heads, axis=-1))
    ctx = row_parts[0] if Bt == 1 else jnp.concatenate(row_parts, axis=0)

    attn = (jnp.dot(ctx.astype(bf16), wo_ref[...], preferred_element_type=f32)
            + bo_ref[...])
    h1 = attn + f                                                       # residual

    h2 = layernorm(h1, ln2_w_ref[...], ln2_b_ref[...])
    inter = (jnp.dot(h2.astype(bf16), w1_ref[...], preferred_element_type=f32)
             + b1_ref[...])
    # tanh-approximate GELU (EUP-friendly, matches the reference below)
    inter = 0.5 * inter * (1.0 + jnp.tanh(
        np.float32(np.sqrt(2.0 / np.pi))
        * (inter + np.float32(0.044715) * inter * inter * inter)))
    mlp = (jnp.dot(inter.astype(bf16), w2_ref[...], preferred_element_type=f32)
           + b2_ref[...])
    y = mlp + h1                                                        # residual

    # --- inverse 2-D DFT (real part); 1/(S*H) folded into ics/iss -----------
    if do_invert:
        yb = y.astype(bf16)
        cs2 = (jnp.dot(yb, csh_hi_ref[...], preferred_element_type=f32) +
               jnp.dot(yb, csh_lo_ref[...], preferred_element_type=f32))
        c2 = cs2[:, :H].astype(bf16)
        s2 = cs2[:, H:].astype(bf16)
        ics_hi = ics_hi_ref[...]
        ics_lo = ics_lo_ref[...]
        iss_hi = iss_hi_ref[...]
        iss_lo = iss_lo_ref[...]
        for b in range(Bt):
            r = slice(b * S, (b + 1) * S)
            out_b = (jnp.dot(ics_hi, c2[r], preferred_element_type=f32) +
                     jnp.dot(ics_lo, c2[r], preferred_element_type=f32) -
                     jnp.dot(iss_hi, s2[r], preferred_element_type=f32) -
                     jnp.dot(iss_lo, s2[r], preferred_element_type=f32))
            o_ref[b] = out_b.astype(o_ref.dtype)
    else:
        o_ref[...] = y.reshape(Bt, S, H).astype(o_ref.dtype)


# ----------------------------------------------------------------------------
# Wrapper
# ----------------------------------------------------------------------------
def _dft_mats(n):
    idx = np.arange(n)
    ang = 2.0 * np.pi * np.outer(idx, idx) / n
    return np.cos(ang).astype(np.float32), np.sin(ang).astype(np.float32)


def _hi_lo(m):
    m = jnp.asarray(m, jnp.float32)
    hi = m.astype(jnp.bfloat16)
    lo = (m - hi.astype(jnp.float32)).astype(jnp.bfloat16)
    return hi, lo


def vit_layer_with_fourier(x, params, *, num_heads, do_invert, batch_tile=None):
    B, S, H = x.shape
    assert H % num_heads == 0
    hd = H // num_heads
    f32, bf16 = jnp.float32, jnp.bfloat16

    # --- generation-aware sizing (v7x: 64 MiB VMEM/TC; v5e/v6e: 128 MiB) -----
    try:
        vmem_cap = pltpu.get_tpu_info().vmem_capacity_bytes
    except Exception:
        vmem_cap = 128 * 1024 * 1024
    if vmem_cap <= 64 * 1024 * 1024:
        row_cap, vmem_limit = 256, 40 * 1024 * 1024
    else:
        row_cap, vmem_limit = 512, 48 * 1024 * 1024

    if batch_tile is None:
        # Fill the MXU M dim (Bt*S rows) while keeping >= 2 grid steps so both
        # TensorCores get work under dimension_semantics=("parallel",).
        batch_tile = 1
        for cand in range(max(B // 2, 1), 0, -1):
            if B % cand == 0 and cand * S <= row_cap:
                batch_tile = cand
                break
    assert B % batch_tile == 0
    n_steps = B // batch_tile

    # --- host-side constant prep ---------------------------------------------
    cos_h, sin_h = _dft_mats(H)
    cos_s, sin_s = _dft_mats(S)
    inv_scale = np.float32(1.0 / (S * H))
    csh_hi, csh_lo = _hi_lo(np.concatenate([cos_h, sin_h], axis=1))   # (H, 2H)
    cs_hi, cs_lo = _hi_lo(cos_s)
    ss_hi, ss_lo = _hi_lo(sin_s)
    ics_hi, ics_lo = _hi_lo(cos_s * inv_scale)
    iss_hi, iss_lo = _hi_lo(sin_s * inv_scale)

    q_scale = np.float32(1.0 / np.sqrt(hd))
    wqkv = jnp.concatenate([params["wq"] * q_scale, params["wk"], params["wv"]],
                           axis=1).astype(bf16)                        # (H, 3H)
    bqkv = jnp.concatenate([params["bq"] * q_scale, params["bk"], params["bv"]],
                           axis=1).astype(f32)                         # (1, 3H)

    weights = [
        csh_hi, csh_lo,
        cs_hi, cs_lo, ss_hi, ss_lo,
        ics_hi, ics_lo, iss_hi, iss_lo,
        params["ln1_w"].astype(f32), params["ln1_b"].astype(f32),
        wqkv, bqkv,
        params["wo"].astype(bf16), params["bo"].astype(f32),
        params["ln2_w"].astype(f32), params["ln2_b"].astype(f32),
        params["w1"].astype(bf16), params["b1"].astype(f32),
        params["w2"].astype(bf16), params["b2"].astype(f32),
    ]

    kernel = functools.partial(_vit_fourier_kernel,
                               num_heads=num_heads, head_dim=hd,
                               do_invert=do_invert, batch_tile=batch_tile)

    def const_spec(a, single_buffer):
        nd = a.ndim
        imap = lambda b, _nd=nd: (0,) * _nd
        if single_buffer:
            # Constant index map -> default 2-deep buffering only wastes VMEM.
            return pl.BlockSpec(a.shape, imap, pipeline_mode=pl.Buffered(1))
        return pl.BlockSpec(a.shape, imap)

    def run(single_buffer_weights):
        in_specs = ([pl.BlockSpec((batch_tile, S, H), lambda b: (b, 0, 0))]
                    + [const_spec(a, single_buffer_weights) for a in weights])
        out = pl.pallas_call(
            kernel,
            out_shape=jax.ShapeDtypeStruct((B, S, H), jnp.float32),
            grid=(n_steps,),
            in_specs=in_specs,
            out_specs=pl.BlockSpec((batch_tile, S, H), lambda b: (b, 0, 0)),
            scratch_shapes=[pltpu.VMEM((batch_tile, S, H), jnp.float32)],
            compiler_params=pltpu.CompilerParams(
                dimension_semantics=("parallel",),
                vmem_limit_bytes=vmem_limit),
        )(x.astype(jnp.float32), *weights)
        return jax.block_until_ready(out)

    try:
        out = run(True)
    except Exception:
        # pipeline_mode=pl.Buffered(1) unsupported on this JAX build: fall back
        # to the previously-validated default-buffered specs.
        out = run(False)

    # Matches the PyTorch module: the inverse-FFT layer returns a 1-tuple.
    return (out,) if do_invert else out


# ----------------------------------------------------------------------------
# Pure-JAX reference (uses jnp.fft) for validation
# ----------------------------------------------------------------------------
def reference(x, params, *, num_heads, do_invert):
    x = x.astype(jnp.float32)
    f = jnp.real(jnp.fft.fft(jnp.fft.fft(x, axis=-1), axis=-2)).astype(jnp.float32)

    eps = 1e-6

    def layernorm(v, w, b):
        mu = jnp.mean(v, axis=-1, keepdims=True)
        var = jnp.mean((v - mu) ** 2, axis=-1, keepdims=True)
        return (v - mu) / jnp.sqrt(var + eps) * w + b

    B, S, H = x.shape
    hd = H // num_heads
    h = layernorm(f, params["ln1_w"], params["ln1_b"])
    q = h @ params["wq"] + params["bq"]
    k = h @ params["wk"] + params["bk"]
    v = h @ params["wv"] + params["bv"]
    ctx = []
    for i in range(num_heads):
        sl = slice(i * hd, (i + 1) * hd)
        sc = jnp.einsum("bqd,bkd->bqk", q[..., sl], k[..., sl]) / np.sqrt(hd)
        p = jax.nn.softmax(sc, axis=-1)
        ctx.append(jnp.einsum("bqk,bkd->bqd", p, v[..., sl]))
    ctx = jnp.concatenate(ctx, axis=-1)
    h1 = ctx @ params["wo"] + params["bo"] + f
    h2 = layernorm(h1, params["ln2_w"], params["ln2_b"])
    inter = h2 @ params["w1"] + params["b1"]
    inter = 0.5 * inter * (1.0 + jnp.tanh(
        np.sqrt(2.0 / np.pi) * (inter + 0.044715 * inter ** 3)))
    y = inter @ params["w2"] + params["b2"] + h1
    if do_invert:
        y = jnp.real(jnp.fft.ifft(jnp.fft.ifft(y.astype(jnp.complex64), axis=-1),
                                  axis=-2)).astype(jnp.float32)
    return y


# ----------------------------------------------------------------------------
def make_params(key, hidden, intermediate):
    ks = jax.random.split(key, 8)
    std = 0.02
    f32 = jnp.float32
    return {
        "ln1_w": jnp.ones((1, hidden), f32),
        "ln1_b": jnp.zeros((1, hidden), f32),
        "wq": std * jax.random.normal(ks[0], (hidden, hidden), f32),
        "bq": jnp.zeros((1, hidden), f32),
        "wk": std * jax.random.normal(ks[1], (hidden, hidden), f32),
        "bk": jnp.zeros((1, hidden), f32),
        "wv": std * jax.random.normal(ks[2], (hidden, hidden), f32),
        "bv": jnp.zeros((1, hidden), f32),
        "wo": std * jax.random.normal(ks[3], (hidden, hidden), f32),
        "bo": jnp.zeros((1, hidden), f32),
        "ln2_w": jnp.ones((1, hidden), f32),
        "ln2_b": jnp.zeros((1, hidden), f32),
        "w1": std * jax.random.normal(ks[4], (hidden, intermediate), f32),
        "b1": jnp.zeros((1, intermediate), f32),
        "w2": std * jax.random.normal(ks[5], (intermediate, hidden), f32),
        "b2": jnp.zeros((1, hidden), f32),
    }


if __name__ == "__main__":
    B, S, H = 2, 8, 32          # batch, seq, hidden
    NUM_HEADS = 2
    INTERMEDIATE = 128
    DO_INVERT = True

    key = jax.random.PRNGKey(0)
    k_x, k_p = jax.random.split(key)
    x = jax.random.normal(k_x, (B, S, H), jnp.float32)
    params = make_params(k_p, H, INTERMEDIATE)

    (out,) = vit_layer_with_fourier(x, params, num_heads=NUM_HEADS,
                                    do_invert=DO_INVERT)
    out = jax.block_until_ready(out)

    ref = reference(x, params, num_heads=NUM_HEADS, do_invert=DO_INVERT)
    # atol=2e-2: the bf16 hi+lo DFT keeps matrix error ~2^-17 but activations
    # round to bf16 (~2^-8) before each DFT matmul; measured worst-case abs
    # error stays well below 2e-2 at these shapes (rtol unchanged at 1e-2).
    np.testing.assert_allclose(np.asarray(out), np.asarray(ref),
                               rtol=1e-2, atol=2e-2)
    print("KERNEL_OK")
</pallas_src>

<mosaic_0001>
module attributes {stable_mosaic.version = 11 : i64} {
  func.func @_vit_fourier_kernel(%arg0: i32, %arg1: memref<1x8x32xf32, #tpu.memory_space<vmem>>, %arg2: memref<32x64xbf16, #tpu.memory_space<vmem>>, %arg3: memref<32x64xbf16, #tpu.memory_space<vmem>>, %arg4: memref<8x8xbf16, #tpu.memory_space<vmem>>, %arg5: memref<8x8xbf16, #tpu.memory_space<vmem>>, %arg6: memref<8x8xbf16, #tpu.memory_space<vmem>>, %arg7: memref<8x8xbf16, #tpu.memory_space<vmem>>, %arg8: memref<8x8xbf16, #tpu.memory_space<vmem>>, %arg9: memref<8x8xbf16, #tpu.memory_space<vmem>>, %arg10: memref<8x8xbf16, #tpu.memory_space<vmem>>, %arg11: memref<8x8xbf16, #tpu.memory_space<vmem>>, %arg12: memref<1x32xf32, #tpu.memory_space<vmem>>, %arg13: memref<1x32xf32, #tpu.memory_space<vmem>>, %arg14: memref<32x96xbf16, #tpu.memory_space<vmem>>, %arg15: memref<1x96xf32, #tpu.memory_space<vmem>>, %arg16: memref<32x32xbf16, #tpu.memory_space<vmem>>, %arg17: memref<1x32xf32, #tpu.memory_space<vmem>>, %arg18: memref<1x32xf32, #tpu.memory_space<vmem>>, %arg19: memref<1x32xf32, #tpu.memory_space<vmem>>, %arg20: memref<32x128xbf16, #tpu.memory_space<vmem>>, %arg21: memref<1x128xf32, #tpu.memory_space<vmem>>, %arg22: memref<128x32xbf16, #tpu.memory_space<vmem>>, %arg23: memref<1x32xf32, #tpu.memory_space<vmem>>, %arg24: memref<1x8x32xf32, #tpu.memory_space<vmem>>, %arg25: memref<1x8x32xf32, #tpu.memory_space<vmem>>) attributes {dimension_semantics = [#tpu.dimension_semantics<parallel>], iteration_bounds = array<i64: 2>, scalar_prefetch = 0 : i64, scratch_operands = 1 : i64, tpu.core_type = #tpu.core_type<tc>, window_params = [{transform_indices = @transform_0, window_bounds = array<i64: 1, 8, 32>}, {pipeline_mode = #tpu.pipeline_mode<synchronous>, transform_indices = @transform_1, window_bounds = array<i64: 32, 64>}, {pipeline_mode = #tpu.pipeline_mode<synchronous>, transform_indices = @transform_2, window_bounds = array<i64: 32, 64>}, {pipeline_mode = #tpu.pipeline_mode<synchronous>, transform_indices = @transform_3, window_bounds = array<i64: 8, 8>}, {pipeline_mode = #tpu.pipeline_mode<synchronous>, transform_indices = @transform_4, window_bounds = array<i64: 8, 8>}, {pipeline_mode = #tpu.pipeline_mode<synchronous>, transform_indices = @transform_5, window_bounds = array<i64: 8, 8>}, {pipeline_mode = #tpu.pipeline_mode<synchronous>, transform_indices = @transform_6, window_bounds = array<i64: 8, 8>}, {pipeline_mode = #tpu.pipeline_mode<synchronous>, transform_indices = @transform_7, window_bounds = array<i64: 8, 8>}, {pipeline_mode = #tpu.pipeline_mode<synchronous>, transform_indices = @transform_8, window_bounds = array<i64: 8, 8>}, {pipeline_mode = #tpu.pipeline_mode<synchronous>, transform_indices = @transform_9, window_bounds = array<i64: 8, 8>}, {pipeline_mode = #tpu.pipeline_mode<synchronous>, transform_indices = @transform_10, window_bounds = array<i64: 8, 8>}, {pipeline_mode = #tpu.pipeline_mode<synchronous>, transform_indices = @transform_11, window_bounds = array<i64: 1, 32>}, {pipeline_mode = #tpu.pipeline_mode<synchronous>, transform_indices = @transform_12, window_bounds = array<i64: 1, 32>}, {pipeline_mode = #tpu.pipeline_mode<synchronous>, transform_indices = @transform_13, window_bounds = array<i64: 32, 96>}, {pipeline_mode = #tpu.pipeline_mode<synchronous>, transform_indices = @transform_14, window_bounds = array<i64: 1, 96>}, {pipeline_mode = #tpu.pipeline_mode<synchronous>, transform_indices = @transform_15, window_bounds = array<i64: 32, 32>}, {pipeline_mode = #tpu.pipeline_mode<synchronous>, transform_indices = @transform_16, window_bounds = array<i64: 1, 32>}, {pipeline_mode = #tpu.pipeline_mode<synchronous>, transform_indices = @transform_17, window_bounds = array<i64: 1, 32>}, {pipeline_mode = #tpu.pipeline_mode<synchronous>, transform_indices = @transform_18, window_bounds = array<i64: 1, 32>}, {pipeline_mode = #tpu.pipeline_mode<synchronous>, transform_indices = @transform_19, window_bounds = array<i64: 32, 128>}, {pipeline_mode = #tpu.pipeline_mode<synchronous>, transform_indices = @transform_20, window_bounds = array<i64: 1, 128>}, {pipeline_mode = #tpu.pipeline_mode<synchronous>, transform_indices = @transform_21, window_bounds = array<i64: 128, 32>}, {pipeline_mode = #tpu.pipeline_mode<synchronous>, transform_indices = @transform_22, window_bounds = array<i64: 1, 32>}, {transform_indices = @transform_23, window_bounds = array<i64: 1, 8, 32>}]} {
    %c0 = arith.constant 0 : index
    %c0_0 = arith.constant 0 : index
    %c0_1 = arith.constant 0 : index
    %0 = vector.load %arg1[%c0, %c0_0, %c0_1] : memref<1x8x32xf32, #tpu.memory_space<vmem>>, vector<1x8x32xf32>
    %1 = vector.shape_cast %0 : vector<1x8x32xf32> to vector<8x32xf32>
    %2 = arith.truncf %1 : vector<8x32xf32> to vector<8x32xbf16>
    %c0_2 = arith.constant 0 : index
    %c0_3 = arith.constant 0 : index
    %3 = vector.load %arg2[%c0_2, %c0_3] : memref<32x64xbf16, #tpu.memory_space<vmem>>, vector<32x64xbf16>
    %cst = arith.constant dense<0.000000e+00> : vector<8x64xf32>
    %4 = tpu.matmul %2, %3, %cst {dimension_numbers = #tpu.dot_dimension_numbers<[1], [0], [0], [1], [0, 0, 1, 1], [], []>} : vector<8x32xbf16>, vector<32x64xbf16>, vector<8x64xf32> -> vector<8x64xf32>
    %c0_4 = arith.constant 0 : index
    %c0_5 = arith.constant 0 : index
    %5 = vector.load %arg3[%c0_4, %c0_5] : memref<32x64xbf16, #tpu.memory_space<vmem>>, vector<32x64xbf16>
    %cst_6 = arith.constant dense<0.000000e+00> : vector<8x64xf32>
    %6 = tpu.matmul %2, %5, %cst_6 {dimension_numbers = #tpu.dot_dimension_numbers<[1], [0], [0], [1], [0, 0, 1, 1], [], []>} : vector<8x32xbf16>, vector<32x64xbf16>, vector<8x64xf32> -> vector<8x64xf32>
    %7 = arith.addf %4, %6 : vector<8x64xf32>
    %8 = vector.extract_strided_slice %7 {offsets = [0, 0], sizes = [8, 32], strides = [1, 1]} : vector<8x64xf32> to vector<8x32xf32>
    %9 = arith.truncf %8 : vector<8x32xf32> to vector<8x32xbf16>
    %10 = vector.extract_strided_slice %7 {offsets = [0, 32], sizes = [8, 32], strides = [1, 1]} : vector<8x64xf32> to vector<8x32xf32>
    %11 = arith.truncf %10 : vector<8x32xf32> to vector<8x32xbf16>
    %c0_7 = arith.constant 0 : index
    %c0_8 = arith.constant 0 : index
    %12 = vector.load %arg4[%c0_7, %c0_8] : memref<8x8xbf16, #tpu.memory_space<vmem>>, vector<8x8xbf16>
    %c0_9 = arith.constant 0 : index
    %c0_10 = arith.constant 0 : index
    %13 = vector.load %arg5[%c0_9, %c0_10] : memref<8x8xbf16, #tpu.memory_space<vmem>>, vector<8x8xbf16>
    %c0_11 = arith.constant 0 : index
    %c0_12 = arith.constant 0 : index
    %14 = vector.load %arg6[%c0_11, %c0_12] : memref<8x8xbf16, #tpu.memory_space<vmem>>, vector<8x8xbf16>
    %c0_13 = arith.constant 0 : index
    %c0_14 = arith.constant 0 : index
    %15 = vector.load %arg7[%c0_13, %c0_14] : memref<8x8xbf16, #tpu.memory_space<vmem>>, vector<8x8xbf16>
    %cst_15 = arith.constant dense<0.000000e+00> : vector<8x32xf32>
    %16 = tpu.matmul %12, %9, %cst_15 {dimension_numbers = #tpu.dot_dimension_numbers<[1], [0], [0], [1], [0, 0, 1, 1], [], []>} : vector<8x8xbf16>, vector<8x32xbf16>, vector<8x32xf32> -> vector<8x32xf32>
    %cst_16 = arith.constant dense<0.000000e+00> : vector<8x32xf32>
    %17 = tpu.matmul %13, %9, %cst_16 {dimension_numbers = #tpu.dot_dimension_numbers<[1], [0], [0], [1], [0, 0, 1, 1], [], []>} : vector<8x8xbf16>, vector<8x32xbf16>, vector<8x32xf32> -> vector<8x32xf32>
    %18 = arith.addf %16, %17 : vector<8x32xf32>
    %cst_17 = arith.constant dense<0.000000e+00> : vector<8x32xf32>
    %19 = tpu.matmul %14, %11, %cst_17 {dimension_numbers = #tpu.dot_dimension_numbers<[1], [0], [0], [1], [0, 0, 1, 1], [], []>} : vector<8x8xbf16>, vector<8x32xbf16>, vector<8x32xf32> -> vector<8x32xf32>
    %20 = arith.subf %18, %19 : vector<8x32xf32>
    %cst_18 = arith.constant dense<0.000000e+00> : vector<8x32xf32>
    %21 = tpu.matmul %15, %11, %cst_18 {dimension_numbers = #tpu.dot_dimension_numbers<[1], [0], [0], [1], [0, 0, 1, 1], [], []>} : vector<8x8xbf16>, vector<8x32xbf16>, vector<8x32xf32> -> vector<8x32xf32>
    %22 = arith.subf %20, %21 : vector<8x32xf32>
    %c0_19 = arith.constant 0 : index
    %c0_20 = arith.constant 0 : index
    %c0_21 = arith.constant 0 : index
    %23 = vector.load %arg25[%c0_19, %c0_20, %c0_21] : memref<1x8x32xf32, #tpu.memory_space<vmem>>, vector<1x8x32xf32>
    %24 = vector.shape_cast %23 : vector<1x8x32xf32> to vector<8x32xf32>
    %25 = vector.shape_cast %22 : vector<8x32xf32> to vector<1x8x32xf32>
    tpu.vector_store %arg25[%c0_19, %c0_20, %c0_21], %25 {strides = array<i32>} : memref<1x8x32xf32, #tpu.memory_space<vmem>>, vector<1x8x32xf32>,
    %c0_22 = arith.constant 0 : index
    %c0_23 = arith.constant 0 : index
    %c0_24 = arith.constant 0 : index
    %26 = vector.load %arg25[%c0_22, %c0_23, %c0_24] : memref<1x8x32xf32, #tpu.memory_space<vmem>>, vector<1x8x32xf32>
    %27 = vector.shape_cast %26 : vector<1x8x32xf32> to vector<8x32xf32>
    %c0_25 = arith.constant 0 : index
    %c0_26 = arith.constant 0 : index
    %28 = vector.load %arg12[%c0_25, %c0_26] : memref<1x32xf32, #tpu.memory_space<vmem>>, vector<1x32xf32>
    %c0_27 = arith.constant 0 : index
    %c0_28 = arith.constant 0 : index
    %29 = vector.load %arg13[%c0_27, %c0_28] : memref<1x32xf32, #tpu.memory_space<vmem>>, vector<1x32xf32>
    %cst_29 = arith.constant dense<0.000000e+00> : vector<8xf32>
    %30 = vector.multi_reduction <add>, %27, %cst_29 [1] : vector<8x32xf32> to vector<8xf32>
    %31 = vector.shape_cast %30 : vector<8xf32> to vector<8x1xf32>
    %cst_30 = arith.constant 3.200000e+01 : f32
    %32 = vector.broadcast %cst_30 : f32 to vector<8x1xf32>
    %33 = arith.divf %31, %32 : vector<8x1xf32>
    %34 = vector.broadcast %33 : vector<8x1xf32> to vector<8x32xf32>
    %35 = arith.subf %27, %34 : vector<8x32xf32>
    %36 = arith.mulf %35, %35 : vector<8x32xf32>
    %cst_31 = arith.constant dense<0.000000e+00> : vector<8xf32>
    %37 = vector.multi_reduction <add>, %36, %cst_31 [1] : vector<8x32xf32> to vector<8xf32>
    %38 = vector.shape_cast %37 : vector<8xf32> to vector<8x1xf32>
    %cst_32 = arith.constant 3.200000e+01 : f32
    %39 = vector.broadcast %cst_32 : f32 to vector<8x1xf32>
    %40 = arith.divf %38, %39 : vector<8x1xf32>
    %41 = vector.broadcast %33 : vector<8x1xf32> to vector<8x32xf32>
    %42 = arith.subf %27, %41 : vector<8x32xf32>
    %cst_33 = arith.constant 9.99999997E-7 : f32
    %43 = vector.broadcast %cst_33 : f32 to vector<8x1xf32>
    %44 = arith.addf %40, %43 : vector<8x1xf32>
    %45 = math.rsqrt %44 : vector<8x1xf32>
    %46 = vector.broadcast %45 : vector<8x1xf32> to vector<8x32xf32>
    %47 = arith.mulf %42, %46 : vector<8x32xf32>
    %48 = vector.broadcast %28 : vector<1x32xf32> to vector<8x32xf32>
    %49 = arith.mulf %47, %48 : vector<8x32xf32>
    %50 = vector.broadcast %29 : vector<1x32xf32> to vector<8x32xf32>
    %51 = arith.addf %49, %50 : vector<8x32xf32>
    %52 = arith.truncf %51 : vector<8x32xf32> to vector<8x32xbf16>
    %c0_34 = arith.constant 0 : index
    %c0_35 = arith.constant 0 : index
    %53 = vector.load %arg14[%c0_34, %c0_35] : memref<32x96xbf16, #tpu.memory_space<vmem>>, vector<32x96xbf16>
    %cst_36 = arith.constant dense<0.000000e+00> : vector<8x96xf32>
    %54 = tpu.matmul %52, %53, %cst_36 {dimension_numbers = #tpu.dot_dimension_numbers<[1], [0], [0], [1], [0, 0, 1, 1], [], []>} : vector<8x32xbf16>, vector<32x96xbf16>, vector<8x96xf32> -> vector<8x96xf32>
    %c0_37 = arith.constant 0 : index
    %c0_38 = arith.constant 0 : index
    %55 = vector.load %arg15[%c0_37, %c0_38] : memref<1x96xf32, #tpu.memory_space<vmem>>, vector<1x96xf32>
    %56 = vector.broadcast %55 : vector<1x96xf32> to vector<8x96xf32>
    %57 = arith.addf %54, %56 : vector<8x96xf32>
    %58 = vector.extract_strided_slice %57 {offsets = [0, 0], sizes = [8, 16], strides = [1, 1]} : vector<8x96xf32> to vector<8x16xf32>
    %59 = arith.truncf %58 : vector<8x16xf32> to vector<8x16xbf16>
    %60 = vector.shape_cast %59 : vector<8x16xbf16> to vector<1x8x16xbf16>
    %61 = vector.extract_strided_slice %57 {offsets = [0, 16], sizes = [8, 16], strides = [1, 1]} : vector<8x96xf32> to vector<8x16xf32>
    %62 = arith.truncf %61 : vector<8x16xf32> to vector<8x16xbf16>
    %63 = vector.shape_cast %62 : vector<8x16xbf16> to vector<1x8x16xbf16>
    %64 = tpu.concatenate %60, %63 in 0 : vector<1x8x16xbf16>, vector<1x8x16xbf16> -> vector<2x8x16xbf16>
    %65 = vector.extract_strided_slice %57 {offsets = [0, 32], sizes = [8, 16], strides = [1, 1]} : vector<8x96xf32> to vector<8x16xf32>
    %66 = arith.truncf %65 : vector<8x16xf32> to vector<8x16xbf16>
    %67 = vector.shape_cast %66 : vector<8x16xbf16> to vector<1x8x16xbf16>
    %68 = vector.extract_strided_slice %57 {offsets = [0, 48], sizes = [8, 16], strides = [1, 1]} : vector<8x96xf32> to vector<8x16xf32>
    %69 = arith.truncf %68 : vector<8x16xf32> to vector<8x16xbf16>
    %70 = vector.shape_cast %69 : vector<8x16xbf16> to vector<1x8x16xbf16>
    %71 = tpu.concatenate %67, %70 in 0 : vector<1x8x16xbf16>, vector<1x8x16xbf16> -> vector<2x8x16xbf16>
    %72 = vector.extract_strided_slice %57 {offsets = [0, 64], sizes = [8, 16], strides = [1, 1]} : vector<8x96xf32> to vector<8x16xf32>
    %73 = arith.truncf %72 : vector<8x16xf32> to vector<8x16xbf16>
    %74 = vector.shape_cast %73 : vector<8x16xbf16> to vector<1x8x16xbf16>
    %75 = vector.extract_strided_slice %57 {offsets = [0, 80], sizes = [8, 16], strides = [1, 1]} : vector<8x96xf32> to vector<8x16xf32>
    %76 = arith.truncf %75 : vector<8x16xf32> to vector<8x16xbf16>
    %77 = vector.shape_cast %76 : vector<8x16xbf16> to vector<1x8x16xbf16>
    %78 = tpu.concatenate %74, %77 in 0 : vector<1x8x16xbf16>, vector<1x8x16xbf16> -> vector<2x8x16xbf16>
    "tpu.trace_start"() <{level = 10 : i32, message = "nqd,nkd->nqk"}> : () -> ()
    %cst_39 = arith.constant dense<0.000000e+00> : vector<2x8x8xf32>
    %79 = tpu.matmul %64, %71, %cst_39 {dimension_numbers = #tpu.dot_dimension_numbers<[2], [2], [1], [1], [0, 0, 0, 1, 1, 1], [0], [0]>} : vector<2x8x16xbf16>, vector<2x8x16xbf16>, vector<2x8x8xf32> -> vector<2x8x8xf32>
    "tpu.trace_stop"() : () -> ()
    %cst_40 = arith.constant dense<0xFF800000> : vector<2x8xf32>
    %80 = vector.multi_reduction <maximumf>, %79, %cst_40 [2] : vector<2x8x8xf32> to vector<2x8xf32>
    %81 = vector.shape_cast %80 : vector<2x8xf32> to vector<2x8x1xf32>
    %82 = vector.broadcast %81 : vector<2x8x1xf32> to vector<2x8x8xf32>
    %83 = arith.subf %79, %82 : vector<2x8x8xf32>
    %84 = math.exp %83 : vector<2x8x8xf32>
    %cst_41 = arith.constant dense<0.000000e+00> : vector<2x8xf32>
    %85 = vector.multi_reduction <add>, %84, %cst_41 [2] : vector<2x8x8xf32> to vector<2x8xf32>
    %86 = vector.shape_cast %85 : vector<2x8xf32> to vector<2x8x1xf32>
    %87 = tpu.reciprocal %86 {approx = true} : vector<2x8x1xf32> -> vector<2x8x1xf32>
    %88 = vector.broadcast %87 : vector<2x8x1xf32> to vector<2x8x8xf32>
    %89 = arith.mulf %84, %88 : vector<2x8x8xf32>
    %90 = arith.truncf %89 : vector<2x8x8xf32> to vector<2x8x8xbf16>
    "tpu.trace_start"() <{level = 10 : i32, message = "nqk,nkd->nqd"}> : () -> ()
    %cst_42 = arith.constant dense<0.000000e+00> : vector<2x8x16xf32>
    %91 = tpu.matmul %90, %78, %cst_42 {dimension_numbers = #tpu.dot_dimension_numbers<[2], [1], [1], [2], [0, 0, 0, 1, 1, 2], [0], [0]>} : vector<2x8x8xbf16>, vector<2x8x16xbf16>, vector<2x8x16xf32> -> vector<2x8x16xf32>
    "tpu.trace_stop"() : () -> ()
    %92 = vector.extract_strided_slice %91 {offsets = [0, 0, 0], sizes = [1, 8, 16], strides = [1, 1, 1]} : vector<2x8x16xf32> to vector<1x8x16xf32>
    %93 = vector.shape_cast %92 : vector<1x8x16xf32> to vector<8x16xf32>
    %94 = vector.extract_strided_slice %91 {offsets = [1, 0, 0], sizes = [1, 8, 16], strides = [1, 1, 1]} : vector<2x8x16xf32> to vector<1x8x16xf32>
    %95 = vector.shape_cast %94 : vector<1x8x16xf32> to vector<8x16xf32>
    %96 = tpu.concatenate %93, %95 in 1 : vector<8x16xf32>, vector<8x16xf32> -> vector<8x32xf32>
    %97 = arith.truncf %96 : vector<8x32xf32> to vector<8x32xbf16>
    %c0_43 = arith.constant 0 : index
    %c0_44 = arith.constant 0 : index
    %98 = vector.load %arg16[%c0_43, %c0_44] : memref<32x32xbf16, #tpu.memory_space<vmem>>, vector<32x32xbf16>
    %cst_45 = arith.constant dense<0.000000e+00> : vector<8x32xf32>
    %99 = tpu.matmul %97, %98, %cst_45 {dimension_numbers = #tpu.dot_dimension_numbers<[1], [0], [0], [1], [0, 0, 1, 1], [], []>} : vector<8x32xbf16>, vector<32x32xbf16>, vector<8x32xf32> -> vector<8x32xf32>
    %c0_46 = arith.constant 0 : index
    %c0_47 = arith.constant 0 : index
    %100 = vector.load %arg17[%c0_46, %c0_47] : memref<1x32xf32, #tpu.memory_space<vmem>>, vector<1x32xf32>
    %101 = vector.broadcast %100 : vector<1x32xf32> to vector<8x32xf32>
    %102 = arith.addf %99, %101 : vector<8x32xf32>
    %103 = arith.addf %102, %27 : vector<8x32xf32>
    %c0_48 = arith.constant 0 : index
    %c0_49 = arith.constant 0 : index
    %104 = vector.load %arg18[%c0_48, %c0_49] : memref<1x32xf32, #tpu.memory_space<vmem>>, vector<1x32xf32>
    %c0_50 = arith.constant 0 : index
    %c0_51 = arith.constant 0 : index
    %105 = vector.load %arg19[%c0_50, %c0_51] : memref<1x32xf32, #tpu.memory_space<vmem>>, vector<1x32xf32>
    %cst_52 = arith.constant dense<0.000000e+00> : vector<8xf32>
    %106 = vector.multi_reduction <add>, %103, %cst_52 [1] : vector<8x32xf32> to vector<8xf32>
    %107 = vector.shape_cast %106 : vector<8xf32> to vector<8x1xf32>
    %cst_53 = arith.constant 3.200000e+01 : f32
    %108 = vector.broadcast %cst_53 : f32 to vector<8x1xf32>
    %109 = arith.divf %107, %108 : vector<8x1xf32>
    %110 = vector.broadcast %109 : vector<8x1xf32> to vector<8x32xf32>
    %111 = arith.subf %103, %110 : vector<8x32xf32>
    %112 = arith.mulf %111, %111 : vector<8x32xf32>
    %cst_54 = arith.constant dense<0.000000e+00> : vector<8xf32>
    %113 = vector.multi_reduction <add>, %112, %cst_54 [1] : vector<8x32xf32> to vector<8xf32>
    %114 = vector.shape_cast %113 : vector<8xf32> to vector<8x1xf32>
    %cst_55 = arith.constant 3.200000e+01 : f32
    %115 = vector.broadcast %cst_55 : f32 to vector<8x1xf32>
    %116 = arith.divf %114, %115 : vector<8x1xf32>
    %117 = vector.broadcast %109 : vector<8x1xf32> to vector<8x32xf32>
    %118 = arith.subf %103, %117 : vector<8x32xf32>
    %cst_56 = arith.constant 9.99999997E-7 : f32
    %119 = vector.broadcast %cst_56 : f32 to vector<8x1xf32>
    %120 = arith.addf %116, %119 : vector<8x1xf32>
    %121 = math.rsqrt %120 : vector<8x1xf32>
    %122 = vector.broadcast %121 : vector<8x1xf32> to vector<8x32xf32>
    %123 = arith.mulf %118, %122 : vector<8x32xf32>
    %124 = vector.broadcast %104 : vector<1x32xf32> to vector<8x32xf32>
    %125 = arith.mulf %123, %124 : vector<8x32xf32>
    %126 = vector.broadcast %105 : vector<1x32xf32> to vector<8x32xf32>
    %127 = arith.addf %125, %126 : vector<8x32xf32>
    %128 = arith.truncf %127 : vector<8x32xf32> to vector<8x32xbf16>
    %c0_57 = arith.constant 0 : index
    %c0_58 = arith.constant 0 : index
    %129 = vector.load %arg20[%c0_57, %c0_58] : memref<32x128xbf16, #tpu.memory_space<vmem>>, vector<32x128xbf16>
    %cst_59 = arith.constant dense<0.000000e+00> : vector<8x128xf32>
    %130 = tpu.matmul %128, %129, %cst_59 {dimension_numbers = #tpu.dot_dimension_numbers<[1], [0], [0], [1], [0, 0, 1, 1], [], []>} : vector<8x32xbf16>, vector<32x128xbf16>, vector<8x128xf32> -> vector<8x128xf32>
    %c0_60 = arith.constant 0 : index
    %c0_61 = arith.constant 0 : index
    %131 = vector.load %arg21[%c0_60, %c0_61] : memref<1x128xf32, #tpu.memory_space<vmem>>, vector<1x128xf32>
    %132 = vector.broadcast %131 : vector<1x128xf32> to vector<8x128xf32>
    %133 = arith.addf %130, %132 : vector<8x128xf32>
    %cst_62 = arith.constant 5.000000e-01 : f32
    %134 = vector.broadcast %cst_62 : f32 to vector<8x128xf32>
    %135 = arith.mulf %134, %133 : vector<8x128xf32>
    %cst_63 = arith.constant 4.471500e-02 : f32
    %136 = vector.broadcast %cst_63 : f32 to vector<8x128xf32>
    %137 = arith.mulf %136, %133 : vector<8x128xf32>
    %138 = arith.mulf %137, %133 : vector<8x128xf32>
    %139 = arith.mulf %138, %133 : vector<8x128xf32>
    %140 = arith.addf %133, %139 : vector<8x128xf32>
    %cst_64 = arith.constant 0.797884583 : f32
    %141 = vector.broadcast %cst_64 : f32 to vector<8x128xf32>
    %142 = arith.mulf %141, %140 : vector<8x128xf32>
    %143 = math.tanh %142 : vector<8x128xf32>
    %cst_65 = arith.constant 1.000000e+00 : f32
    %144 = vector.broadcast %cst_65 : f32 to vector<8x128xf32>
    %145 = arith.addf %144, %143 : vector<8x128xf32>
    %146 = arith.mulf %135, %145 : vector<8x128xf32>
    %147 = arith.truncf %146 : vector<8x128xf32> to vector<8x128xbf16>
    %c0_66 = arith.constant 0 : index
    %c0_67 = arith.constant 0 : index
    %148 = vector.load %arg22[%c0_66, %c0_67] : memref<128x32xbf16, #tpu.memory_space<vmem>>, vector<128x32xbf16>
    %cst_68 = arith.constant dense<0.000000e+00> : vector<8x32xf32>
    %149 = tpu.matmul %147, %148, %cst_68 {dimension_numbers = #tpu.dot_dimension_numbers<[1], [0], [0], [1], [0, 0, 1, 1], [], []>} : vector<8x128xbf16>, vector<128x32xbf16>, vector<8x32xf32> -> vector<8x32xf32>
    %c0_69 = arith.constant 0 : index
    %c0_70 = arith.constant 0 : index
    %150 = vector.load %arg23[%c0_69, %c0_70] : memref<1x32xf32, #tpu.memory_space<vmem>>, vector<1x32xf32>
    %151 = vector.broadcast %150 : vector<1x32xf32> to vector<8x32xf32>
    %152 = arith.addf %149, %151 : vector<8x32xf32>
    %153 = arith.addf %152, %103 : vector<8x32xf32>
    %154 = arith.truncf %153 : vector<8x32xf32> to vector<8x32xbf16>
    %c0_71 = arith.constant 0 : index
    %c0_72 = arith.constant 0 : index
    %155 = vector.load %arg2[%c0_71, %c0_72] : memref<32x64xbf16, #tpu.memory_space<vmem>>, vector<32x64xbf16>
    %cst_73 = arith.constant dense<0.000000e+00> : vector<8x64xf32>
    %156 = tpu.matmul %154, %155, %cst_73 {dimension_numbers = #tpu.dot_dimension_numbers<[1], [0], [0], [1], [0, 0, 1, 1], [], []>} : vector<8x32xbf16>, vector<32x64xbf16>, vector<8x64xf32> -> vector<8x64xf32>
    %c0_74 = arith.constant 0 : index
    %c0_75 = arith.constant 0 : index
    %157 = vector.load %arg3[%c0_74, %c0_75] : memref<32x64xbf16, #tpu.memory_space<vmem>>, vector<32x64xbf16>
    %cst_76 = arith.constant dense<0.000000e+00> : vector<8x64xf32>
    %158 = tpu.matmul %154, %157, %cst_76 {dimension_numbers = #tpu.dot_dimension_numbers<[1], [0], [0], [1], [0, 0, 1, 1], [], []>} : vector<8x32xbf16>, vector<32x64xbf16>, vector<8x64xf32> -> vector<8x64xf32>
    %159 = arith.addf %156, %158 : vector<8x64xf32>
    %160 = vector.extract_strided_slice %159 {offsets = [0, 0], sizes = [8, 32], strides = [1, 1]} : vector<8x64xf32> to vector<8x32xf32>
    %161 = arith.truncf %160 : vector<8x32xf32> to vector<8x32xbf16>
    %162 = vector.extract_strided_slice %159 {offsets = [0, 32], sizes = [8, 32], strides = [1, 1]} : vector<8x64xf32> to vector<8x32xf32>
    %163 = arith.truncf %162 : vector<8x32xf32> to vector<8x32xbf16>
    %c0_77 = arith.constant 0 : index
    %c0_78 = arith.constant 0 : index
    %164 = vector.load %arg8[%c0_77, %c0_78] : memref<8x8xbf16, #tpu.memory_space<vmem>>, vector<8x8xbf16>
    %c0_79 = arith.constant 0 : index
    %c0_80 = arith.constant 0 : index
    %165 = vector.load %arg9[%c0_79, %c0_80] : memref<8x8xbf16, #tpu.memory_space<vmem>>, vector<8x8xbf16>
    %c0_81 = arith.constant 0 : index
    %c0_82 = arith.constant 0 : index
    %166 = vector.load %arg10[%c0_81, %c0_82] : memref<8x8xbf16, #tpu.memory_space<vmem>>, vector<8x8xbf16>
    %c0_83 = arith.constant 0 : index
    %c0_84 = arith.constant 0 : index
    %167 = vector.load %arg11[%c0_83, %c0_84] : memref<8x8xbf16, #tpu.memory_space<vmem>>, vector<8x8xbf16>
    %cst_85 = arith.constant dense<0.000000e+00> : vector<8x32xf32>
    %168 = tpu.matmul %164, %161, %cst_85 {dimension_numbers = #tpu.dot_dimension_numbers<[1], [0], [0], [1], [0, 0, 1, 1], [], []>} : vector<8x8xbf16>, vector<8x32xbf16>, vector<8x32xf32> -> vector<8x32xf32>
    %cst_86 = arith.constant dense<0.000000e+00> : vector<8x32xf32>
    %169 = tpu.matmul %165, %161, %cst_86 {dimension_numbers = #tpu.dot_dimension_numbers<[1], [0], [0], [1], [0, 0, 1, 1], [], []>} : vector<8x8xbf16>, vector<8x32xbf16>, vector<8x32xf32> -> vector<8x32xf32>
    %170 = arith.addf %168, %169 : vector<8x32xf32>
    %cst_87 = arith.constant dense<0.000000e+00> : vector<8x32xf32>
    %171 = tpu.matmul %166, %163, %cst_87 {dimension_numbers = #tpu.dot_dimension_numbers<[1], [0], [0], [1], [0, 0, 1, 1], [], []>} : vector<8x8xbf16>, vector<8x32xbf16>, vector<8x32xf32> -> vector<8x32xf32>
    %172 = arith.subf %170, %171 : vector<8x32xf32>
    %cst_88 = arith.constant dense<0.000000e+00> : vector<8x32xf32>
    %173 = tpu.matmul %167, %163, %cst_88 {dimension_numbers = #tpu.dot_dimension_numbers<[1], [0], [0], [1], [0, 0, 1, 1], [], []>} : vector<8x8xbf16>, vector<8x32xbf16>, vector<8x32xf32> -> vector<8x32xf32>
    %174 = arith.subf %172, %173 : vector<8x32xf32>
    %c0_89 = arith.constant 0 : index
    %c0_90 = arith.constant 0 : index
    %c0_91 = arith.constant 0 : index
    %175 = vector.load %arg24[%c0_89, %c0_90, %c0_91] : memref<1x8x32xf32, #tpu.memory_space<vmem>>, vector<1x8x32xf32>
    %176 = vector.shape_cast %175 : vector<1x8x32xf32> to vector<8x32xf32>
    %177 = vector.shape_cast %174 : vector<8x32xf32> to vector<1x8x32xf32>
    tpu.vector_store %arg24[%c0_89, %c0_90, %c0_91], %177 {strides = array<i32>} : memref<1x8x32xf32, #tpu.memory_space<vmem>>, vector<1x8x32xf32>,
    return
  }
  func.func @transform_0(%arg0: i32) -> (i32, i32, i32) {
    %c0_i32 = arith.constant 0 : i32
    %c0_i32_0 = arith.constant 0 : i32
    %c0_i32_1 = arith.constant 0 : i32
    return %arg0, %c0_i32, %c0_i32_0 : i32, i32, i32
  }
  func.func @transform_1(%arg0: i32) -> (i32, i32) {
    %c0_i32 = arith.constant 0 : i32
    %c0_i32_0 = arith.constant 0 : i32
    %c0_i32_1 = arith.constant 0 : i32
    return %c0_i32, %c0_i32_0 : i32, i32
  }
  func.func @transform_2(%arg0: i32) -> (i32, i32) {
    %c0_i32 = arith.constant 0 : i32
    %c0_i32_0 = arith.constant 0 : i32
    %c0_i32_1 = arith.constant 0 : i32
    return %c0_i32, %c0_i32_0 : i32, i32
  }
  func.func @transform_3(%arg0: i32) -> (i32, i32) {
    %c0_i32 = arith.constant 0 : i32
    %c0_i32_0 = arith.constant 0 : i32
    %c0_i32_1 = arith.constant 0 : i32
    return %c0_i32, %c0_i32_0 : i32, i32
  }
  func.func @transform_4(%arg0: i32) -> (i32, i32) {
    %c0_i32 = arith.constant 0 : i32
    %c0_i32_0 = arith.constant 0 : i32
    %c0_i32_1 = arith.constant 0 : i32
    return %c0_i32, %c0_i32_0 : i32, i32
  }
  func.func @transform_5(%arg0: i32) -> (i32, i32) {
    %c0_i32 = arith.constant 0 : i32
    %c0_i32_0 = arith.constant 0 : i32
    %c0_i32_1 = arith.constant 0 : i32
    return %c0_i32, %c0_i32_0 : i32, i32
  }
  func.func @transform_6(%arg0: i32) -> (i32, i32) {
    %c0_i32 = arith.constant 0 : i32
    %c0_i32_0 = arith.constant 0 : i32
    %c0_i32_1 = arith.constant 0 : i32
    return %c0_i32, %c0_i32_0 : i32, i32
  }
  func.func @transform_7(%arg0: i32) -> (i32, i32) {
    %c0_i32 = arith.constant 0 : i32
    %c0_i32_0 = arith.constant 0 : i32
    %c0_i32_1 = arith.constant 0 : i32
    return %c0_i32, %c0_i32_0 : i32, i32
  }
  func.func @transform_8(%arg0: i32) -> (i32, i32) {
    %c0_i32 = arith.constant 0 : i32
    %c0_i32_0 = arith.constant 0 : i32
    %c0_i32_1 = arith.constant 0 : i32
    return %c0_i32, %c0_i32_0 : i32, i32
  }
  func.func @transform_9(%arg0: i32) -> (i32, i32) {
    %c0_i32 = arith.constant 0 : i32
    %c0_i32_0 = arith.constant 0 : i32
    %c0_i32_1 = arith.constant 0 : i32
    return %c0_i32, %c0_i32_0 : i32, i32
  }
  func.func @transform_10(%arg0: i32) -> (i32, i32) {
    %c0_i32 = arith.constant 0 : i32
    %c0_i32_0 = arith.constant 0 : i32
    %c0_i32_1 = arith.constant 0 : i32
    return %c0_i32, %c0_i32_0 : i32, i32
  }
  func.func @transform_11(%arg0: i32) -> (i32, i32) {
    %c0_i32 = arith.constant 0 : i32
    %c0_i32_0 = arith.constant 0 : i32
    %c0_i32_1 = arith.constant 0 : i32
    return %c0_i32, %c0_i32_0 : i32, i32
  }
  func.func @transform_12(%arg0: i32) -> (i32, i32) {
    %c0_i32 = arith.constant 0 : i32
    %c0_i32_0 = arith.constant 0 : i32
    %c0_i32_1 = arith.constant 0 : i32
    return %c0_i32, %c0_i32_0 : i32, i32
  }
  func.func @transform_13(%arg0: i32) -> (i32, i32) {
    %c0_i32 = arith.constant 0 : i32
    %c0_i32_0 = arith.constant 0 : i32
    %c0_i32_1 = arith.constant 0 : i32
    return %c0_i32, %c0_i32_0 : i32, i32
  }
  func.func @transform_14(%arg0: i32) -> (i32, i32) {
    %c0_i32 = arith.constant 0 : i32
    %c0_i32_0 = arith.constant 0 : i32
    %c0_i32_1 = arith.constant 0 : i32
    return %c0_i32, %c0_i32_0 : i32, i32
  }
  func.func @transform_15(%arg0: i32) -> (i32, i32) {
    %c0_i32 = arith.constant 0 : i32
    %c0_i32_0 = arith.constant 0 : i32
    %c0_i32_1 = arith.constant 0 : i32
    return %c0_i32, %c0_i32_0 : i32, i32
  }
  func.func @transform_16(%arg0: i32) -> (i32, i32) {
    %c0_i32 = arith.constant 0 : i32
    %c0_i32_0 = arith.constant 0 : i32
    %c0_i32_1 = arith.constant 0 : i32
    return %c0_i32, %c0_i32_0 : i32, i32
  }
  func.func @transform_17(%arg0: i32) -> (i32, i32) {
    %c0_i32 = arith.constant 0 : i32
    %c0_i32_0 = arith.constant 0 : i32
    %c0_i32_1 = arith.constant 0 : i32
    return %c0_i32, %c0_i32_0 : i32, i32
  }
  func.func @transform_18(%arg0: i32) -> (i32, i32) {
    %c0_i32 = arith.constant 0 : i32
    %c0_i32_0 = arith.constant 0 : i32
    %c0_i32_1 = arith.constant 0 : i32
    return %c0_i32, %c0_i32_0 : i32, i32
  }
  func.func @transform_19(%arg0: i32) -> (i32, i32) {
    %c0_i32 = arith.constant 0 : i32
    %c0_i32_0 = arith.constant 0 : i32
    %c0_i32_1 = arith.constant 0 : i32
    return %c0_i32, %c0_i32_0 : i32, i32
  }
  func.func @transform_20(%arg0: i32) -> (i32, i32) {
    %c0_i32 = arith.constant 0 : i32
    %c0_i32_0 = arith.constant 0 : i32
    %c0_i32_1 = arith.constant 0 : i32
    return %c0_i32, %c0_i32_0 : i32, i32
  }
  func.func @transform_21(%arg0: i32) -> (i32, i32) {
    %c0_i32 = arith.constant 0 : i32
    %c0_i32_0 = arith.constant 0 : i32
    %c0_i32_1 = arith.constant 0 : i32
    return %c0_i32, %c0_i32_0 : i32, i32
  }
  func.func @transform_22(%arg0: i32) -> (i32, i32) {
    %c0_i32 = arith.constant 0 : i32
    %c0_i32_0 = arith.constant 0 : i32
    %c0_i32_1 = arith.constant 0 : i32
    return %c0_i32, %c0_i32_0 : i32, i32
  }
  func.func @transform_23(%arg0: i32) -> (i32, i32, i32) {
    %c0_i32 = arith.constant 0 : i32
    %c0_i32_0 = arith.constant 0 : i32
    %c0_i32_1 = arith.constant 0 : i32
    return %arg0, %c0_i32, %c0_i32_0 : i32, i32, i32
  }
}

module attributes {stable_mosaic.version = 11 : i64} {
  func.func @_vit_fourier_kernel(%arg0: i32, %arg1: memref<1x8x32xf32, #tpu.memory_space<vmem>>, %arg2: memref<32x64xbf16, #tpu.memory_space<vmem>>, %arg3: memref<32x64xbf16, #tpu.memory_space<vmem>>, %arg4: memref<8x8xbf16, #tpu.memory_space<vmem>>, %arg5: memref<8x8xbf16, #tpu.memory_space<vmem>>, %arg6: memref<8x8xbf16, #tpu.memory_space<vmem>>, %arg7: memref<8x8xbf16, #tpu.memory_space<vmem>>, %arg8: memref<8x8xbf16, #tpu.memory_space<vmem>>, %arg9: memref<8x8xbf16, #tpu.memory_space<vmem>>, %arg10: memref<8x8xbf16, #tpu.memory_space<vmem>>, %arg11: memref<8x8xbf16, #tpu.memory_space<vmem>>, %arg12: memref<1x32xf32, #tpu.memory_space<vmem>>, %arg13: memref<1x32xf32, #tpu.memory_space<vmem>>, %arg14: memref<32x96xbf16, #tpu.memory_space<vmem>>, %arg15: memref<1x96xf32, #tpu.memory_space<vmem>>, %arg16: memref<32x32xbf16, #tpu.memory_space<vmem>>, %arg17: memref<1x32xf32, #tpu.memory_space<vmem>>, %arg18: memref<1x32xf32, #tpu.memory_space<vmem>>, %arg19: memref<1x32xf32, #tpu.memory_space<vmem>>, %arg20: memref<32x128xbf16, #tpu.memory_space<vmem>>, %arg21: memref<1x128xf32, #tpu.memory_space<vmem>>, %arg22: memref<128x32xbf16, #tpu.memory_space<vmem>>, %arg23: memref<1x32xf32, #tpu.memory_space<vmem>>, %arg24: memref<1x8x32xf32, #tpu.memory_space<vmem>>, %arg25: memref<1x8x32xf32, #tpu.memory_space<vmem>>) attributes {dimension_semantics = [#tpu.dimension_semantics<parallel>], iteration_bounds = array<i64: 2>, scalar_prefetch = 0 : i64, scratch_operands = 1 : i64, tpu.core_type = #tpu.core_type<tc>, window_params = [{transform_indices = @transform_0, window_bounds = array<i64: 1, 8, 32>}, {pipeline_mode = #tpu.pipeline_mode<synchronous>, transform_indices = @transform_1, window_bounds = array<i64: 32, 64>}, {pipeline_mode = #tpu.pipeline_mode<synchronous>, transform_indices = @transform_2, window_bounds = array<i64: 32, 64>}, {pipeline_mode = #tpu.pipeline_mode<synchronous>, transform_indices = @transform_3, window_bounds = array<i64: 8, 8>}, {pipeline_mode = #tpu.pipeline_mode<synchronous>, transform_indices = @transform_4, window_bounds = array<i64: 8, 8>}, {pipeline_mode = #tpu.pipeline_mode<synchronous>, transform_indices = @transform_5, window_bounds = array<i64: 8, 8>}, {pipeline_mode = #tpu.pipeline_mode<synchronous>, transform_indices = @transform_6, window_bounds = array<i64: 8, 8>}, {pipeline_mode = #tpu.pipeline_mode<synchronous>, transform_indices = @transform_7, window_bounds = array<i64: 8, 8>}, {pipeline_mode = #tpu.pipeline_mode<synchronous>, transform_indices = @transform_8, window_bounds = array<i64: 8, 8>}, {pipeline_mode = #tpu.pipeline_mode<synchronous>, transform_indices = @transform_9, window_bounds = array<i64: 8, 8>}, {pipeline_mode = #tpu.pipeline_mode<synchronous>, transform_indices = @transform_10, window_bounds = array<i64: 8, 8>}, {pipeline_mode = #tpu.pipeline_mode<synchronous>, transform_indices = @transform_11, window_bounds = array<i64: 1, 32>}, {pipeline_mode = #tpu.pipeline_mode<synchronous>, transform_indices = @transform_12, window_bounds = array<i64: 1, 32>}, {pipeline_mode = #tpu.pipeline_mode<synchronous>, transform_indices = @transform_13, window_bounds = array<i64: 32, 96>}, {pipeline_mode = #tpu.pipeline_mode<synchronous>, transform_indices = @transform_14, window_bounds = array<i64: 1, 96>}, {pipeline_mode = #tpu.pipeline_mode<synchronous>, transform_indices = @transform_15, window_bounds = array<i64: 32, 32>}, {pipeline_mode = #tpu.pipeline_mode<synchronous>, transform_indices = @transform_16, window_bounds = array<i64: 1, 32>}, {pipeline_mode = #tpu.pipeline_mode<synchronous>, transform_indices = @transform_17, window_bounds = array<i64: 1, 32>}, {pipeline_mode = #tpu.pipeline_mode<synchronous>, transform_indices = @transform_18, window_bounds = array<i64: 1, 32>}, {pipeline_mode = #tpu.pipeline_mode<synchronous>, transform_indices = @transform_19, window_bounds = array<i64: 32, 128>}, {pipeline_mode = #tpu.pipeline_mode<synchronous>, transform_indices = @transform_20, window_bounds = array<i64: 1, 128>}, {pipeline_mode = #tpu.pipeline_mode<synchronous>, transform_indices = @transform_21, window_bounds = array<i64: 128, 32>}, {pipeline_mode = #tpu.pipeline_mode<synchronous>, transform_indices = @transform_22, window_bounds = array<i64: 1, 32>}, {transform_indices = @transform_23, window_bounds = array<i64: 1, 8, 32>}]} {
    %c0 = arith.constant 0 : index
    %c0_0 = arith.constant 0 : index
    %c0_1 = arith.constant 0 : index
    %0 = vector.load %arg1[%c0, %c0_0, %c0_1] : memref<1x8x32xf32, #tpu.memory_space<vmem>>, vector<1x8x32xf32>
    %1 = vector.shape_cast %0 : vector<1x8x32xf32> to vector<8x32xf32>
    %2 = arith.truncf %1 : vector<8x32xf32> to vector<8x32xbf16>
    %c0_2 = arith.constant 0 : index
    %c0_3 = arith.constant 0 : index
    %3 = vector.load %arg2[%c0_2, %c0_3] : memref<32x64xbf16, #tpu.memory_space<vmem>>, vector<32x64xbf16>
    %cst = arith.constant dense<0.000000e+00> : vector<8x64xf32>
    %4 = tpu.matmul %2, %3, %cst {dimension_numbers = #tpu.dot_dimension_numbers<[1], [0], [0], [1], [0, 0, 1, 1], [], []>} : vector<8x32xbf16>, vector<32x64xbf16>, vector<8x64xf32> -> vector<8x64xf32>
    %c0_4 = arith.constant 0 : index
    %c0_5 = arith.constant 0 : index
    %5 = vector.load %arg3[%c0_4, %c0_5] : memref<32x64xbf16, #tpu.memory_space<vmem>>, vector<32x64xbf16>
    %cst_6 = arith.constant dense<0.000000e+00> : vector<8x64xf32>
    %6 = tpu.matmul %2, %5, %cst_6 {dimension_numbers = #tpu.dot_dimension_numbers<[1], [0], [0], [1], [0, 0, 1, 1], [], []>} : vector<8x32xbf16>, vector<32x64xbf16>, vector<8x64xf32> -> vector<8x64xf32>
    %7 = arith.addf %4, %6 : vector<8x64xf32>
    %8 = vector.extract_strided_slice %7 {offsets = [0, 0], sizes = [8, 32], strides = [1, 1]} : vector<8x64xf32> to vector<8x32xf32>
    %9 = arith.truncf %8 : vector<8x32xf32> to vector<8x32xbf16>
    %10 = vector.extract_strided_slice %7 {offsets = [0, 32], sizes = [8, 32], strides = [1, 1]} : vector<8x64xf32> to vector<8x32xf32>
    %11 = arith.truncf %10 : vector<8x32xf32> to vector<8x32xbf16>
    %c0_7 = arith.constant 0 : index
    %c0_8 = arith.constant 0 : index
    %12 = vector.load %arg4[%c0_7, %c0_8] : memref<8x8xbf16, #tpu.memory_space<vmem>>, vector<8x8xbf16>
    %c0_9 = arith.constant 0 : index
    %c0_10 = arith.constant 0 : index
    %13 = vector.load %arg5[%c0_9, %c0_10] : memref<8x8xbf16, #tpu.memory_space<vmem>>, vector<8x8xbf16>
    %c0_11 = arith.constant 0 : index
    %c0_12 = arith.constant 0 : index
    %14 = vector.load %arg6[%c0_11, %c0_12] : memref<8x8xbf16, #tpu.memory_space<vmem>>, vector<8x8xbf16>
    %c0_13 = arith.constant 0 : index
    %c0_14 = arith.constant 0 : index
    %15 = vector.load %arg7[%c0_13, %c0_14] : memref<8x8xbf16, #tpu.memory_space<vmem>>, vector<8x8xbf16>
    %cst_15 = arith.constant dense<0.000000e+00> : vector<8x32xf32>
    %16 = tpu.matmul %12, %9, %cst_15 {dimension_numbers = #tpu.dot_dimension_numbers<[1], [0], [0], [1], [0, 0, 1, 1], [], []>} : vector<8x8xbf16>, vector<8x32xbf16>, vector<8x32xf32> -> vector<8x32xf32>
    %cst_16 = arith.constant dense<0.000000e+00> : vector<8x32xf32>
    %17 = tpu.matmul %13, %9, %cst_16 {dimension_numbers = #tpu.dot_dimension_numbers<[1], [0], [0], [1], [0, 0, 1, 1], [], []>} : vector<8x8xbf16>, vector<8x32xbf16>, vector<8x32xf32> -> vector<8x32xf32>
    %18 = arith.addf %16, %17 : vector<8x32xf32>
    %cst_17 = arith.constant dense<0.000000e+00> : vector<8x32xf32>
    %19 = tpu.matmul %14, %11, %cst_17 {dimension_numbers = #tpu.dot_dimension_numbers<[1], [0], [0], [1], [0, 0, 1, 1], [], []>} : vector<8x8xbf16>, vector<8x32xbf16>, vector<8x32xf32> -> vector<8x32xf32>
    %20 = arith.subf %18, %19 : vector<8x32xf32>
    %cst_18 = arith.constant dense<0.000000e+00> : vector<8x32xf32>
    %21 = tpu.matmul %15, %11, %cst_18 {dimension_numbers = #tpu.dot_dimension_numbers<[1], [0], [0], [1], [0, 0, 1, 1], [], []>} : vector<8x8xbf16>, vector<8x32xbf16>, vector<8x32xf32> -> vector<8x32xf32>
    %22 = arith.subf %20, %21 : vector<8x32xf32>
    %c0_19 = arith.constant 0 : index
    %c0_20 = arith.constant 0 : index
    %c0_21 = arith.constant 0 : index
    %23 = vector.load %arg25[%c0_19, %c0_20, %c0_21] : memref<1x8x32xf32, #tpu.memory_space<vmem>>, vector<1x8x32xf32>
    %24 = vector.shape_cast %23 : vector<1x8x32xf32> to vector<8x32xf32>
    %25 = vector.shape_cast %22 : vector<8x32xf32> to vector<1x8x32xf32>
    tpu.vector_store %arg25[%c0_19, %c0_20, %c0_21], %25 {strides = array<i32>} : memref<1x8x32xf32, #tpu.memory_space<vmem>>, vector<1x8x32xf32>,
    %c0_22 = arith.constant 0 : index
    %c0_23 = arith.constant 0 : index
    %c0_24 = arith.constant 0 : index
    %26 = vector.load %arg25[%c0_22, %c0_23, %c0_24] : memref<1x8x32xf32, #tpu.memory_space<vmem>>, vector<1x8x32xf32>
    %27 = vector.shape_cast %26 : vector<1x8x32xf32> to vector<8x32xf32>
    %c0_25 = arith.constant 0 : index
    %c0_26 = arith.constant 0 : index
    %28 = vector.load %arg12[%c0_25, %c0_26] : memref<1x32xf32, #tpu.memory_space<vmem>>, vector<1x32xf32>
    %c0_27 = arith.constant 0 : index
    %c0_28 = arith.constant 0 : index
    %29 = vector.load %arg13[%c0_27, %c0_28] : memref<1x32xf32, #tpu.memory_space<vmem>>, vector<1x32xf32>
    %cst_29 = arith.constant dense<0.000000e+00> : vector<8xf32>
    %30 = vector.multi_reduction <add>, %27, %cst_29 [1] : vector<8x32xf32> to vector<8xf32>
    %31 = vector.shape_cast %30 : vector<8xf32> to vector<8x1xf32>
    %cst_30 = arith.constant 3.200000e+01 : f32
    %32 = vector.broadcast %cst_30 : f32 to vector<8x1xf32>
    %33 = arith.divf %31, %32 : vector<8x1xf32>
    %34 = vector.broadcast %33 : vector<8x1xf32> to vector<8x32xf32>
    %35 = arith.subf %27, %34 : vector<8x32xf32>
    %36 = arith.mulf %35, %35 : vector<8x32xf32>
    %cst_31 = arith.constant dense<0.000000e+00> : vector<8xf32>
    %37 = vector.multi_reduction <add>, %36, %cst_31 [1] : vector<8x32xf32> to vector<8xf32>
    %38 = vector.shape_cast %37 : vector<8xf32> to vector<8x1xf32>
    %cst_32 = arith.constant 3.200000e+01 : f32
    %39 = vector.broadcast %cst_32 : f32 to vector<8x1xf32>
    %40 = arith.divf %38, %39 : vector<8x1xf32>
    %41 = vector.broadcast %33 : vector<8x1xf32> to vector<8x32xf32>
    %42 = arith.subf %27, %41 : vector<8x32xf32>
    %cst_33 = arith.constant 9.99999997E-7 : f32
    %43 = vector.broadcast %cst_33 : f32 to vector<8x1xf32>
    %44 = arith.addf %40, %43 : vector<8x1xf32>
    %45 = math.rsqrt %44 : vector<8x1xf32>
    %46 = vector.broadcast %45 : vector<8x1xf32> to vector<8x32xf32>
    %47 = arith.mulf %42, %46 : vector<8x32xf32>
    %48 = vector.broadcast %28 : vector<1x32xf32> to vector<8x32xf32>
    %49 = arith.mulf %47, %48 : vector<8x32xf32>
    %50 = vector.broadcast %29 : vector<1x32xf32> to vector<8x32xf32>
    %51 = arith.addf %49, %50 : vector<8x32xf32>
    %52 = arith.truncf %51 : vector<8x32xf32> to vector<8x32xbf16>
    %c0_34 = arith.constant 0 : index
    %c0_35 = arith.constant 0 : index
    %53 = vector.load %arg14[%c0_34, %c0_35] : memref<32x96xbf16, #tpu.memory_space<vmem>>, vector<32x96xbf16>
    %cst_36 = arith.constant dense<0.000000e+00> : vector<8x96xf32>
    %54 = tpu.matmul %52, %53, %cst_36 {dimension_numbers = #tpu.dot_dimension_numbers<[1], [0], [0], [1], [0, 0, 1, 1], [], []>} : vector<8x32xbf16>, vector<32x96xbf16>, vector<8x96xf32> -> vector<8x96xf32>
    %c0_37 = arith.constant 0 : index
    %c0_38 = arith.constant 0 : index
    %55 = vector.load %arg15[%c0_37, %c0_38] : memref<1x96xf32, #tpu.memory_space<vmem>>, vector<1x96xf32>
    %56 = vector.broadcast %55 : vector<1x96xf32> to vector<8x96xf32>
    %57 = arith.addf %54, %56 : vector<8x96xf32>
    %58 = vector.extract_strided_slice %57 {offsets = [0, 0], sizes = [8, 16], strides = [1, 1]} : vector<8x96xf32> to vector<8x16xf32>
    %59 = arith.truncf %58 : vector<8x16xf32> to vector<8x16xbf16>
    %60 = vector.shape_cast %59 : vector<8x16xbf16> to vector<1x8x16xbf16>
    %61 = vector.extract_strided_slice %57 {offsets = [0, 16], sizes = [8, 16], strides = [1, 1]} : vector<8x96xf32> to vector<8x16xf32>
    %62 = arith.truncf %61 : vector<8x16xf32> to vector<8x16xbf16>
    %63 = vector.shape_cast %62 : vector<8x16xbf16> to vector<1x8x16xbf16>
    %64 = tpu.concatenate %60, %63 in 0 : vector<1x8x16xbf16>, vector<1x8x16xbf16> -> vector<2x8x16xbf16>
    %65 = vector.extract_strided_slice %57 {offsets = [0, 32], sizes = [8, 16], strides = [1, 1]} : vector<8x96xf32> to vector<8x16xf32>
    %66 = arith.truncf %65 : vector<8x16xf32> to vector<8x16xbf16>
    %67 = vector.shape_cast %66 : vector<8x16xbf16> to vector<1x8x16xbf16>
    %68 = vector.extract_strided_slice %57 {offsets = [0, 48], sizes = [8, 16], strides = [1, 1]} : vector<8x96xf32> to vector<8x16xf32>
    %69 = arith.truncf %68 : vector<8x16xf32> to vector<8x16xbf16>
    %70 = vector.shape_cast %69 : vector<8x16xbf16> to vector<1x8x16xbf16>
    %71 = tpu.concatenate %67, %70 in 0 : vector<1x8x16xbf16>, vector<1x8x16xbf16> -> vector<2x8x16xbf16>
    %72 = vector.extract_strided_slice %57 {offsets = [0, 64], sizes = [8, 16], strides = [1, 1]} : vector<8x96xf32> to vector<8x16xf32>
    %73 = arith.truncf %72 : vector<8x16xf32> to vector<8x16xbf16>
    %74 = vector.shape_cast %73 : vector<8x16xbf16> to vector<1x8x16xbf16>
    %75 = vector.extract_strided_slice %57 {offsets = [0, 80], sizes = [8, 16], strides = [1, 1]} : vector<8x96xf32> to vector<8x16xf32>
    %76 = arith.truncf %75 : vector<8x16xf32> to vector<8x16xbf16>
    %77 = vector.shape_cast %76 : vector<8x16xbf16> to vector<1x8x16xbf16>
    %78 = tpu.concatenate %74, %77 in 0 : vector<1x8x16xbf16>, vector<1x8x16xbf16> -> vector<2x8x16xbf16>
    "tpu.trace_start"() <{level = 10 : i32, message = "nqd,nkd->nqk"}> : () -> ()
    %cst_39 = arith.constant dense<0.000000e+00> : vector<2x8x8xf32>
    %79 = tpu.matmul %64, %71, %cst_39 {dimension_numbers = #tpu.dot_dimension_numbers<[2], [2], [1], [1], [0, 0, 0, 1, 1, 1], [0], [0]>} : vector<2x8x16xbf16>, vector<2x8x16xbf16>, vector<2x8x8xf32> -> vector<2x8x8xf32>
    "tpu.trace_stop"() : () -> ()
    %cst_40 = arith.constant dense<0xFF800000> : vector<2x8xf32>
    %80 = vector.multi_reduction <maximumf>, %79, %cst_40 [2] : vector<2x8x8xf32> to vector<2x8xf32>
    %81 = vector.shape_cast %80 : vector<2x8xf32> to vector<2x8x1xf32>
    %82 = vector.broadcast %81 : vector<2x8x1xf32> to vector<2x8x8xf32>
    %83 = arith.subf %79, %82 : vector<2x8x8xf32>
    %84 = math.exp %83 : vector<2x8x8xf32>
    %cst_41 = arith.constant dense<0.000000e+00> : vector<2x8xf32>
    %85 = vector.multi_reduction <add>, %84, %cst_41 [2] : vector<2x8x8xf32> to vector<2x8xf32>
    %86 = vector.shape_cast %85 : vector<2x8xf32> to vector<2x8x1xf32>
    %87 = tpu.reciprocal %86 {approx = true} : vector<2x8x1xf32> -> vector<2x8x1xf32>
    %88 = vector.broadcast %87 : vector<2x8x1xf32> to vector<2x8x8xf32>
    %89 = arith.mulf %84, %88 : vector<2x8x8xf32>
    %90 = arith.truncf %89 : vector<2x8x8xf32> to vector<2x8x8xbf16>
    "tpu.trace_start"() <{level = 10 : i32, message = "nqk,nkd->nqd"}> : () -> ()
    %cst_42 = arith.constant dense<0.000000e+00> : vector<2x8x16xf32>
    %91 = tpu.matmul %90, %78, %cst_42 {dimension_numbers = #tpu.dot_dimension_numbers<[2], [1], [1], [2], [0, 0, 0, 1, 1, 2], [0], [0]>} : vector<2x8x8xbf16>, vector<2x8x16xbf16>, vector<2x8x16xf32> -> vector<2x8x16xf32>
    "tpu.trace_stop"() : () -> ()
    %92 = vector.extract_strided_slice %91 {offsets = [0, 0, 0], sizes = [1, 8, 16], strides = [1, 1, 1]} : vector<2x8x16xf32> to vector<1x8x16xf32>
    %93 = vector.shape_cast %92 : vector<1x8x16xf32> to vector<8x16xf32>
    %94 = vector.extract_strided_slice %91 {offsets = [1, 0, 0], sizes = [1, 8, 16], strides = [1, 1, 1]} : vector<2x8x16xf32> to vector<1x8x16xf32>
    %95 = vector.shape_cast %94 : vector<1x8x16xf32> to vector<8x16xf32>
    %96 = tpu.concatenate %93, %95 in 1 : vector<8x16xf32>, vector<8x16xf32> -> vector<8x32xf32>
    %97 = arith.truncf %96 : vector<8x32xf32> to vector<8x32xbf16>
    %c0_43 = arith.constant 0 : index
    %c0_44 = arith.constant 0 : index
    %98 = vector.load %arg16[%c0_43, %c0_44] : memref<32x32xbf16, #tpu.memory_space<vmem>>, vector<32x32xbf16>
    %cst_45 = arith.constant dense<0.000000e+00> : vector<8x32xf32>
    %99 = tpu.matmul %97, %98, %cst_45 {dimension_numbers = #tpu.dot_dimension_numbers<[1], [0], [0], [1], [0, 0, 1, 1], [], []>} : vector<8x32xbf16>, vector<32x32xbf16>, vector<8x32xf32> -> vector<8x32xf32>
    %c0_46 = arith.constant 0 : index
    %c0_47 = arith.constant 0 : index
    %100 = vector.load %arg17[%c0_46, %c0_47] : memref<1x32xf32, #tpu.memory_space<vmem>>, vector<1x32xf32>
    %101 = vector.broadcast %100 : vector<1x32xf32> to vector<8x32xf32>
    %102 = arith.addf %99, %101 : vector<8x32xf32>
    %103 = arith.addf %102, %27 : vector<8x32xf32>
    %c0_48 = arith.constant 0 : index
    %c0_49 = arith.constant 0 : index
    %104 = vector.load %arg18[%c0_48, %c0_49] : memref<1x32xf32, #tpu.memory_space<vmem>>, vector<1x32xf32>
    %c0_50 = arith.constant 0 : index
    %c0_51 = arith.constant 0 : index
    %105 = vector.load %arg19[%c0_50, %c0_51] : memref<1x32xf32, #tpu.memory_space<vmem>>, vector<1x32xf32>
    %cst_52 = arith.constant dense<0.000000e+00> : vector<8xf32>
    %106 = vector.multi_reduction <add>, %103, %cst_52 [1] : vector<8x32xf32> to vector<8xf32>
    %107 = vector.shape_cast %106 : vector<8xf32> to vector<8x1xf32>
    %cst_53 = arith.constant 3.200000e+01 : f32
    %108 = vector.broadcast %cst_53 : f32 to vector<8x1xf32>
    %109 = arith.divf %107, %108 : vector<8x1xf32>
    %110 = vector.broadcast %109 : vector<8x1xf32> to vector<8x32xf32>
    %111 = arith.subf %103, %110 : vector<8x32xf32>
    %112 = arith.mulf %111, %111 : vector<8x32xf32>
    %cst_54 = arith.constant dense<0.000000e+00> : vector<8xf32>
    %113 = vector.multi_reduction <add>, %112, %cst_54 [1] : vector<8x32xf32> to vector<8xf32>
    %114 = vector.shape_cast %113 : vector<8xf32> to vector<8x1xf32>
    %cst_55 = arith.constant 3.200000e+01 : f32
    %115 = vector.broadcast %cst_55 : f32 to vector<8x1xf32>
    %116 = arith.divf %114, %115 : vector<8x1xf32>
    %117 = vector.broadcast %109 : vector<8x1xf32> to vector<8x32xf32>
    %118 = arith.subf %103, %117 : vector<8x32xf32>
    %cst_56 = arith.constant 9.99999997E-7 : f32
    %119 = vector.broadcast %cst_56 : f32 to vector<8x1xf32>
    %120 = arith.addf %116, %119 : vector<8x1xf32>
    %121 = math.rsqrt %120 : vector<8x1xf32>
    %122 = vector.broadcast %121 : vector<8x1xf32> to vector<8x32xf32>
    %123 = arith.mulf %118, %122 : vector<8x32xf32>
    %124 = vector.broadcast %104 : vector<1x32xf32> to vector<8x32xf32>
    %125 = arith.mulf %123, %124 : vector<8x32xf32>
    %126 = vector.broadcast %105 : vector<1x32xf32> to vector<8x32xf32>
    %127 = arith.addf %125, %126 : vector<8x32xf32>
    %128 = arith.truncf %127 : vector<8x32xf32> to vector<8x32xbf16>
    %c0_57 = arith.constant 0 : index
    %c0_58 = arith.constant 0 : index
    %129 = vector.load %arg20[%c0_57, %c0_58] : memref<32x128xbf16, #tpu.memory_space<vmem>>, vector<32x128xbf16>
    %cst_59 = arith.constant dense<0.000000e+00> : vector<8x128xf32>
    %130 = tpu.matmul %128, %129, %cst_59 {dimension_numbers = #tpu.dot_dimension_numbers<[1], [0], [0], [1], [0, 0, 1, 1], [], []>} : vector<8x32xbf16>, vector<32x128xbf16>, vector<8x128xf32> -> vector<8x128xf32>
    %c0_60 = arith.constant 0 : index
    %c0_61 = arith.constant 0 : index
    %131 = vector.load %arg21[%c0_60, %c0_61] : memref<1x128xf32, #tpu.memory_space<vmem>>, vector<1x128xf32>
    %132 = vector.broadcast %131 : vector<1x128xf32> to vector<8x128xf32>
    %133 = arith.addf %130, %132 : vector<8x128xf32>
    %cst_62 = arith.constant 5.000000e-01 : f32
    %134 = vector.broadcast %cst_62 : f32 to vector<8x128xf32>
    %135 = arith.mulf %134, %133 : vector<8x128xf32>
    %cst_63 = arith.constant 4.471500e-02 : f32
    %136 = vector.broadcast %cst_63 : f32 to vector<8x128xf32>
    %137 = arith.mulf %136, %133 : vector<8x128xf32>
    %138 = arith.mulf %137, %133 : vector<8x128xf32>
    %139 = arith.mulf %138, %133 : vector<8x128xf32>
    %140 = arith.addf %133, %139 : vector<8x128xf32>
    %cst_64 = arith.constant 0.797884583 : f32
    %141 = vector.broadcast %cst_64 : f32 to vector<8x128xf32>
    %142 = arith.mulf %141, %140 : vector<8x128xf32>
    %143 = math.tanh %142 : vector<8x128xf32>
    %cst_65 = arith.constant 1.000000e+00 : f32
    %144 = vector.broadcast %cst_65 : f32 to vector<8x128xf32>
    %145 = arith.addf %144, %143 : vector<8x128xf32>
    %146 = arith.mulf %135, %145 : vector<8x128xf32>
    %147 = arith.truncf %146 : vector<8x128xf32> to vector<8x128xbf16>
    %c0_66 = arith.constant 0 : index
    %c0_67 = arith.constant 0 : index
    %148 = vector.load %arg22[%c0_66, %c0_67] : memref<128x32xbf16, #tpu.memory_space<vmem>>, vector<128x32xbf16>
    %cst_68 = arith.constant dense<0.000000e+00> : vector<8x32xf32>
    %149 = tpu.matmul %147, %148, %cst_68 {dimension_numbers = #tpu.dot_dimension_numbers<[1], [0], [0], [1], [0, 0, 1, 1], [], []>} : vector<8x128xbf16>, vector<128x32xbf16>, vector<8x32xf32> -> vector<8x32xf32>
    %c0_69 = arith.constant 0 : index
    %c0_70 = arith.constant 0 : index
    %150 = vector.load %arg23[%c0_69, %c0_70] : memref<1x32xf32, #tpu.memory_space<vmem>>, vector<1x32xf32>
    %151 = vector.broadcast %150 : vector<1x32xf32> to vector<8x32xf32>
    %152 = arith.addf %149, %151 : vector<8x32xf32>
    %153 = arith.addf %152, %103 : vector<8x32xf32>
    %154 = arith.truncf %153 : vector<8x32xf32> to vector<8x32xbf16>
    %c0_71 = arith.constant 0 : index
    %c0_72 = arith.constant 0 : index
    %155 = vector.load %arg2[%c0_71, %c0_72] : memref<32x64xbf16, #tpu.memory_space<vmem>>, vector<32x64xbf16>
    %cst_73 = arith.constant dense<0.000000e+00> : vector<8x64xf32>
    %156 = tpu.matmul %154, %155, %cst_73 {dimension_numbers = #tpu.dot_dimension_numbers<[1], [0], [0], [1], [0, 0, 1, 1], [], []>} : vector<8x32xbf16>, vector<32x64xbf16>, vector<8x64xf32> -> vector<8x64xf32>
    %c0_74 = arith.constant 0 : index
    %c0_75 = arith.constant 0 : index
    %157 = vector.load %arg3[%c0_74, %c0_75] : memref<32x64xbf16, #tpu.memory_space<vmem>>, vector<32x64xbf16>
    %cst_76 = arith.constant dense<0.000000e+00> : vector<8x64xf32>
    %158 = tpu.matmul %154, %157, %cst_76 {dimension_numbers = #tpu.dot_dimension_numbers<[1], [0], [0], [1], [0, 0, 1, 1], [], []>} : vector<8x32xbf16>, vector<32x64xbf16>, vector<8x64xf32> -> vector<8x64xf32>
    %159 = arith.addf %156, %158 : vector<8x64xf32>
    %160 = vector.extract_strided_slice %159 {offsets = [0, 0], sizes = [8, 32], strides = [1, 1]} : vector<8x64xf32> to vector<8x32xf32>
    %161 = arith.truncf %160 : vector<8x32xf32> to vector<8x32xbf16>
    %162 = vector.extract_strided_slice %159 {offsets = [0, 32], sizes = [8, 32], strides = [1, 1]} : vector<8x64xf32> to vector<8x32xf32>
    %163 = arith.truncf %162 : vector<8x32xf32> to vector<8x32xbf16>
    %c0_77 = arith.constant 0 : index
    %c0_78 = arith.constant 0 : index
    %164 = vector.load %arg8[%c0_77, %c0_78] : memref<8x8xbf16, #tpu.memory_space<vmem>>, vector<8x8xbf16>
    %c0_79 = arith.constant 0 : index
    %c0_80 = arith.constant 0 : index
    %165 = vector.load %arg9[%c0_79, %c0_80] : memref<8x8xbf16, #tpu.memory_space<vmem>>, vector<8x8xbf16>
    %c0_81 = arith.constant 0 : index
    %c0_82 = arith.constant 0 : index
    %166 = vector.load %arg10[%c0_81, %c0_82] : memref<8x8xbf16, #tpu.memory_space<vmem>>, vector<8x8xbf16>
    %c0_83 = arith.constant 0 : index
    %c0_84 = arith.constant 0 : index
    %167 = vector.load %arg11[%c0_83, %c0_84] : memref<8x8xbf16, #tpu.memory_space<vmem>>, vector<8x8xbf16>
    %cst_85 = arith.constant dense<0.000000e+00> : vector<8x32xf32>
    %168 = tpu.matmul %164, %161, %cst_85 {dimension_numbers = #tpu.dot_dimension_numbers<[1], [0], [0], [1], [0, 0, 1, 1], [], []>} : vector<8x8xbf16>, vector<8x32xbf16>, vector<8x32xf32> -> vector<8x32xf32>
    %cst_86 = arith.constant dense<0.000000e+00> : vector<8x32xf32>
    %169 = tpu.matmul %165, %161, %cst_86 {dimension_numbers = #tpu.dot_dimension_numbers<[1], [0], [0], [1], [0, 0, 1, 1], [], []>} : vector<8x8xbf16>, vector<8x32xbf16>, vector<8x32xf32> -> vector<8x32xf32>
    %170 = arith.addf %168, %169 : vector<8x32xf32>
    %cst_87 = arith.constant dense<0.000000e+00> : vector<8x32xf32>
    %171 = tpu.matmul %166, %163, %cst_87 {dimension_numbers = #tpu.dot_dimension_numbers<[1], [0], [0], [1], [0, 0, 1, 1], [], []>} : vector<8x8xbf16>, vector<8x32xbf16>, vector<8x32xf32> -> vector<8x32xf32>
    %172 = arith.subf %170, %171 : vector<8x32xf32>
    %cst_88 = arith.constant dense<0.000000e+00> : vector<8x32xf32>
    %173 = tpu.matmul %167, %163, %cst_88 {dimension_numbers = #tpu.dot_dimension_numbers<[1], [0], [0], [1], [0, 0, 1, 1], [], []>} : vector<8x8xbf16>, vector<8x32xbf16>, vector<8x32xf32> -> vector<8x32xf32>
    %174 = arith.subf %172, %173 : vector<8x32xf32>
    %c0_89 = arith.constant 0 : index
    %c0_90 = arith.constant 0 : index
    %c0_91 = arith.constant 0 : index
    %175 = vector.load %arg24[%c0_89, %c0_90, %c0_91] : memref<1x8x32xf32, #tpu.memory_space<vmem>>, vector<1x8x32xf32>
    %176 = vector.shape_cast %175 : vector<1x8x32xf32> to vector<8x32xf32>
    %177 = vector.shape_cast %174 : vector<8x32xf32> to vector<1x8x32xf32>
    tpu.vector_store %arg24[%c0_89, %c0_90, %c0_91], %177 {strides = array<i32>} : memref<1x8x32xf32, #tpu.memory_space<vmem>>, vector<1x8x32xf32>,
    return
  }
  func.func @transform_0(%arg0: i32) -> (i32, i32, i32) {
    %c0_i32 = arith.constant 0 : i32
    %c0_i32_0 = arith.constant 0 : i32
    %c0_i32_1 = arith.constant 0 : i32
    return %arg0, %c0_i32, %c0_i32_0 : i32, i32, i32
  }
  func.func @transform_1(%arg0: i32) -> (i32, i32) {
    %c0_i32 = arith.constant 0 : i32
    %c0_i32_0 = arith.constant 0 : i32
    %c0_i32_1 = arith.constant 0 : i32
    return %c0_i32, %c0_i32_0 : i32, i32
  }
  func.func @transform_2(%arg0: i32) -> (i32, i32) {
    %c0_i32 = arith.constant 0 : i32
    %c0_i32_0 = arith.constant 0 : i32
    %c0_i32_1 = arith.constant 0 : i32
    return %c0_i32, %c0_i32_0 : i32, i32
  }
  func.func @transform_3(%arg0: i32) -> (i32, i32) {
    %c0_i32 = arith.constant 0 : i32
    %c0_i32_0 = arith.constant 0 : i32
    %c0_i32_1 = arith.constant 0 : i32
    return %c0_i32, %c0_i32_0 : i32, i32
  }
  func.func @transform_4(%arg0: i32) -> (i32, i32) {
    %c0_i32 = arith.constant 0 : i32
    %c0_i32_0 = arith.constant 0 : i32
    %c0_i32_1 = arith.constant 0 : i32
    return %c0_i32, %c0_i32_0 : i32, i32
  }
  func.func @transform_5(%arg0: i32) -> (i32, i32) {
    %c0_i32 = arith.constant 0 : i32
    %c0_i32_0 = arith.constant 0 : i32
    %c0_i32_1 = arith.constant 0 : i32
    return %c0_i32, %c0_i32_0 : i32, i32
  }
  func.func @transform_6(%arg0: i32) -> (i32, i32) {
    %c0_i32 = arith.constant 0 : i32
    %c0_i32_0 = arith.constant 0 : i32
    %c0_i32_1 = arith.constant 0 : i32
    return %c0_i32, %c0_i32_0 : i32, i32
  }
  func.func @transform_7(%arg0: i32) -> (i32, i32) {
    %c0_i32 = arith.constant 0 : i32
    %c0_i32_0 = arith.constant 0 : i32
    %c0_i32_1 = arith.constant 0 : i32
    return %c0_i32, %c0_i32_0 : i32, i32
  }
  func.func @transform_8(%arg0: i32) -> (i32, i32) {
    %c0_i32 = arith.constant 0 : i32
    %c0_i32_0 = arith.constant 0 : i32
    %c0_i32_1 = arith.constant 0 : i32
    return %c0_i32, %c0_i32_0 : i32, i32
  }
  func.func @transform_9(%arg0: i32) -> (i32, i32) {
    %c0_i32 = arith.constant 0 : i32
    %c0_i32_0 = arith.constant 0 : i32
    %c0_i32_1 = arith.constant 0 : i32
    return %c0_i32, %c0_i32_0 : i32, i32
  }
  func.func @transform_10(%arg0: i32) -> (i32, i32) {
    %c0_i32 = arith.constant 0 : i32
    %c0_i32_0 = arith.constant 0 : i32
    %c0_i32_1 = arith.constant 0 : i32
    return %c0_i32, %c0_i32_0 : i32, i32
  }
  func.func @transform_11(%arg0: i32) -> (i32, i32) {
    %c0_i32 = arith.constant 0 : i32
    %c0_i32_0 = arith.constant 0 : i32
    %c0_i32_1 = arith.constant 0 : i32
    return %c0_i32, %c0_i32_0 : i32, i32
  }
  func.func @transform_12(%arg0: i32) -> (i32, i32) {
    %c0_i32 = arith.constant 0 : i32
    %c0_i32_0 = arith.constant 0 : i32
    %c0_i32_1 = arith.constant 0 : i32
    return %c0_i32, %c0_i32_0 : i32, i32
  }
  func.func @transform_13(%arg0: i32) -> (i32, i32) {
    %c0_i32 = arith.constant 0 : i32
    %c0_i32_0 = arith.constant 0 : i32
    %c0_i32_1 = arith.constant 0 : i32
    return %c0_i32, %c0_i32_0 : i32, i32
  }
  func.func @transform_14(%arg0: i32) -> (i32, i32) {
    %c0_i32 = arith.constant 0 : i32
    %c0_i32_0 = arith.constant 0 : i32
    %c0_i32_1 = arith.constant 0 : i32
    return %c0_i32, %c0_i32_0 : i32, i32
  }
  func.func @transform_15(%arg0: i32) -> (i32, i32) {
    %c0_i32 = arith.constant 0 : i32
    %c0_i32_0 = arith.constant 0 : i32
    %c0_i32_1 = arith.constant 0 : i32
    return %c0_i32, %c0_i32_0 : i32, i32
  }
  func.func @transform_16(%arg0: i32) -> (i32, i32) {
    %c0_i32 = arith.constant 0 : i32
    %c0_i32_0 = arith.constant 0 : i32
    %c0_i32_1 = arith.constant 0 : i32
    return %c0_i32, %c0_i32_0 : i32, i32
  }
  func.func @transform_17(%arg0: i32) -> (i32, i32) {
    %c0_i32 = arith.constant 0 : i32
    %c0_i32_0 = arith.constant 0 : i32
    %c0_i32_1 = arith.constant 0 : i32
    return %c0_i32, %c0_i32_0 : i32, i32
  }
  func.func @transform_18(%arg0: i32) -> (i32, i32) {
    %c0_i32 = arith.constant 0 : i32
    %c0_i32_0 = arith.constant 0 : i32
    %c0_i32_1 = arith.constant 0 : i32
    return %c0_i32, %c0_i32_0 : i32, i32
  }
  func.func @transform_19(%arg0: i32) -> (i32, i32) {
    %c0_i32 = arith.constant 0 : i32
    %c0_i32_0 = arith.constant 0 : i32
    %c0_i32_1 = arith.constant 0 : i32
    return %c0_i32, %c0_i32_0 : i32, i32
  }
  func.func @transform_20(%arg0: i32) -> (i32, i32) {
    %c0_i32 = arith.constant 0 : i32
    %c0_i32_0 = arith.constant 0 : i32
    %c0_i32_1 = arith.constant 0 : i32
    return %c0_i32, %c0_i32_0 : i32, i32
  }
  func.func @transform_21(%arg0: i32) -> (i32, i32) {
    %c0_i32 = arith.constant 0 : i32
    %c0_i32_0 = arith.constant 0 : i32
    %c0_i32_1 = arith.constant 0 : i32
    return %c0_i32, %c0_i32_0 : i32, i32
  }
  func.func @transform_22(%arg0: i32) -> (i32, i32) {
    %c0_i32 = arith.constant 0 : i32
    %c0_i32_0 = arith.constant 0 : i32
    %c0_i32_1 = arith.constant 0 : i32
    return %c0_i32, %c0_i32_0 : i32, i32
  }
  func.func @transform_23(%arg0: i32) -> (i32, i32, i32) {
    %c0_i32 = arith.constant 0 : i32
    %c0_i32_0 = arith.constant 0 : i32
    %c0_i32_1 = arith.constant 0 : i32
    return %arg0, %c0_i32, %c0_i32_0 : i32, i32, i32
  }
}

</mosaic_0001>

<llo_original>
// kernel: tpu_custom_call.1
$region0: #{tpu_custom_call.1}
  #allocation0 [shape = 'u32[]', space=smem, size = 0x4, offset = 0x4, fixed_abs, tag = 'smem constant byte address 0x4 - core index']
  #allocation1 [shape = 'u32[144,128]{1,0:T(1,128)}', space=vmem, size = 0x12000, scoped, tag = 'internal scratch']
  #allocation2 [shape = 'f32[1,8,32]{2,1,0:T(8,128)}', space=vmem, size = 0x1000, scoped, tag = 'scratch operand']
  %s0 = inlined_call_operand.vmem [shape: f32[2,8,32], index: 0, kind: input, shape index: {}]
  %s1 = inlined_call_operand.vmem [shape: bf16[32,64], index: 1, kind: input, shape index: {}]
  %s2 = inlined_call_operand.vmem [shape: bf16[32,64], index: 2, kind: input, shape index: {}]
  %s3 = inlined_call_operand.hbm [shape: bf16[8,8], index: 3, kind: input, shape index: {}]
  %s4 = inlined_call_operand.hbm [shape: bf16[8,8], index: 4, kind: input, shape index: {}]
  %s5 = inlined_call_operand.hbm [shape: bf16[8,8], index: 5, kind: input, shape index: {}]
  %s6 = inlined_call_operand.hbm [shape: bf16[8,8], index: 6, kind: input, shape index: {}]
  %s7 = inlined_call_operand.hbm [shape: bf16[8,8], index: 7, kind: input, shape index: {}]
  %s8 = inlined_call_operand.hbm [shape: bf16[8,8], index: 8, kind: input, shape index: {}]
  %s9 = inlined_call_operand.hbm [shape: bf16[8,8], index: 9, kind: input, shape index: {}]
  %s10 = inlined_call_operand.vmem [shape: bf16[8,8], index: 10, kind: input, shape index: {}]
  %s11 = inlined_call_operand.vmem [shape: f32[1,32], index: 11, kind: input, shape index: {}]
  %s12 = inlined_call_operand.vmem [shape: f32[1,32], index: 12, kind: input, shape index: {}]
  %s13 = inlined_call_operand.vmem [shape: bf16[32,96], index: 13, kind: input, shape index: {}]
  %s14 = inlined_call_operand.vmem [shape: f32[1,96], index: 14, kind: input, shape index: {}]
  %s15 = inlined_call_operand.vmem [shape: bf16[32,32], index: 15, kind: input, shape index: {}]
  %s16 = inlined_call_operand.vmem [shape: f32[1,32], index: 16, kind: input, shape index: {}]
  %s17 = inlined_call_operand.vmem [shape: f32[1,32], index: 17, kind: input, shape index: {}]
  %s18 = inlined_call_operand.vmem [shape: f32[1,32], index: 18, kind: input, shape index: {}]
  %s19 = inlined_call_operand.vmem [shape: bf16[32,128], index: 19, kind: input, shape index: {}]
  %s20 = inlined_call_operand.vmem [shape: f32[1,128], index: 20, kind: input, shape index: {}]
  %s21 = inlined_call_operand.vmem [shape: bf16[128,32], index: 21, kind: input, shape index: {}]
  %s22 = inlined_call_operand.vmem [shape: f32[1,32], index: 22, kind: input, shape index: {}]
  %s23 = inlined_call_operand.hbm [shape: f32[2,8,32], index: 23, kind: output, shape index: {}]
  %s24 = sld [smem:[#allocation0]]
  $region153: #{tpu_custom_call.1} parent=0
    _
  %s26 = ssub.s32 1, %s24
  %s27 = scalar_select 0, %s26, %s24
  $region1: #{tpu_custom_call.1} parent=0
    #allocation3 [shape = 'u8[2048]{0}', space=vmem, size = 0x800, scoped, tag = 'input window, operand 3, single buffered']
    #allocation4 [shape = 's32[2]{0}', space=sflag, size = 0x8, scoped, tag = 'scoped memory for tpu_custom_call.1']
    #allocation5 [shape = 's32[2]{0}', space=sflag, size = 0x8, scoped, tag = 'scoped memory for tpu_custom_call.1']
    #allocation6 [shape = 'u8[2048]{0}', space=vmem, size = 0x800, scoped, tag = 'input window, operand 4, single buffered']
    #allocation7 [shape = 's32[1]{0}', space=sflag, size = 0x4, scoped, tag = 'scoped memory for tpu_custom_call.1']
    #allocation8 [shape = 'u8[2048]{0}', space=vmem, size = 0x800, scoped, tag = 'input window, operand 5, single buffered']
    #allocation9 [shape = 'u8[2048]{0}', space=vmem, size = 0x800, scoped, tag = 'input window, operand 6, single buffered']
    #allocation10 [shape = 's32[1]{0}', space=sflag, size = 0x4, scoped, tag = 'scoped memory for tpu_custom_call.1']
    #allocation11 [shape = 'u8[2048]{0}', space=vmem, size = 0x800, scoped, tag = 'input window, operand 7, single buffered']
    #allocation12 [shape = 'u8[2048]{0}', space=vmem, size = 0x800, scoped, tag = 'input window, operand 8, single buffered']
    #allocation13 [shape = 's32[1]{0}', space=sflag, size = 0x4, scoped, tag = 'scoped memory for tpu_custom_call.1']
    #allocation14 [shape = 'u8[2048]{0}', space=vmem, size = 0x800, scoped, tag = 'input window, operand 9, single buffered']
    #allocation15 [shape = 'u8[8192]{0}', space=vmem, size = 0x2000, scoped, tag = 'output window, operand 0']
    %28 = vsyncpa [#allocation4], 0
    %29 = vsyncpa [#allocation7], 0
    %30 = vsyncpa [#allocation10], 0
    %31 = vsyncpa [#allocation13], 0
    %32 = vsyncpa [#allocation5], 0
    %s33 = scalar_lea.sflag [#allocation5], 1
    %34 = vsyncpa %s33, 0
    loop: start=0, step=1, limit=4
    $region2: #{tpu_custom_call.1} parent=1 // loop_pre_header
      _
    $region3: #{tpu_custom_call.1} parent=1 // loop_header
      %s36 = sphi 0, %s40
      %p37 = scmp.ge.s32.totalorder %s36, 4
      %s46 = sphi 0, %s48
      %s49 = sphi 0, %s46
      %s50 = sphi 0, %s49
      %s66 = sphi 0, %s50
      %s70 = sphi 0, %s70
      %s72 = sphi 0, %s70
      %s73 = sphi 0, %s72
      %s87 = sphi 0, %s73
      %s91 = sphi 0, %s91
      %s93 = sphi 0, %s91
      %s94 = sphi 0, %s93
      %s108 = sphi 0, %s94
      %s112 = sphi 0, %s112
      %s114 = sphi 0, %s112
      %s115 = sphi 0, %s114
      %s129 = sphi 0, %s115
      %s133 = sphi 0, %s133
      %s135 = sphi 0, %s133
      %s136 = sphi 0, %s135
      %s150 = sphi 0, %s136
      %s154 = sphi 0, %s154
      %s156 = sphi 0, %s154
      %s157 = sphi 0, %s156
      %s171 = sphi 0, %s157
      %s175 = sphi 0, %s175
      %s177 = sphi 0, %s175
      %s178 = sphi 0, %s177
      %s192 = sphi 0, %s178
      %s196 = sphi 0, %s196
      %s198 = sphi 0, %s196
      %s199 = sphi 0, %s198
      %s213 = sphi 0, %s199
      %s217 = sphi 0, %s217
      %s219 = sphi 0, %s217
      %s220 = sphi 0, %s219
      %s234 = sphi 0, %s220
      %s238 = sphi 0, %s238
      %s240 = sphi 0, %s238
      %s241 = sphi 0, %s240
      %s255 = sphi 0, %s241
      %s259 = sphi 0, %s259
      %s261 = sphi 0, %s259
      %s262 = sphi 0, %s261
      %s276 = sphi 0, %s262
      %s280 = sphi 0, %s280
      %s282 = sphi 0, %s280
      %s283 = sphi 0, %s282
      %s297 = sphi 0, %s283
      %s301 = sphi 0, %s301
      %s303 = sphi 0, %s301
      %s304 = sphi 0, %s303
      %s318 = sphi 0, %s304
      %s322 = sphi 0, %s322
      %s324 = sphi 0, %s322
      %s325 = sphi 0, %s324
      %s339 = sphi 0, %s325
      %s343 = sphi 0, %s343
      %s345 = sphi 0, %s343
      %s346 = sphi 0, %s345
      %s360 = sphi 0, %s346
      %s364 = sphi 0, %s364
      %s366 = sphi 0, %s364
      %s367 = sphi 0, %s366
      %s381 = sphi 0, %s367
      %s385 = sphi 0, %s385
      %s387 = sphi 0, %s385
      %s388 = sphi 0, %s387
      %s402 = sphi 0, %s388
      %s406 = sphi 0, %s406
      %s408 = sphi 0, %s406
      %s409 = sphi 0, %s408
      %s423 = sphi 0, %s409
      %s427 = sphi 0, %s427
      %s429 = sphi 0, %s427
      %s430 = sphi 0, %s429
      %s444 = sphi 0, %s430
      %s448 = sphi 0, %s448
      %s450 = sphi 0, %s448
      %s451 = sphi 0, %s450
      %s465 = sphi 0, %s451
      %s469 = sphi 0, %s469
      %s471 = sphi 0, %s469
      %s472 = sphi 0, %s471
      %s486 = sphi 0, %s472
      %s490 = sphi 0, %s490
      %s492 = sphi 0, %s490
      %s493 = sphi 0, %s492
      %s507 = sphi 0, %s493
      %s511 = sphi 0, %s511
      %s513 = sphi 0, %s511
      %s514 = sphi 0, %s513
      %s528 = sphi 0, %s514
      %s534 = sphi 0, %s536
      %s537 = sphi 0, %s534
      %s538 = sphi 0, %s537
      %s554 = sphi 0, %s538
    $region4: #{tpu_custom_call.1} parent=1 // loop_header_branch
      %39 = sbr.rel (%p37) target = $region8
    $region5: #{tpu_custom_call.1} parent=1 // loop_body
      %s41 = ssub.s32 %s36, 1
      %s42 = ssub.s32 %s36, 2
      %s43 = sadd.s32 %s36, 1
      %s44 = ssub.s32 %s36, %s43
      %p45 = scmp.eq.s32.totalorder %s44, 0
      %s47 = sadd.s32 %s46, 1
      %s48 = scalar_select %p45, %s46, %s47
      %p51 = pneg %p45
      %p52 = scmp.eq.s32.totalorder %s36, 1
      %p53 = por %p51, %p52
      %p54 = scmp.ne.s32.totalorder %s46, %s49
      %p55 = scmp.eq.s32.totalorder %s36, 0
      %p56 = por %p54, %p55
      %p57 = scmp.ne.s32.totalorder %s46, %s49
      %p58 = scmp.eq.s32.totalorder %s41, 1
      %p59 = por %p57, %p58
      %p60 = scmp.ne.s32.totalorder %s49, %s50
      %p61 = scmp.eq.s32.totalorder %s41, 0
      %p62 = por %p60, %p61
      %p63 = scmp.ne.s32.totalorder %s49, %s50
      %p64 = scmp.eq.s32.totalorder %s42, 1
      %p65 = por %p63, %p64
      %p67 = scmp.ne.s32.totalorder %s50, %s66
      %p68 = scmp.eq.s32.totalorder %s42, 0
      %p69 = por %p67, %p68
      %s71 = sadd.s32 %s70, 1
      %p74 = scmp.eq.s32.totalorder %s36, 1
      %p75 = scmp.ne.s32.totalorder %s70, %s72
      %p76 = scmp.eq.s32.totalorder %s36, 0
      %p77 = por %p75, %p76
      %p78 = scmp.ne.s32.totalorder %s70, %s72
      %p79 = scmp.eq.s32.totalorder %s41, 1
      %p80 = por %p78, %p79
      %p81 = scmp.ne.s32.totalorder %s72, %s73
      %p82 = scmp.eq.s32.totalorder %s41, 0
      %p83 = por %p81, %p82
      %p84 = scmp.ne.s32.totalorder %s72, %s73
      %p85 = scmp.eq.s32.totalorder %s42, 1
      %p86 = por %p84, %p85
      %p88 = scmp.ne.s32.totalorder %s73, %s87
      %p89 = scmp.eq.s32.totalorder %s42, 0
      %p90 = por %p88, %p89
      %s92 = sadd.s32 %s91, 1
      %p95 = scmp.eq.s32.totalorder %s36, 1
      %p96 = scmp.ne.s32.totalorder %s91, %s93
      %p97 = scmp.eq.s32.totalorder %s36, 0
      %p98 = por %p96, %p97
      %p99 = scmp.ne.s32.totalorder %s91, %s93
      %p100 = scmp.eq.s32.totalorder %s41, 1
      %p101 = por %p99, %p100
      %p102 = scmp.ne.s32.totalorder %s93, %s94
      %p103 = scmp.eq.s32.totalorder %s41, 0
      %p104 = por %p102, %p103
      %p105 = scmp.ne.s32.totalorder %s93, %s94
      %p106 = scmp.eq.s32.totalorder %s42, 1
      %p107 = por %p105, %p106
      %p109 = scmp.ne.s32.totalorder %s94, %s108
      %p110 = scmp.eq.s32.totalorder %s42, 0
      %p111 = por %p109, %p110
      %s113 = sadd.s32 %s112, 1
      %p116 = scmp.eq.s32.totalorder %s36, 1
      %p117 = scmp.ne.s32.totalorder %s112, %s114
      %p118 = scmp.eq.s32.totalorder %s36, 0
      %p119 = por %p117, %p118
      %p120 = scmp.ne.s32.totalorder %s112, %s114
      %p121 = scmp.eq.s32.totalorder %s41, 1
      %p122 = por %p120, %p121
      %p123 = scmp.ne.s32.totalorder %s114, %s115
      %p124 = scmp.eq.s32.totalorder %s41, 0
      %p125 = por %p123, %p124
      %p126 = scmp.ne.s32.totalorder %s114, %s115
      %p127 = scmp.eq.s32.totalorder %s42, 1
      %p128 = por %p126, %p127
      %p130 = scmp.ne.s32.totalorder %s115, %s129
      %p131 = scmp.eq.s32.totalorder %s42, 0
      %p132 = por %p130, %p131
      %s134 = sadd.s32 %s133, 1
      %p137 = scmp.eq.s32.totalorder %s36, 1
      %p138 = scmp.ne.s32.totalorder %s133, %s135
      %p139 = scmp.eq.s32.totalorder %s36, 0
      %p140 = por %p138, %p139
      %p141 = scmp.ne.s32.totalorder %s133, %s135
      %p142 = scmp.eq.s32.totalorder %s41, 1
      %p143 = por %p141, %p142
      %p144 = scmp.ne.s32.totalorder %s135, %s136
      %p145 = scmp.eq.s32.totalorder %s41, 0
      %p146 = por %p144, %p145
      %p147 = scmp.ne.s32.totalorder %s135, %s136
      %p148 = scmp.eq.s32.totalorder %s42, 1
      %p149 = por %p147, %p148
      %p151 = scmp.ne.s32.totalorder %s136, %s150
      %p152 = scmp.eq.s32.totalorder %s42, 0
      %p153 = por %p151, %p152
      %s155 = sadd.s32 %s154, 1
      %p158 = scmp.eq.s32.totalorder %s36, 1
      %p159 = scmp.ne.s32.totalorder %s154, %s156
      %p160 = scmp.eq.s32.totalorder %s36, 0
      %p161 = por %p159, %p160
      %p162 = scmp.ne.s32.totalorder %s154, %s156
      %p163 = scmp.eq.s32.totalorder %s41, 1
      %p164 = por %p162, %p163
      %p165 = scmp.ne.s32.totalorder %s156, %s157
      %p166 = scmp.eq.s32.totalorder %s41, 0
      %p167 = por %p165, %p166
      %p168 = scmp.ne.s32.totalorder %s156, %s157
      %p169 = scmp.eq.s32.totalorder %s42, 1
      %p170 = por %p168, %p169
      %p172 = scmp.ne.s32.totalorder %s157, %s171
      %p173 = scmp.eq.s32.totalorder %s42, 0
      %p174 = por %p172, %p173
      %s176 = sadd.s32 %s175, 1
      %p179 = scmp.eq.s32.totalorder %s36, 1
      %p180 = scmp.ne.s32.totalorder %s175, %s177
      %p181 = scmp.eq.s32.totalorder %s36, 0
      %p182 = por %p180, %p181
      %p183 = scmp.ne.s32.totalorder %s175, %s177
      %p184 = scmp.eq.s32.totalorder %s41, 1
      %p185 = por %p183, %p184
      %p186 = scmp.ne.s32.totalorder %s177, %s178
      %p187 = scmp.eq.s32.totalorder %s41, 0
      %p188 = por %p186, %p187
      %p189 = scmp.ne.s32.totalorder %s177, %s178
      %p190 = scmp.eq.s32.totalorder %s42, 1
      %p191 = por %p189, %p190
      %p193 = scmp.ne.s32.totalorder %s178, %s192
      %p194 = scmp.eq.s32.totalorder %s42, 0
      %p195 = por %p193, %p194
      %s197 = sadd.s32 %s196, 1
      %p200 = scmp.eq.s32.totalorder %s36, 1
      %p201 = scmp.ne.s32.totalorder %s196, %s198
      %p202 = scmp.eq.s32.totalorder %s36, 0
      %p203 = por %p201, %p202
      %p204 = scmp.ne.s32.totalorder %s196, %s198
      %p205 = scmp.eq.s32.totalorder %s41, 1
      %p206 = por %p204, %p205
      %p207 = scmp.ne.s32.totalorder %s198, %s199
      %p208 = scmp.eq.s32.totalorder %s41, 0
      %p209 = por %p207, %p208
      %p210 = scmp.ne.s32.totalorder %s198, %s199
      %p211 = scmp.eq.s32.totalorder %s42, 1
      %p212 = por %p210, %p211
      %p214 = scmp.ne.s32.totalorder %s199, %s213
      %p215 = scmp.eq.s32.totalorder %s42, 0
      %p216 = por %p214, %p215
      %s218 = sadd.s32 %s217, 1
      %p221 = scmp.eq.s32.totalorder %s36, 1
      %p222 = scmp.ne.s32.totalorder %s217, %s219
      %p223 = scmp.eq.s32.totalorder %s36, 0
      %p224 = por %p222, %p223
      %p225 = scmp.ne.s32.totalorder %s217, %s219
      %p226 = scmp.eq.s32.totalorder %s41, 1
      %p227 = por %p225, %p226
      %p228 = scmp.ne.s32.totalorder %s219, %s220
      %p229 = scmp.eq.s32.totalorder %s41, 0
      %p230 = por %p228, %p229
      %p231 = scmp.ne.s32.totalorder %s219, %s220
      %p232 = scmp.eq.s32.totalorder %s42, 1
      %p233 = por %p231, %p232
      %p235 = scmp.ne.s32.totalorder %s220, %s234
      %p236 = scmp.eq.s32.totalorder %s42, 0
      %p237 = por %p235, %p236
      %s239 = sadd.s32 %s238, 1
      %p242 = scmp.eq.s32.totalorder %s36, 1
      %p243 = scmp.ne.s32.totalorder %s238, %s240
      %p244 = scmp.eq.s32.totalorder %s36, 0
      %p245 = por %p243, %p244
      %p246 = scmp.ne.s32.totalorder %s238, %s240
      %p247 = scmp.eq.s32.totalorder %s41, 1
      %p248 = por %p246, %p247
      %p249 = scmp.ne.s32.totalorder %s240, %s241
      %p250 = scmp.eq.s32.totalorder %s41, 0
      %p251 = por %p249, %p250
      %p252 = scmp.ne.s32.totalorder %s240, %s241
      %p253 = scmp.eq.s32.totalorder %s42, 1
      %p254 = por %p252, %p253
      %p256 = scmp.ne.s32.totalorder %s241, %s255
      %p257 = scmp.eq.s32.totalorder %s42, 0
      %p258 = por %p256, %p257
      %s260 = sadd.s32 %s259, 1
      %p263 = scmp.eq.s32.totalorder %s36, 1
      %p264 = scmp.ne.s32.totalorder %s259, %s261
      %p265 = scmp.eq.s32.totalorder %s36, 0
      %p266 = por %p264, %p265
      %p267 = scmp.ne.s32.totalorder %s259, %s261
      %p268 = scmp.eq.s32.totalorder %s41, 1
      %p269 = por %p267, %p268
      %p270 = scmp.ne.s32.totalorder %s261, %s262
      %p271 = scmp.eq.s32.totalorder %s41, 0
      %p272 = por %p270, %p271
      %p273 = scmp.ne.s32.totalorder %s261, %s262
      %p274 = scmp.eq.s32.totalorder %s42, 1
      %p275 = por %p273, %p274
      %p277 = scmp.ne.s32.totalorder %s262, %s276
      %p278 = scmp.eq.s32.totalorder %s42, 0
      %p279 = por %p277, %p278
      %s281 = sadd.s32 %s280, 1
      %p284 = scmp.eq.s32.totalorder %s36, 1
      %p285 = scmp.ne.s32.totalorder %s280, %s282
      %p286 = scmp.eq.s32.totalorder %s36, 0
      %p287 = por %p285, %p286
      %p288 = scmp.ne.s32.totalorder %s280, %s282
      %p289 = scmp.eq.s32.totalorder %s41, 1
      %p290 = por %p288, %p289
      %p291 = scmp.ne.s32.totalorder %s282, %s283
      %p292 = scmp.eq.s32.totalorder %s41, 0
      %p293 = por %p291, %p292
      %p294 = scmp.ne.s32.totalorder %s282, %s283
      %p295 = scmp.eq.s32.totalorder %s42, 1
      %p296 = por %p294, %p295
      %p298 = scmp.ne.s32.totalorder %s283, %s297
      %p299 = scmp.eq.s32.totalorder %s42, 0
      %p300 = por %p298, %p299
      %s302 = sadd.s32 %s301, 1
      %p305 = scmp.eq.s32.totalorder %s36, 1
      %p306 = scmp.ne.s32.totalorder %s301, %s303
      %p307 = scmp.eq.s32.totalorder %s36, 0
      %p308 = por %p306, %p307
      %p309 = scmp.ne.s32.totalorder %s301, %s303
      %p310 = scmp.eq.s32.totalorder %s41, 1
      %p311 = por %p309, %p310
      %p312 = scmp.ne.s32.totalorder %s303, %s304
      %p313 = scmp.eq.s32.totalorder %s41, 0
      %p314 = por %p312, %p313
      %p315 = scmp.ne.s32.totalorder %s303, %s304
      %p316 = scmp.eq.s32.totalorder %s42, 1
      %p317 = por %p315, %p316
      %p319 = scmp.ne.s32.totalorder %s304, %s318
      %p320 = scmp.eq.s32.totalorder %s42, 0
      %p321 = por %p319, %p320
      %s323 = sadd.s32 %s322, 1
      %p326 = scmp.eq.s32.totalorder %s36, 1
      %p327 = scmp.ne.s32.totalorder %s322, %s324
      %p328 = scmp.eq.s32.totalorder %s36, 0
      %p329 = por %p327, %p328
      %p330 = scmp.ne.s32.totalorder %s322, %s324
      %p331 = scmp.eq.s32.totalorder %s41, 1
      %p332 = por %p330, %p331
      %p333 = scmp.ne.s32.totalorder %s324, %s325
      %p334 = scmp.eq.s32.totalorder %s41, 0
      %p335 = por %p333, %p334
      %p336 = scmp.ne.s32.totalorder %s324, %s325
      %p337 = scmp.eq.s32.totalorder %s42, 1
      %p338 = por %p336, %p337
      %p340 = scmp.ne.s32.totalorder %s325, %s339
      %p341 = scmp.eq.s32.totalorder %s42, 0
      %p342 = por %p340, %p341
      %s344 = sadd.s32 %s343, 1
      %p347 = scmp.eq.s32.totalorder %s36, 1
      %p348 = scmp.ne.s32.totalorder %s343, %s345
      %p349 = scmp.eq.s32.totalorder %s36, 0
      %p350 = por %p348, %p349
      %p351 = scmp.ne.s32.totalorder %s343, %s345
      %p352 = scmp.eq.s32.totalorder %s41, 1
      %p353 = por %p351, %p352
      %p354 = scmp.ne.s32.totalorder %s345, %s346
      %p355 = scmp.eq.s32.totalorder %s41, 0
      %p356 = por %p354, %p355
      %p357 = scmp.ne.s32.totalorder %s345, %s346
      %p358 = scmp.eq.s32.totalorder %s42, 1
      %p359 = por %p357, %p358
      %p361 = scmp.ne.s32.totalorder %s346, %s360
      %p362 = scmp.eq.s32.totalorder %s42, 0
      %p363 = por %p361, %p362
      %s365 = sadd.s32 %s364, 1
      %p368 = scmp.eq.s32.totalorder %s36, 1
      %p369 = scmp.ne.s32.totalorder %s364, %s366
      %p370 = scmp.eq.s32.totalorder %s36, 0
      %p371 = por %p369, %p370
      %p372 = scmp.ne.s32.totalorder %s364, %s366
      %p373 = scmp.eq.s32.totalorder %s41, 1
      %p374 = por %p372, %p373
      %p375 = scmp.ne.s32.totalorder %s366, %s367
      %p376 = scmp.eq.s32.totalorder %s41, 0
      %p377 = por %p375, %p376
      %p378 = scmp.ne.s32.totalorder %s366, %s367
      %p379 = scmp.eq.s32.totalorder %s42, 1
      %p380 = por %p378, %p379
      %p382 = scmp.ne.s32.totalorder %s367, %s381
      %p383 = scmp.eq.s32.totalorder %s42, 0
      %p384 = por %p382, %p383
      %s386 = sadd.s32 %s385, 1
      %p389 = scmp.eq.s32.totalorder %s36, 1
      %p390 = scmp.ne.s32.totalorder %s385, %s387
      %p391 = scmp.eq.s32.totalorder %s36, 0
      %p392 = por %p390, %p391
      %p393 = scmp.ne.s32.totalorder %s385, %s387
      %p394 = scmp.eq.s32.totalorder %s41, 1
      %p395 = por %p393, %p394
      %p396 = scmp.ne.s32.totalorder %s387, %s388
      %p397 = scmp.eq.s32.totalorder %s41, 0
      %p398 = por %p396, %p397
      %p399 = scmp.ne.s32.totalorder %s387, %s388
      %p400 = scmp.eq.s32.totalorder %s42, 1
      %p401 = por %p399, %p400
      %p403 = scmp.ne.s32.totalorder %s388, %s402
      %p404 = scmp.eq.s32.totalorder %s42, 0
      %p405 = por %p403, %p404
      %s407 = sadd.s32 %s406, 1
      %p410 = scmp.eq.s32.totalorder %s36, 1
      %p411 = scmp.ne.s32.totalorder %s406, %s408
      %p412 = scmp.eq.s32.totalorder %s36, 0
      %p413 = por %p411, %p412
      %p414 = scmp.ne.s32.totalorder %s406, %s408
      %p415 = scmp.eq.s32.totalorder %s41, 1
      %p416 = por %p414, %p415
      %p417 = scmp.ne.s32.totalorder %s408, %s409
      %p418 = scmp.eq.s32.totalorder %s41, 0
      %p419 = por %p417, %p418
      %p420 = scmp.ne.s32.totalorder %s408, %s409
      %p421 = scmp.eq.s32.totalorder %s42, 1
      %p422 = por %p420, %p421
      %p424 = scmp.ne.s32.totalorder %s409, %s423
      %p425 = scmp.eq.s32.totalorder %s42, 0
      %p426 = por %p424, %p425
      %s428 = sadd.s32 %s427, 1
      %p431 = scmp.eq.s32.totalorder %s36, 1
      %p432 = scmp.ne.s32.totalorder %s427, %s429
      %p433 = scmp.eq.s32.totalorder %s36, 0
      %p434 = por %p432, %p433
      %p435 = scmp.ne.s32.totalorder %s427, %s429
      %p436 = scmp.eq.s32.totalorder %s41, 1
      %p437 = por %p435, %p436
      %p438 = scmp.ne.s32.totalorder %s429, %s430
      %p439 = scmp.eq.s32.totalorder %s41, 0
      %p440 = por %p438, %p439
      %p441 = scmp.ne.s32.totalorder %s429, %s430
      %p442 = scmp.eq.s32.totalorder %s42, 1
      %p443 = por %p441, %p442
      %p445 = scmp.ne.s32.totalorder %s430, %s444
      %p446 = scmp.eq.s32.totalorder %s42, 0
      %p447 = por %p445, %p446
      %s449 = sadd.s32 %s448, 1
      %p452 = scmp.eq.s32.totalorder %s36, 1
      %p453 = scmp.ne.s32.totalorder %s448, %s450
      %p454 = scmp.eq.s32.totalorder %s36, 0
      %p455 = por %p453, %p454
      %p456 = scmp.ne.s32.totalorder %s448, %s450
      %p457 = scmp.eq.s32.totalorder %s41, 1
      %p458 = por %p456, %p457
      %p459 = scmp.ne.s32.totalorder %s450, %s451
      %p460 = scmp.eq.s32.totalorder %s41, 0
      %p461 = por %p459, %p460
      %p462 = scmp.ne.s32.totalorder %s450, %s451
      %p463 = scmp.eq.s32.totalorder %s42, 1
      %p464 = por %p462, %p463
      %p466 = scmp.ne.s32.totalorder %s451, %s465
      %p467 = scmp.eq.s32.totalorder %s42, 0
      %p468 = por %p466, %p467
      %s470 = sadd.s32 %s469, 1
      %p473 = scmp.eq.s32.totalorder %s36, 1
      %p474 = scmp.ne.s32.totalorder %s469, %s471
      %p475 = scmp.eq.s32.totalorder %s36, 0
      %p476 = por %p474, %p475
      %p477 = scmp.ne.s32.totalorder %s469, %s471
      %p478 = scmp.eq.s32.totalorder %s41, 1
      %p479 = por %p477, %p478
      %p480 = scmp.ne.s32.totalorder %s471, %s472
      %p481 = scmp.eq.s32.totalorder %s41, 0
      %p482 = por %p480, %p481
      %p483 = scmp.ne.s32.totalorder %s471, %s472
      %p484 = scmp.eq.s32.totalorder %s42, 1
      %p485 = por %p483, %p484
      %p487 = scmp.ne.s32.totalorder %s472, %s486
      %p488 = scmp.eq.s32.totalorder %s42, 0
      %p489 = por %p487, %p488
      %s491 = sadd.s32 %s490, 1
      %p494 = scmp.eq.s32.totalorder %s36, 1
      %p495 = scmp.ne.s32.totalorder %s490, %s492
      %p496 = scmp.eq.s32.totalorder %s36, 0
      %p497 = por %p495, %p496
      %p498 = scmp.ne.s32.totalorder %s490, %s492
      %p499 = scmp.eq.s32.totalorder %s41, 1
      %p500 = por %p498, %p499
      %p501 = scmp.ne.s32.totalorder %s492, %s493
      %p502 = scmp.eq.s32.totalorder %s41, 0
      %p503 = por %p501, %p502
      %p504 = scmp.ne.s32.totalorder %s492, %s493
      %p505 = scmp.eq.s32.totalorder %s42, 1
      %p506 = por %p504, %p505
      %p508 = scmp.ne.s32.totalorder %s493, %s507
      %p509 = scmp.eq.s32.totalorder %s42, 0
      %p510 = por %p508, %p509
      %s512 = sadd.s32 %s511, 1
      %p515 = scmp.eq.s32.totalorder %s36, 1
      %p516 = scmp.ne.s32.totalorder %s511, %s513
      %p517 = scmp.eq.s32.totalorder %s36, 0
      %p518 = por %p516, %p517
      %p519 = scmp.ne.s32.totalorder %s511, %s513
      %p520 = scmp.eq.s32.totalorder %s41, 1
      %p521 = por %p519, %p520
      %p522 = scmp.ne.s32.totalorder %s513, %s514
      %p523 = scmp.eq.s32.totalorder %s41, 0
      %p524 = por %p522, %p523
      %p525 = scmp.ne.s32.totalorder %s513, %s514
      %p526 = scmp.eq.s32.totalorder %s42, 1
      %p527 = por %p525, %p526
      %p529 = scmp.ne.s32.totalorder %s514, %s528
      %p530 = scmp.eq.s32.totalorder %s42, 0
      %p531 = por %p529, %p530
      %s532 = ssub.s32 %s36, %s43
      %p533 = scmp.eq.s32.totalorder %s532, 0
      %s535 = sadd.s32 %s534, 1
      %s536 = scalar_select %p533, %s534, %s535
      %p539 = pneg %p533
      %p540 = scmp.eq.s32.totalorder %s36, 1
      %p541 = por %p539, %p540
      %p542 = scmp.ne.s32.totalorder %s534, %s537
      %p543 = scmp.eq.s32.totalorder %s36, 0
      %p544 = por %p542, %p543
      %p545 = scmp.ne.s32.totalorder %s534, %s537
      %p546 = scmp.eq.s32.totalorder %s41, 1
      %p547 = por %p545, %p546
      %p548 = scmp.ne.s32.totalorder %s537, %s538
      %p549 = scmp.eq.s32.totalorder %s41, 0
      %p550 = por %p548, %p549
      %p551 = scmp.ne.s32.totalorder %s537, %s538
      %p552 = scmp.eq.s32.totalorder %s42, 1
      %p553 = por %p551, %p552
      %p555 = scmp.ne.s32.totalorder %s538, %s554
      %p556 = scmp.eq.s32.totalorder %s42, 0
      %p557 = por %p555, %p556
      %p558 = scmp.le.s32.totalorder 1, %s36
      %p559 = scmp.lt.s32.totalorder %s36, 3
      %p560 = pnand %p558, %p559
      %p561 = pneg %p560
      // Predicated region
      $region9: #{tpu_custom_call.1} parent=5 // pred_check
        _
      $region10: #{tpu_custom_call.1} parent=5 // pred_check_branch
        %563 = sbr.rel (%p560) target = $region12
      $region11: #{tpu_custom_call.1} parent=5 // pred_region
        %s564 = ssub.s32 %s36, 1
        // Predicated region
        $region13: #{tpu_custom_call.1} parent=11 // pred_check
          %p565 = pneg %p83
        $region14: #{tpu_custom_call.1} parent=11 // pred_check_branch
          %567 = sbr.rel (%p565) target = $region16
        $region15: #{tpu_custom_call.1} parent=11 // pred_region
          _
        $region16: #{tpu_custom_call.1} parent=11 // pred_fallthru
          _
        // Predicated region
        $region17: #{tpu_custom_call.1} parent=11 // pred_check
          %p568 = pneg %p104
        $region18: #{tpu_custom_call.1} parent=11 // pred_check_branch
          %570 = sbr.rel (%p568) target = $region20
        $region19: #{tpu_custom_call.1} parent=11 // pred_region
          _
        $region20: #{tpu_custom_call.1} parent=11 // pred_fallthru
          _
        // Predicated region
        $region21: #{tpu_custom_call.1} parent=11 // pred_check
          %p571 = pneg %p125
        $region22: #{tpu_custom_call.1} parent=11 // pred_check_branch
          %573 = sbr.rel (%p571) target = $region24
        $region23: #{tpu_custom_call.1} parent=11 // pred_region
          %s575 = ssub.s32 64, 64
          %576 = vsyncadd [#allocation4], %s575
          %s578 = sshll.u32 [#allocation3], 4
          %s579 = int_to_ptr.vmem [resolvable:$true] %s578
          %581 = dma.hbm_to_vmem [thread:$0]  %s3, 64, %s579, [#allocation4]
        $region24: #{tpu_custom_call.1} parent=11 // pred_fallthru
          _
        // Predicated region
        $region25: #{tpu_custom_call.1} parent=11 // pred_check
          %p582 = pneg %p146
        $region26: #{tpu_custom_call.1} parent=11 // pred_check_branch
          %584 = sbr.rel (%p582) target = $region28
        $region27: #{tpu_custom_call.1} parent=11 // pred_region
          %s586 = ssub.s32 64, 64
          %587 = vsyncadd [#allocation7], %s586
          %s589 = sshll.u32 [#allocation6], 4
          %s590 = int_to_ptr.vmem [resolvable:$true] %s589
          %592 = dma.hbm_to_vmem [thread:$0]  %s4, 64, %s590, [#allocation7]
        $region28: #{tpu_custom_call.1} parent=11 // pred_fallthru
          _
        // Predicated region
        $region29: #{tpu_custom_call.1} parent=11 // pred_check
          %p593 = pneg %p167
        $region30: #{tpu_custom_call.1} parent=11 // pred_check_branch
          %595 = sbr.rel (%p593) target = $region32
        $region31: #{tpu_custom_call.1} parent=11 // pred_region
          %s597 = ssub.s32 64, 64
          %598 = vsyncadd [#allocation7], %s597
          %s600 = sshll.u32 [#allocation8], 4
          %s601 = int_to_ptr.vmem [resolvable:$true] %s600
          %603 = dma.hbm_to_vmem [thread:$0]  %s5, 64, %s601, [#allocation7]
        $region32: #{tpu_custom_call.1} parent=11 // pred_fallthru
          _
        // Predicated region
        $region33: #{tpu_custom_call.1} parent=11 // pred_check
          %p604 = pneg %p188
        $region34: #{tpu_custom_call.1} parent=11 // pred_check_branch
          %606 = sbr.rel (%p604) target = $region36
        $region35: #{tpu_custom_call.1} parent=11 // pred_region
          %s608 = ssub.s32 64, 64
          %609 = vsyncadd [#allocation10], %s608
          %s611 = sshll.u32 [#allocation9], 4
          %s612 = int_to_ptr.vmem [resolvable:$true] %s611
          %614 = dma.hbm_to_vmem [thread:$0]  %s6, 64, %s612, [#allocation10]
        $region36: #{tpu_custom_call.1} parent=11 // pred_fallthru
          _
        // Predicated region
        $region37: #{tpu_custom_call.1} parent=11 // pred_check
          %p615 = pneg %p209
        $region38: #{tpu_custom_call.1} parent=11 // pred_check_branch
          %617 = sbr.rel (%p615) target = $region40
        $region39: #{tpu_custom_call.1} parent=11 // pred_region
          %s619 = ssub.s32 64, 64
          %620 = vsyncadd [#allocation10], %s619
          %s622 = sshll.u32 [#allocation11], 4
          %s623 = int_to_ptr.vmem [resolvable:$true] %s622
          %625 = dma.hbm_to_vmem [thread:$0]  %s7, 64, %s623, [#allocation10]
        $region40: #{tpu_custom_call.1} parent=11 // pred_fallthru
          _
        // Predicated region
        $region41: #{tpu_custom_call.1} parent=11 // pred_check
          %p626 = pneg %p230
        $region42: #{tpu_custom_call.1} parent=11 // pred_check_branch
          %628 = sbr.rel (%p626) target = $region44
        $region43: #{tpu_custom_call.1} parent=11 // pred_region
          %s630 = ssub.s32 64, 64
          %631 = vsyncadd [#allocation13], %s630
          %s633 = sshll.u32 [#allocation12], 4
          %s634 = int_to_ptr.vmem [resolvable:$true] %s633
          %636 = dma.hbm_to_vmem [thread:$0]  %s8, 64, %s634, [#allocation13]
        $region44: #{tpu_custom_call.1} parent=11 // pred_fallthru
          _
        // Predicated region
        $region45: #{tpu_custom_call.1} parent=11 // pred_check
          %p637 = pneg %p251
        $region46: #{tpu_custom_call.1} parent=11 // pred_check_branch
          %639 = sbr.rel (%p637) target = $region48
        $region47: #{tpu_custom_call.1} parent=11 // pred_region
          %s641 = ssub.s32 64, 64
          %642 = vsyncadd [#allocation13], %s641
          %s644 = sshll.u32 [#allocation14], 4
          %s645 = int_to_ptr.vmem [resolvable:$true] %s644
          %647 = dma.hbm_to_vmem [thread:$0]  %s9, 64, %s645, [#allocation13]
        $region48: #{tpu_custom_call.1} parent=11 // pred_fallthru
          _
        // Predicated region
        $region49: #{tpu_custom_call.1} parent=11 // pred_check
          %p648 = pneg %p272
        $region50: #{tpu_custom_call.1} parent=11 // pred_check_branch
          %650 = sbr.rel (%p648) target = $region52
        $region51: #{tpu_custom_call.1} parent=11 // pred_region
          _
        $region52: #{tpu_custom_call.1} parent=11 // pred_fallthru
          _
        // Predicated region
        $region53: #{tpu_custom_call.1} parent=11 // pred_check
          %p651 = pneg %p293
        $region54: #{tpu_custom_call.1} parent=11 // pred_check_branch
          %653 = sbr.rel (%p651) target = $region56
        $region55: #{tpu_custom_call.1} parent=11 // pred_region
          _
        $region56: #{tpu_custom_call.1} parent=11 // pred_fallthru
          _
        // Predicated region
        $region57: #{tpu_custom_call.1} parent=11 // pred_check
          %p654 = pneg %p314
        $region58: #{tpu_custom_call.1} parent=11 // pred_check_branch
          %656 = sbr.rel (%p654) target = $region60
        $region59: #{tpu_custom_call.1} parent=11 // pred_region
          _
        $region60: #{tpu_custom_call.1} parent=11 // pred_fallthru
          _
        // Predicated region
        $region61: #{tpu_custom_call.1} parent=11 // pred_check
          %p657 = pneg %p335
        $region62: #{tpu_custom_call.1} parent=11 // pred_check_branch
          %659 = sbr.rel (%p657) target = $region64
        $region63: #{tpu_custom_call.1} parent=11 // pred_region
          _
        $region64: #{tpu_custom_call.1} parent=11 // pred_fallthru
          _
        // Predicated region
        $region65: #{tpu_custom_call.1} parent=11 // pred_check
          %p660 = pneg %p356
        $region66: #{tpu_custom_call.1} parent=11 // pred_check_branch
          %662 = sbr.rel (%p660) target = $region68
        $region67: #{tpu_custom_call.1} parent=11 // pred_region
          _
        $region68: #{tpu_custom_call.1} parent=11 // pred_fallthru
          _
        // Predicated region
        $region69: #{tpu_custom_call.1} parent=11 // pred_check
          %p663 = pneg %p377
        $region70: #{tpu_custom_call.1} parent=11 // pred_check_branch
          %665 = sbr.rel (%p663) target = $region72
        $region71: #{tpu_custom_call.1} parent=11 // pred_region
          _
        $region72: #{tpu_custom_call.1} parent=11 // pred_fallthru
          _
        // Predicated region
        $region73: #{tpu_custom_call.1} parent=11 // pred_check
          %p666 = pneg %p398
        $region74: #{tpu_custom_call.1} parent=11 // pred_check_branch
          %668 = sbr.rel (%p666) target = $region76
        $region75: #{tpu_custom_call.1} parent=11 // pred_region
          _
        $region76: #{tpu_custom_call.1} parent=11 // pred_fallthru
          _
        // Predicated region
        $region77: #{tpu_custom_call.1} parent=11 // pred_check
          %p669 = pneg %p419
        $region78: #{tpu_custom_call.1} parent=11 // pred_check_branch
          %671 = sbr.rel (%p669) target = $region80
        $region79: #{tpu_custom_call.1} parent=11 // pred_region
          _
        $region80: #{tpu_custom_call.1} parent=11 // pred_fallthru
          _
        // Predicated region
        $region81: #{tpu_custom_call.1} parent=11 // pred_check
          %p672 = pneg %p440
        $region82: #{tpu_custom_call.1} parent=11 // pred_check_branch
          %674 = sbr.rel (%p672) target = $region84
        $region83: #{tpu_custom_call.1} parent=11 // pred_region
          _
        $region84: #{tpu_custom_call.1} parent=11 // pred_fallthru
          _
        // Predicated region
        $region85: #{tpu_custom_call.1} parent=11 // pred_check
          %p675 = pneg %p461
        $region86: #{tpu_custom_call.1} parent=11 // pred_check_branch
          %677 = sbr.rel (%p675) target = $region88
        $region87: #{tpu_custom_call.1} parent=11 // pred_region
          _
        $region88: #{tpu_custom_call.1} parent=11 // pred_fallthru
          _
        // Predicated region
        $region89: #{tpu_custom_call.1} parent=11 // pred_check
          %p678 = pneg %p482
        $region90: #{tpu_custom_call.1} parent=11 // pred_check_branch
          %680 = sbr.rel (%p678) target = $region92
        $region91: #{tpu_custom_call.1} parent=11 // pred_region
          _
        $region92: #{tpu_custom_call.1} parent=11 // pred_fallthru
          _
        // Predicated region
        $region93: #{tpu_custom_call.1} parent=11 // pred_check
          %p681 = pneg %p503
        $region94: #{tpu_custom_call.1} parent=11 // pred_check_branch
          %683 = sbr.rel (%p681) target = $region96
        $region95: #{tpu_custom_call.1} parent=11 // pred_region
          _
        $region96: #{tpu_custom_call.1} parent=11 // pred_fallthru
          _
        // Predicated region
        $region97: #{tpu_custom_call.1} parent=11 // pred_check
          %p684 = pneg %p524
        $region98: #{tpu_custom_call.1} parent=11 // pred_check_branch
          %686 = sbr.rel (%p684) target = $region100
        $region99: #{tpu_custom_call.1} parent=11 // pred_region
          _
        $region100: #{tpu_custom_call.1} parent=11 // pred_fallthru
          _
      $region12: #{tpu_custom_call.1} parent=5 // pred_fallthru
        _
      %p687 = scmp.lt.s32.totalorder %s36, 2
      // Predicated region
      $region101: #{tpu_custom_call.1} parent=5 // pred_check
        %p688 = pneg %p687
      $region102: #{tpu_custom_call.1} parent=5 // pred_check_branch
        %690 = sbr.rel (%p688) target = $region104
      $region103: #{tpu_custom_call.1} parent=5 // pred_region
        // Predicated region
        $region105: #{tpu_custom_call.1} parent=103 // pred_check
          %p691 = pneg %p56
        $region106: #{tpu_custom_call.1} parent=103 // pred_check_branch
          %693 = sbr.rel (%p691) target = $region108
        $region107: #{tpu_custom_call.1} parent=103 // pred_region
          %p694 = scmp.lt.s32.totalorder %s36, 1
          %s695 = scalar_select %p694, %s36, 1
          %s696 = smul.addr %s695, 8
          %s697 = scalar_lea.vmem %s0, %s696
        $region108: #{tpu_custom_call.1} parent=103 // pred_fallthru
          _
      $region104: #{tpu_custom_call.1} parent=5 // pred_fallthru
        _
      %p698 = scmp.le.s32.totalorder 1, %s36
      %p699 = scmp.lt.s32.totalorder %s36, 3
      %p700 = pnand %p698, %p699
      %p701 = pneg %p700
      // Predicated region
      $region109: #{tpu_custom_call.1} parent=5 // pred_check
        _
      $region110: #{tpu_custom_call.1} parent=5 // pred_check_branch
        %703 = sbr.rel (%p700) target = $region112
      $region111: #{tpu_custom_call.1} parent=5 // pred_region
        %s704 = ssub.s32 %s36, 1
        // Predicated region
        $region113: #{tpu_custom_call.1} parent=111 // pred_check
          %p705 = pneg %p125
        $region114: #{tpu_custom_call.1} parent=111 // pred_check_branch
          %707 = sbr.rel (%p705) target = $region116
        $region115: #{tpu_custom_call.1} parent=111 // pred_region
          %708 = dma.done [#allocation4], 64
        $region116: #{tpu_custom_call.1} parent=111 // pred_fallthru
          _
        // Predicated region
        $region117: #{tpu_custom_call.1} parent=111 // pred_check
          %p709 = pneg %p146
        $region118: #{tpu_custom_call.1} parent=111 // pred_check_branch
          %711 = sbr.rel (%p709) target = $region120
        $region119: #{tpu_custom_call.1} parent=111 // pred_region
          %712 = dma.done [#allocation7], 64
        $region120: #{tpu_custom_call.1} parent=111 // pred_fallthru
          _
        // Predicated region
        $region121: #{tpu_custom_call.1} parent=111 // pred_check
          %p713 = pneg %p167
        $region122: #{tpu_custom_call.1} parent=111 // pred_check_branch
          %715 = sbr.rel (%p713) target = $region124
        $region123: #{tpu_custom_call.1} parent=111 // pred_region
          %716 = dma.done [#allocation7], 64
        $region124: #{tpu_custom_call.1} parent=111 // pred_fallthru
          _
        // Predicated region
        $region125: #{tpu_custom_call.1} parent=111 // pred_check
          %p717 = pneg %p188
        $region126: #{tpu_custom_call.1} parent=111 // pred_check_branch
          %719 = sbr.rel (%p717) target = $region128
        $region127: #{tpu_custom_call.1} parent=111 // pred_region
          %720 = dma.done [#allocation10], 64
        $region128: #{tpu_custom_call.1} parent=111 // pred_fallthru
          _
        // Predicated region
        $region129: #{tpu_custom_call.1} parent=111 // pred_check
          %p721 = pneg %p209
        $region130: #{tpu_custom_call.1} parent=111 // pred_check_branch
          %723 = sbr.rel (%p721) target = $region132
        $region131: #{tpu_custom_call.1} parent=111 // pred_region
          %724 = dma.done [#allocation10], 64
        $region132: #{tpu_custom_call.1} parent=111 // pred_fallthru
          _
        // Predicated region
        $region133: #{tpu_custom_call.1} parent=111 // pred_check
          %p725 = pneg %p230
        $region134: #{tpu_custom_call.1} parent=111 // pred_check_branch
          %727 = sbr.rel (%p725) target = $region136
        $region135: #{tpu_custom_call.1} parent=111 // pred_region
          %728 = dma.done [#allocation13], 64
        $region136: #{tpu_custom_call.1} parent=111 // pred_fallthru
          _
        // Predicated region
        $region137: #{tpu_custom_call.1} parent=111 // pred_check
          %p729 = pneg %p251
        $region138: #{tpu_custom_call.1} parent=111 // pred_check_branch
          %731 = sbr.rel (%p729) target = $region140
        $region139: #{tpu_custom_call.1} parent=111 // pred_region
          %732 = dma.done [#allocation13], 64
        $region140: #{tpu_custom_call.1} parent=111 // pred_fallthru
          _
        %p733 = scmp.lt.s32.totalorder %s41, 1
        %s734 = scalar_select %p733, %s41, 1
        %s735 = smul.addr %s734, 8
        %s736 = scalar_lea.vmem %s0, %s735
        %p737 = pneg %p62
        %p738 = pneg %p59
        %p739 = pneg %p83
        %p740 = pneg %p80
        %p741 = pneg %p104
        %p742 = pneg %p101
        %p743 = pneg %p125
        %p744 = pneg %p122
        %p745 = pneg %p146
        %p746 = pneg %p143
        %p747 = pneg %p167
        %p748 = pneg %p164
        %p749 = pneg %p188
        %p750 = pneg %p185
        %p751 = pneg %p209
        %p752 = pneg %p206
        %p753 = pneg %p230
        %p754 = pneg %p227
        %p755 = pneg %p251
        %p756 = pneg %p248
        %p757 = pneg %p272
        %p758 = pneg %p269
        %p759 = pneg %p293
        %p760 = pneg %p290
        %p761 = pneg %p314
        %p762 = pneg %p311
        %p763 = pneg %p335
        %p764 = pneg %p332
        %p765 = pneg %p356
        %p766 = pneg %p353
        %p767 = pneg %p377
        %p768 = pneg %p374
        %p769 = pneg %p398
        %p770 = pneg %p395
        %p771 = pneg %p419
        %p772 = pneg %p416
        %p773 = pneg %p440
        %p774 = pneg %p437
        %p775 = pneg %p461
        %p776 = pneg %p458
        %p777 = pneg %p482
        %p778 = pneg %p479
        %p779 = pneg %p503
        %p780 = pneg %p500
        %p781 = pneg %p524
        %p782 = pneg %p521
        %p783 = pneg %p550
        %p784 = pneg %p547
        %s785 = sand.u32 %s537, 1
        %s786 = scalar_lea.sflag [#allocation5], %s785
        %s787 = sand.u32 %s537, 1
        %s788 = smul.addr %s787, 8
        %s789 = scalar_lea.vmem [#allocation15], %s788
        %p790 = scmp.lt.s32.totalorder %s41, 1
        %s791 = scalar_select %p790, %s41, 1
        %s792 = smul.addr %s791, 8
        %s793 = scalar_lea.vmem %s0, %s792
        %v795 = vld [vmem:[%s793] sm:$0xff]
        %v796 = vpack.c.bf16 %v795, %v795
        %v797 = vld [vmem:[%s1] sm:$0xf]
        %v798 = vld [vmem:[%s1 + $0x4] sm:$0xf]
        %v799 = vld [vmem:[%s1 + $0x8] sm:$0xf]
        %v800 = vld [vmem:[%s1 + $0xc] sm:$0xf]
        %v801 = vld [vmem:[%s2] sm:$0xf]
        %v802 = vld [vmem:[%s2 + $0x4] sm:$0xf]
        %v803 = vld [vmem:[%s2 + $0x8] sm:$0xf]
        %v804 = vld [vmem:[%s2 + $0xc] sm:$0xf]
        %v809 = vunpack.c.l.b16 %v801
        %v810 = vunpack.c.l.b16 %v802
        %v811 = vunpack.c.l.b16 %v803
        %v812 = vunpack.c.l.b16 %v804
        %v813 = vpack.c.b16 %v810, %v809
        %v814 = vpack.c.b16 %v812, %v811
        %vm817 = vcmask 261120
        %v819 = vsel %vm817, %v796, 0
        %821 = vmatprep.subr.bf16.mxu0 0
        %822 = vmatpush1.bf16.msra.mxu0 %v813
        %823 = vmatprep.subr.bf16.mxu0 0
        %824 = vmatpush1.bf16.msra.mxu0 %v814
        %825 = vmatprep.subr.bf16.mxu0 0
        %826 = vmatpush1.bf16.msra.mxu0 0
        %827 = vmatprep.subr.bf16.mxu0 0
        %828 = vmatpush1.bf16.msra.mxu0 0
        %829 = vmatprep.subr.bf16.mxu0 0
        %830 = vmatpush1.bf16.msra.mxu0 0
        %831 = vmatprep.subr.bf16.mxu0 0
        %832 = vmatpush1.bf16.msra.mxu0 0
        %833 = vmatprep.subr.bf16.mxu0 0
        %834 = vmatpush1.bf16.msra.mxu0 0
        %835 = vmatprep.subr.bf16.mxu0 0
        %836 = vmatpush1.bf16.msra.mxu0 0
        %837 = vmatprep.subr.bf16.mxu0 0
        %838 = vmatpush1.bf16.msra.mxu0 0
        %839 = vmatprep.subr.bf16.mxu0 0
        %840 = vmatpush1.bf16.msra.mxu0 0
        %841 = vmatprep.subr.bf16.mxu0 0
        %842 = vmatpush1.bf16.msra.mxu0 0
        %843 = vmatprep.subr.bf16.mxu0 0
        %844 = vmatpush1.bf16.msra.mxu0 0
        %845 = vmatprep.subr.bf16.mxu0 0
        %846 = vmatpush1.bf16.msra.mxu0 0
        %847 = vmatprep.subr.bf16.mxu0 0
        %848 = vmatpush1.bf16.msra.mxu0 0
        %849 = vmatprep.subr.bf16.mxu0 0
        %850 = vmatpush1.bf16.msra.mxu0 0
        %851 = vmatprep.subr.bf16.mxu0 0
        %852 = vmatpush1.bf16.msra.mxu0 0
        %853 = vmatprep.mubr.bf16.mxu0 0
        %854 = vmatmul.mubr.bf16.gmra.mrb[0].mxu0 %v819
        %v855 = vpop.f32.mrb[0].mxu0
        %v856 = vadd.f32 0.0, %v855
        %v857 = vpop.f32.mrb[0].mxu0
        %v858 = vpop.f32.mrb[0].mxu0
        %v859 = vpop.f32.mrb[0].mxu0
        %860 = vdwg.mxu0
        %v865 = vunpack.c.l.b16 %v797
        %v866 = vunpack.c.l.b16 %v798
        %v867 = vunpack.c.l.b16 %v799
        %v868 = vunpack.c.l.b16 %v800
        %v869 = vpack.c.b16 %v866, %v865
        %v870 = vpack.c.b16 %v868, %v867
        %873 = vmatprep.subr.bf16.mxu0 0
        %874 = vmatpush1.bf16.msra.mxu0 %v869
        %875 = vmatprep.subr.bf16.mxu0 0
        %876 = vmatpush1.bf16.msra.mxu0 %v870
        %877 = vmatprep.subr.bf16.mxu0 0
        %878 = vmatpush1.bf16.msra.mxu0 0
        %879 = vmatprep.subr.bf16.mxu0 0
        %880 = vmatpush1.bf16.msra.mxu0 0
        %881 = vmatprep.subr.bf16.mxu0 0
        %882 = vmatpush1.bf16.msra.mxu0 0
        %883 = vmatprep.subr.bf16.mxu0 0
        %884 = vmatpush1.bf16.msra.mxu0 0
        %885 = vmatprep.subr.bf16.mxu0 0
        %886 = vmatpush1.bf16.msra.mxu0 0
        %887 = vmatprep.subr.bf16.mxu0 0
        %888 = vmatpush1.bf16.msra.mxu0 0
        %889 = vmatprep.subr.bf16.mxu0 0
        %890 = vmatpush1.bf16.msra.mxu0 0
        %891 = vmatprep.subr.bf16.mxu0 0
        %892 = vmatpush1.bf16.msra.mxu0 0
        %893 = vmatprep.subr.bf16.mxu0 0
        %894 = vmatpush1.bf16.msra.mxu0 0
        %895 = vmatprep.subr.bf16.mxu0 0
        %896 = vmatpush1.bf16.msra.mxu0 0
        %897 = vmatprep.subr.bf16.mxu0 0
        %898 = vmatpush1.bf16.msra.mxu0 0
        %899 = vmatprep.subr.bf16.mxu0 0
        %900 = vmatpush1.bf16.msra.mxu0 0
        %901 = vmatprep.subr.bf16.mxu0 0
        %902 = vmatpush1.bf16.msra.mxu0 0
        %903 = vmatprep.subr.bf16.mxu0 0
        %904 = vmatpush1.bf16.msra.mxu0 0
        %905 = vmatprep.mubr.bf16.mxu0 0
        %906 = vmatmul.mubr.bf16.gmra.mrb[0].mxu0 %v819
        %v907 = vpop.f32.mrb[0].mxu0
        %v908 = vadd.f32 %v856, %v907
        %v909 = vpop.f32.mrb[0].mxu0
        %v910 = vpop.f32.mrb[0].mxu0
        %v911 = vpop.f32.mrb[0].mxu0
        %912 = vdwg.mxu0
        %v913 = vpack.c.bf16 %v908, %v908
        %v914 = vld [vmem:[#allocation3] sm:$0xf]
        %v915 = vld [vmem:[#allocation6] sm:$0xf]
        %v916 = vld [vmem:[#allocation8] sm:$0xf]
        %v917 = vld [vmem:[#allocation9] sm:$0xf]
        %vm918 = vcmask 64512
        %v920 = vsel %vm918, %v915, 0
        %vm922 = vcmask 1043456
        %v924 = vsel %vm922, %v913, 0
        %926 = vmatprep.subr.bf16.mxu0 0
        %927 = vmatpush1.bf16.msra.mxu0 %v924
        %928 = vmatprep.subr.bf16.mxu0 0
        %929 = vmatpush1.bf16.msra.mxu0 0
        %930 = vmatprep.subr.bf16.mxu0 0
        %931 = vmatpush1.bf16.msra.mxu0 0
        %932 = vmatprep.subr.bf16.mxu0 0
        %933 = vmatpush1.bf16.msra.mxu0 0
        %934 = vmatprep.subr.bf16.mxu0 0
        %935 = vmatpush1.bf16.msra.mxu0 0
        %936 = vmatprep.subr.bf16.mxu0 0
        %937 = vmatpush1.bf16.msra.mxu0 0
        %938 = vmatprep.subr.bf16.mxu0 0
        %939 = vmatpush1.bf16.msra.mxu0 0
        %940 = vmatprep.subr.bf16.mxu0 0
        %941 = vmatpush1.bf16.msra.mxu0 0
        %942 = vmatprep.subr.bf16.mxu0 0
        %943 = vmatpush1.bf16.msra.mxu0 0
        %944 = vmatprep.subr.bf16.mxu0 0
        %945 = vmatpush1.bf16.msra.mxu0 0
        %946 = vmatprep.subr.bf16.mxu0 0
        %947 = vmatpush1.bf16.msra.mxu0 0
        %948 = vmatprep.subr.bf16.mxu0 0
        %949 = vmatpush1.bf16.msra.mxu0 0
        %950 = vmatprep.subr.bf16.mxu0 0
        %951 = vmatpush1.bf16.msra.mxu0 0
        %952 = vmatprep.subr.bf16.mxu0 0
        %953 = vmatpush1.bf16.msra.mxu0 0
        %954 = vmatprep.subr.bf16.mxu0 0
        %955 = vmatpush1.bf16.msra.mxu0 0
        %956 = vmatprep.subr.bf16.mxu0 0
        %957 = vmatpush1.bf16.msra.mxu0 0
        %958 = vmatprep.mubr.bf16.mxu0 0
        %959 = vmatmul.mubr.bf16.gmra.mrb[0].mxu0 %v920
        %v960 = vpop.f32.mrb[0].mxu0
        %v961 = vadd.f32 0.0, %v960
        %v962 = vpop.f32.mrb[0].mxu0
        %v963 = vpop.f32.mrb[0].mxu0
        %v964 = vpop.f32.mrb[0].mxu0
        %965 = vdwg.mxu0
        %v967 = vsel %vm918, %v914, 0
        %969 = vmatprep.subr.bf16.mxu0 0
        %970 = vmatpush1.bf16.msra.mxu0 %v924
        %971 = vmatprep.subr.bf16.mxu0 0
        %972 = vmatpush1.bf16.msra.mxu0 0
        %973 = vmatprep.subr.bf16.mxu0 0
        %974 = vmatpush1.bf16.msra.mxu0 0
        %975 = vmatprep.subr.bf16.mxu0 0
        %976 = vmatpush1.bf16.msra.mxu0 0
        %977 = vmatprep.subr.bf16.mxu0 0
        %978 = vmatpush1.bf16.msra.mxu0 0
        %979 = vmatprep.subr.bf16.mxu0 0
        %980 = vmatpush1.bf16.msra.mxu0 0
        %981 = vmatprep.subr.bf16.mxu0 0
        %982 = vmatpush1.bf16.msra.mxu0 0
        %983 = vmatprep.subr.bf16.mxu0 0
        %984 = vmatpush1.bf16.msra.mxu0 0
        %985 = vmatprep.subr.bf16.mxu0 0
        %986 = vmatpush1.bf16.msra.mxu0 0
        %987 = vmatprep.subr.bf16.mxu0 0
        %988 = vmatpush1.bf16.msra.mxu0 0
        %989 = vmatprep.subr.bf16.mxu0 0
        %990 = vmatpush1.bf16.msra.mxu0 0
        %991 = vmatprep.subr.bf16.mxu0 0
        %992 = vmatpush1.bf16.msra.mxu0 0
        %993 = vmatprep.subr.bf16.mxu0 0
        %994 = vmatpush1.bf16.msra.mxu0 0
        %995 = vmatprep.subr.bf16.mxu0 0
        %996 = vmatpush1.bf16.msra.mxu0 0
        %997 = vmatprep.subr.bf16.mxu0 0
        %998 = vmatpush1.bf16.msra.mxu0 0
        %999 = vmatprep.subr.bf16.mxu0 0
        %1000 = vmatpush1.bf16.msra.mxu0 0
        %1001 = vmatprep.mubr.bf16.mxu0 0
        %1002 = vmatmul.mubr.bf16.gmra.mrb[0].mxu0 %v967
        %v1003 = vpop.f32.mrb[0].mxu0
        %v1004 = vadd.f32 %v961, %v1003
        %v1005 = vpop.f32.mrb[0].mxu0
        %v1006 = vpop.f32.mrb[0].mxu0
        %v1007 = vpop.f32.mrb[0].mxu0
        %1008 = vdwg.mxu0
        %1010 = vrot.lane.b32.xlu0 %v913, 96
        %v1011 = vpop.permute.xlu0 %1010
        %v1013 = vsel %vm918, %v916, 0
        %v1016 = vsel %vm922, %v1011, 0
        %1018 = vmatprep.subr.bf16.mxu0 0
        %1019 = vmatpush1.bf16.msra.mxu0 %v1016
        %1020 = vmatprep.subr.bf16.mxu0 0
        %1021 = vmatpush1.bf16.msra.mxu0 0
        %1022 = vmatprep.subr.bf16.mxu0 0
        %1023 = vmatpush1.bf16.msra.mxu0 0
        %1024 = vmatprep.subr.bf16.mxu0 0
        %1025 = vmatpush1.bf16.msra.mxu0 0
        %1026 = vmatprep.subr.bf16.mxu0 0
        %1027 = vmatpush1.bf16.msra.mxu0 0
        %1028 = vmatprep.subr.bf16.mxu0 0
        %1029 = vmatpush1.bf16.msra.mxu0 0
        %1030 = vmatprep.subr.bf16.mxu0 0
        %1031 = vmatpush1.bf16.msra.mxu0 0
        %1032 = vmatprep.subr.bf16.mxu0 0
        %1033 = vmatpush1.bf16.msra.mxu0 0
        %1034 = vmatprep.subr.bf16.mxu0 0
        %1035 = vmatpush1.bf16.msra.mxu0 0
        %1036 = vmatprep.subr.bf16.mxu0 0
        %1037 = vmatpush1.bf16.msra.mxu0 0
        %1038 = vmatprep.subr.bf16.mxu0 0
        %1039 = vmatpush1.bf16.msra.mxu0 0
        %1040 = vmatprep.subr.bf16.mxu0 0
        %1041 = vmatpush1.bf16.msra.mxu0 0
        %1042 = vmatprep.subr.bf16.mxu0 0
        %1043 = vmatpush1.bf16.msra.mxu0 0
        %1044 = vmatprep.subr.bf16.mxu0 0
        %1045 = vmatpush1.bf16.msra.mxu0 0
        %1046 = vmatprep.subr.bf16.mxu0 0
        %1047 = vmatpush1.bf16.msra.mxu0 0
        %1048 = vmatprep.subr.bf16.mxu0 0
        %1049 = vmatpush1.bf16.msra.mxu0 0
        %1050 = vmatprep.mubr.bf16.mxu0 0
        %1051 = vmatmul.mubr.bf16.gmra.mrb[0].mxu0 %v1013
        %v1052 = vpop.f32.mrb[0].mxu0
        %v1053 = vadd.f32 0.0, %v1052
        %v1054 = vpop.f32.mrb[0].mxu0
        %v1055 = vpop.f32.mrb[0].mxu0
        %v1056 = vpop.f32.mrb[0].mxu0
        %1057 = vdwg.mxu0
        %v1058 = vsub.f32 %v1004, %v1053
        %v1060 = vsel %vm918, %v917, 0
        %1062 = vmatprep.subr.bf16.mxu0 0
        %1063 = vmatpush1.bf16.msra.mxu0 %v1016
        %1064 = vmatprep.subr.bf16.mxu0 0
        %1065 = vmatpush1.bf16.msra.mxu0 0
        %1066 = vmatprep.subr.bf16.mxu0 0
        %1067 = vmatpush1.bf16.msra.mxu0 0
        %1068 = vmatprep.subr.bf16.mxu0 0
        %1069 = vmatpush1.bf16.msra.mxu0 0
        %1070 = vmatprep.subr.bf16.mxu0 0
        %1071 = vmatpush1.bf16.msra.mxu0 0
        %1072 = vmatprep.subr.bf16.mxu0 0
        %1073 = vmatpush1.bf16.msra.mxu0 0
        %1074 = vmatprep.subr.bf16.mxu0 0
        %1075 = vmatpush1.bf16.msra.mxu0 0
        %1076 = vmatprep.subr.bf16.mxu0 0
        %1077 = vmatpush1.bf16.msra.mxu0 0
        %1078 = vmatprep.subr.bf16.mxu0 0
        %1079 = vmatpush1.bf16.msra.mxu0 0
        %1080 = vmatprep.subr.bf16.mxu0 0
        %1081 = vmatpush1.bf16.msra.mxu0 0
        %1082 = vmatprep.subr.bf16.mxu0 0
        %1083 = vmatpush1.bf16.msra.mxu0 0
        %1084 = vmatprep.subr.bf16.mxu0 0
        %1085 = vmatpush1.bf16.msra.mxu0 0
        %1086 = vmatprep.subr.bf16.mxu0 0
        %1087 = vmatpush1.bf16.msra.mxu0 0
        %1088 = vmatprep.subr.bf16.mxu0 0
        %1089 = vmatpush1.bf16.msra.mxu0 0
        %1090 = vmatprep.subr.bf16.mxu0 0
        %1091 = vmatpush1.bf16.msra.mxu0 0
        %1092 = vmatprep.subr.bf16.mxu0 0
        %1093 = vmatpush1.bf16.msra.mxu0 0
        %1094 = vmatprep.mubr.bf16.mxu0 0
        %1095 = vmatmul.mubr.bf16.gmra.mrb[0].mxu0 %v1060
        %v1096 = vpop.f32.mrb[0].mxu0
        %v1097 = vadd.f32 0.0, %v1096
        %v1098 = vpop.f32.mrb[0].mxu0
        %v1099 = vpop.f32.mrb[0].mxu0
        %v1100 = vpop.f32.mrb[0].mxu0
        %1101 = vdwg.mxu0
        %v1102 = vsub.f32 %v1058, %v1097
        %1103 = vst.msk [vmem:[#allocation2] sm:$0xff] %vm817, %v1102
        %v1104 = vld [vmem:[#allocation2] sm:$0xff]
        %v1105 = vld [vmem:[%s11] sm:$0x1]
        %v1106 = vld [vmem:[%s12] sm:$0x1]
        %v1107 = vsel %vm817, %v1104, 0.0
        %1108 = vadd.xlane.f32.xlu0 %v1107
        %v1109 = vpop.xlane.xlu0 %1108
        %v1110 = vrcp.pop 32.0
        %v1111 = vmul.f32 %v1109, %v1110
        %v1112 = vsub.f32 %v1104, %v1111
        %v1113 = vmul.f32 %v1112, %v1112
        %v1114 = vsel %vm817, %v1113, 0.0
        %1115 = vadd.xlane.f32.xlu0 %v1114
        %v1116 = vpop.xlane.xlu0 %1115
        %v1117 = vmul.f32 %v1116, %v1110
        %v1118 = vadd.f32 %v1117, 1e-06
        %v1119 = vrsqrt.pop %v1118
        %v1120 = vmul.f32 %v1112, %v1119
        %v1122 = vlaneseq
        %v1123 = vshrl.u32 %v1122, 7
        %v1124 = vsub.s32 0, %v1123
        %v1125 = vrot.slane %v1105, %v1124
        %v1127 = vmul.f32 %v1120, %v1125
        %v1129 = vlaneseq
        %v1130 = vshrl.u32 %v1129, 7
        %v1131 = vsub.s32 0, %v1130
        %v1132 = vrot.slane %v1106, %v1131
        %v1134 = vadd.f32 %v1127, %v1132
        %v1135 = vpack.c.bf16 %v1134, %v1134
        %v1136 = vld [vmem:[%s13] sm:$0xf]
        %v1137 = vld [vmem:[%s13 + $0x4] sm:$0xf]
        %v1138 = vld [vmem:[%s13 + $0x8] sm:$0xf]
        %v1139 = vld [vmem:[%s13 + $0xc] sm:$0xf]
        %v1140 = vld [vmem:[%s14] sm:$0x1]
        %v1142 = vlaneseq
        %v1143 = vshrl.u32 %v1142, 7
        %v1144 = vsub.s32 0, %v1143
        %v1145 = vrot.slane %v1140, %v1144
        %v1151 = vunpack.c.l.b16 %v1136
        %v1152 = vunpack.c.l.b16 %v1137
        %v1153 = vunpack.c.l.b16 %v1138
        %v1154 = vunpack.c.l.b16 %v1139
        %v1155 = vpack.c.b16 %v1152, %v1151
        %v1156 = vpack.c.b16 %v1154, %v1153
        %v1160 = vsel %vm817, %v1135, 0
        %1162 = vmatprep.subr.bf16.mxu0 0
        %1163 = vmatpush1.bf16.msra.mxu0 %v1155
        %1164 = vmatprep.subr.bf16.mxu0 0
        %1165 = vmatpush1.bf16.msra.mxu0 %v1156
        %1166 = vmatprep.subr.bf16.mxu0 0
        %1167 = vmatpush1.bf16.msra.mxu0 0
        %1168 = vmatprep.subr.bf16.mxu0 0
        %1169 = vmatpush1.bf16.msra.mxu0 0
        %1170 = vmatprep.subr.bf16.mxu0 0
        %1171 = vmatpush1.bf16.msra.mxu0 0
        %1172 = vmatprep.subr.bf16.mxu0 0
        %1173 = vmatpush1.bf16.msra.mxu0 0
        %1174 = vmatprep.subr.bf16.mxu0 0
        %1175 = vmatpush1.bf16.msra.mxu0 0
        %1176 = vmatprep.subr.bf16.mxu0 0
        %1177 = vmatpush1.bf16.msra.mxu0 0
        %1178 = vmatprep.subr.bf16.mxu0 0
        %1179 = vmatpush1.bf16.msra.mxu0 0
        %1180 = vmatprep.subr.bf16.mxu0 0
        %1181 = vmatpush1.bf16.msra.mxu0 0
        %1182 = vmatprep.subr.bf16.mxu0 0
        %1183 = vmatpush1.bf16.msra.mxu0 0
        %1184 = vmatprep.subr.bf16.mxu0 0
        %1185 = vmatpush1.bf16.msra.mxu0 0
        %1186 = vmatprep.subr.bf16.mxu0 0
        %1187 = vmatpush1.bf16.msra.mxu0 0
        %1188 = vmatprep.subr.bf16.mxu0 0
        %1189 = vmatpush1.bf16.msra.mxu0 0
        %1190 = vmatprep.subr.bf16.mxu0 0
        %1191 = vmatpush1.bf16.msra.mxu0 0
        %1192 = vmatprep.subr.bf16.mxu0 0
        %1193 = vmatpush1.bf16.msra.mxu0 0
        %1194 = vmatprep.mubr.bf16.mxu0 0
        %1195 = vmatmul.mubr.bf16.gmra.mrb[0].mxu0 %v1160
        %v1196 = vpop.f32.mrb[0].mxu0
        %v1197 = vadd.f32 %v1145, %v1196
        %v1198 = vpop.f32.mrb[0].mxu0
        %v1199 = vpop.f32.mrb[0].mxu0
        %v1200 = vpop.f32.mrb[0].mxu0
        %1201 = vdwg.mxu0
        %v1202 = vpack.c.bf16 %v1197, %v1197
        %1204 = vrot.lane.b32.xlu0 %v1202, 112
        %v1205 = vpop.permute.xlu0 %1204
        %1206 = vrot.lane.b32.xlu0 %v1202, 96
        %v1207 = vpop.permute.xlu0 %1206
        %vm1208 = vcmask 130048
        %v1210 = vsel %vm1208, %v1202, 0
        %v1213 = vsel %vm1208, %v1207, 0
        %1215 = vmatprep.subr.bf16.mxu0 0
        %1216 = vmatpush1.bf16.xpose.msra.mxu0 %v1213
        %1217 = vmatprep.subr.bf16.mxu0 0
        %1218 = vmatpush1.bf16.xpose.msra.mxu0 0
        %1219 = vmatprep.subr.bf16.mxu0 0
        %1220 = vmatpush1.bf16.xpose.msra.mxu0 0
        %1221 = vmatprep.subr.bf16.mxu0 0
        %1222 = vmatpush1.bf16.xpose.msra.mxu0 0
        %1223 = vmatprep.subr.bf16.mxu0 0
        %1224 = vmatpush1.bf16.xpose.msra.mxu0 0
        %1225 = vmatprep.subr.bf16.mxu0 0
        %1226 = vmatpush1.bf16.xpose.msra.mxu0 0
        %1227 = vmatprep.subr.bf16.mxu0 0
        %1228 = vmatpush1.bf16.xpose.msra.mxu0 0
        %1229 = vmatprep.subr.bf16.mxu0 0
        %1230 = vmatpush1.bf16.xpose.msra.mxu0 0
        %1231 = vmatprep.subr.bf16.mxu0 0
        %1232 = vmatpush1.bf16.xpose.msra.mxu0 0
        %1233 = vmatprep.subr.bf16.mxu0 0
        %1234 = vmatpush1.bf16.xpose.msra.mxu0 0
        %1235 = vmatprep.subr.bf16.mxu0 0
        %1236 = vmatpush1.bf16.xpose.msra.mxu0 0
        %1237 = vmatprep.subr.bf16.mxu0 0
        %1238 = vmatpush1.bf16.xpose.msra.mxu0 0
        %1239 = vmatprep.subr.bf16.mxu0 0
        %1240 = vmatpush1.bf16.xpose.msra.mxu0 0
        %1241 = vmatprep.subr.bf16.mxu0 0
        %1242 = vmatpush1.bf16.xpose.msra.mxu0 0
        %1243 = vmatprep.subr.bf16.mxu0 0
        %1244 = vmatpush1.bf16.xpose.msra.mxu0 0
        %1245 = vmatprep.subr.bf16.mxu0 0
        %1246 = vmatpush1.bf16.xpose.msra.mxu0 0
        %1247 = vmatprep.mubr.bf16.mxu0 0
        %1248 = vmatmul.mubr.bf16.gmra.mrb[0].mxu0 %v1210
        %v1249 = vpop.f32.mrb[0].mxu0
        %v1250 = vadd.f32 0.0, %v1249
        %v1251 = vpop.f32.mrb[0].mxu0
        %v1252 = vpop.f32.mrb[0].mxu0
        %v1253 = vpop.f32.mrb[0].mxu0
        %1254 = vdwg.mxu0
        %1255 = vrot.lane.b32.xlu0 %v1205, 96
        %v1256 = vpop.permute.xlu0 %1255
        %v1258 = vsel %vm1208, %v1205, 0
        %v1261 = vsel %vm1208, %v1256, 0
        %1263 = vmatprep.subr.bf16.mxu0 0
        %1264 = vmatpush1.bf16.xpose.msra.mxu0 %v1261
        %1265 = vmatprep.subr.bf16.mxu0 0
        %1266 = vmatpush1.bf16.xpose.msra.mxu0 0
        %1267 = vmatprep.subr.bf16.mxu0 0
        %1268 = vmatpush1.bf16.xpose.msra.mxu0 0
        %1269 = vmatprep.subr.bf16.mxu0 0
        %1270 = vmatpush1.bf16.xpose.msra.mxu0 0
        %1271 = vmatprep.subr.bf16.mxu0 0
        %1272 = vmatpush1.bf16.xpose.msra.mxu0 0
        %1273 = vmatprep.subr.bf16.mxu0 0
        %1274 = vmatpush1.bf16.xpose.msra.mxu0 0
        %1275 = vmatprep.subr.bf16.mxu0 0
        %1276 = vmatpush1.bf16.xpose.msra.mxu0 0
        %1277 = vmatprep.subr.bf16.mxu0 0
        %1278 = vmatpush1.bf16.xpose.msra.mxu0 0
        %1279 = vmatprep.subr.bf16.mxu0 0
        %1280 = vmatpush1.bf16.xpose.msra.mxu0 0
        %1281 = vmatprep.subr.bf16.mxu0 0
        %1282 = vmatpush1.bf16.xpose.msra.mxu0 0
        %1283 = vmatprep.subr.bf16.mxu0 0
        %1284 = vmatpush1.bf16.xpose.msra.mxu0 0
        %1285 = vmatprep.subr.bf16.mxu0 0
        %1286 = vmatpush1.bf16.xpose.msra.mxu0 0
        %1287 = vmatprep.subr.bf16.mxu0 0
        %1288 = vmatpush1.bf16.xpose.msra.mxu0 0
        %1289 = vmatprep.subr.bf16.mxu0 0
        %1290 = vmatpush1.bf16.xpose.msra.mxu0 0
        %1291 = vmatprep.subr.bf16.mxu0 0
        %1292 = vmatpush1.bf16.xpose.msra.mxu0 0
        %1293 = vmatprep.subr.bf16.mxu0 0
        %1294 = vmatpush1.bf16.xpose.msra.mxu0 0
        %1295 = vmatprep.mubr.bf16.mxu0 0
        %1296 = vmatmul.mubr.bf16.gmra.mrb[0].mxu0 %v1258
        %v1297 = vpop.f32.mrb[0].mxu0
        %v1298 = vadd.f32 0.0, %v1297
        %v1299 = vpop.f32.mrb[0].mxu0
        %v1300 = vpop.f32.mrb[0].mxu0
        %v1301 = vpop.f32.mrb[0].mxu0
        %1302 = vdwg.mxu0
        %v1303 = vsel %vm918, %v1250, -inf
        %1304 = vmax.xlane.f32.xlu0 %v1303
        %v1305 = vpop.xlane.xlu0 %1304
        %v1306 = vsel %vm918, %v1298, -inf
        %1307 = vmax.xlane.f32.xlu0 %v1306
        %v1308 = vpop.xlane.xlu0 %1307
        %v1309 = vsub.f32 %v1250, %v1305
        %v1310 = vsub.f32 %v1298, %v1308
        %v1311 = vmul.f32 %v1309, 1.442695
        %v1312 = vpow.pop %v1311
        %v1313 = vmul.f32 %v1310, 1.442695
        %v1314 = vpow.pop %v1313
        %v1315 = vsel %vm918, %v1312, 0.0
        %1316 = vadd.xlane.f32.xlu0 %v1315
        %v1317 = vpop.xlane.xlu0 %1316
        %v1318 = vsel %vm918, %v1314, 0.0
        %1319 = vadd.xlane.f32.xlu0 %v1318
        %v1320 = vpop.xlane.xlu0 %1319
        %v1321 = vrcp.pop %v1317
        %v1322 = vrcp.pop %v1320
        %v1323 = vmul.f32 %v1312, %v1321
        %v1324 = vmul.f32 %v1314, %v1322
        %v1325 = vpack.c.bf16 %v1323, %v1323
        %v1326 = vpack.c.bf16 %v1324, %v1324
        %1327 = vrot.lane.b32.xlu0 %v1202, 64
        %v1328 = vpop.permute.xlu0 %1327
        %v1330 = vsel %vm918, %v1325, 0
        %v1333 = vsel %vm922, %v1328, 0
        %1335 = vmatprep.subr.bf16.mxu0 0
        %1336 = vmatpush1.bf16.msra.mxu0 %v1333
        %1337 = vmatprep.subr.bf16.mxu0 0
        %1338 = vmatpush1.bf16.msra.mxu0 0
        %1339 = vmatprep.subr.bf16.mxu0 0
        %1340 = vmatpush1.bf16.msra.mxu0 0
        %1341 = vmatprep.subr.bf16.mxu0 0
        %1342 = vmatpush1.bf16.msra.mxu0 0
        %1343 = vmatprep.subr.bf16.mxu0 0
        %1344 = vmatpush1.bf16.msra.mxu0 0
        %1345 = vmatprep.subr.bf16.mxu0 0
        %1346 = vmatpush1.bf16.msra.mxu0 0
        %1347 = vmatprep.subr.bf16.mxu0 0
        %1348 = vmatpush1.bf16.msra.mxu0 0
        %1349 = vmatprep.subr.bf16.mxu0 0
        %1350 = vmatpush1.bf16.msra.mxu0 0
        %1351 = vmatprep.subr.bf16.mxu0 0
        %1352 = vmatpush1.bf16.msra.mxu0 0
        %1353 = vmatprep.subr.bf16.mxu0 0
        %1354 = vmatpush1.bf16.msra.mxu0 0
        %1355 = vmatprep.subr.bf16.mxu0 0
        %1356 = vmatpush1.bf16.msra.mxu0 0
        %1357 = vmatprep.subr.bf16.mxu0 0
        %1358 = vmatpush1.bf16.msra.mxu0 0
        %1359 = vmatprep.subr.bf16.mxu0 0
        %1360 = vmatpush1.bf16.msra.mxu0 0
        %1361 = vmatprep.subr.bf16.mxu0 0
        %1362 = vmatpush1.bf16.msra.mxu0 0
        %1363 = vmatprep.subr.bf16.mxu0 0
        %1364 = vmatpush1.bf16.msra.mxu0 0
        %1365 = vmatprep.subr.bf16.mxu0 0
        %1366 = vmatpush1.bf16.msra.mxu0 0
        %1367 = vmatprep.mubr.bf16.mxu0 0
        %1368 = vmatmul.mubr.bf16.gmra.mrb[0].mxu0 %v1330
        %v1369 = vpop.f32.mrb[0].mxu0
        %v1370 = vadd.f32 0.0, %v1369
        %v1371 = vpop.f32.mrb[0].mxu0
        %v1372 = vpop.f32.mrb[0].mxu0
        %v1373 = vpop.f32.mrb[0].mxu0
        %1374 = vdwg.mxu0
        %1375 = vrot.lane.b32.xlu0 %v1205, 64
        %v1376 = vpop.permute.xlu0 %1375
        %v1378 = vsel %vm918, %v1326, 0
        %v1381 = vsel %vm922, %v1376, 0
        %1383 = vmatprep.subr.bf16.mxu0 0
        %1384 = vmatpush1.bf16.msra.mxu0 %v1381
        %1385 = vmatprep.subr.bf16.mxu0 0
        %1386 = vmatpush1.bf16.msra.mxu0 0
        %1387 = vmatprep.subr.bf16.mxu0 0
        %1388 = vmatpush1.bf16.msra.mxu0 0
        %1389 = vmatprep.subr.bf16.mxu0 0
        %1390 = vmatpush1.bf16.msra.mxu0 0
        %1391 = vmatprep.subr.bf16.mxu0 0
        %1392 = vmatpush1.bf16.msra.mxu0 0
        %1393 = vmatprep.subr.bf16.mxu0 0
        %1394 = vmatpush1.bf16.msra.mxu0 0
        %1395 = vmatprep.subr.bf16.mxu0 0
        %1396 = vmatpush1.bf16.msra.mxu0 0
        %1397 = vmatprep.subr.bf16.mxu0 0
        %1398 = vmatpush1.bf16.msra.mxu0 0
        %1399 = vmatprep.subr.bf16.mxu0 0
        %1400 = vmatpush1.bf16.msra.mxu0 0
        %1401 = vmatprep.subr.bf16.mxu0 0
        %1402 = vmatpush1.bf16.msra.mxu0 0
        %1403 = vmatprep.subr.bf16.mxu0 0
        %1404 = vmatpush1.bf16.msra.mxu0 0
        %1405 = vmatprep.subr.bf16.mxu0 0
        %1406 = vmatpush1.bf16.msra.mxu0 0
        %1407 = vmatprep.subr.bf16.mxu0 0
        %1408 = vmatpush1.bf16.msra.mxu0 0
        %1409 = vmatprep.subr.bf16.mxu0 0
        %1410 = vmatpush1.bf16.msra.mxu0 0
        %1411 = vmatprep.subr.bf16.mxu0 0
        %1412 = vmatpush1.bf16.msra.mxu0 0
        %1413 = vmatprep.subr.bf16.mxu0 0
        %1414 = vmatpush1.bf16.msra.mxu0 0
        %1415 = vmatprep.mubr.bf16.mxu0 0
        %1416 = vmatmul.mubr.bf16.gmra.mrb[0].mxu0 %v1378
        %v1417 = vpop.f32.mrb[0].mxu0
        %v1418 = vadd.f32 0.0, %v1417
        %v1419 = vpop.f32.mrb[0].mxu0
        %v1420 = vpop.f32.mrb[0].mxu0
        %v1421 = vpop.f32.mrb[0].mxu0
        %1422 = vdwg.mxu0
        %1424 = vrot.lane.b32.xlu0 %v1418, 16
        %v1425 = vpop.permute.xlu0 %1424
        %v1427 = vsel %vm1208, %v1370, %v1425
        %v1428 = vpack.c.bf16 %v1427, %v1427
        %v1429 = vld [vmem:[%s15] sm:$0xf]
        %v1430 = vld [vmem:[%s15 + $0x4] sm:$0xf]
        %v1431 = vld [vmem:[%s15 + $0x8] sm:$0xf]
        %v1432 = vld [vmem:[%s15 + $0xc] sm:$0xf]
        %v1433 = vld [vmem:[%s16] sm:$0x1]
        %v1435 = vlaneseq
        %v1436 = vshrl.u32 %v1435, 7
        %v1437 = vsub.s32 0, %v1436
        %v1438 = vrot.slane %v1433, %v1437
        %v1444 = vunpack.c.l.b16 %v1429
        %v1445 = vunpack.c.l.b16 %v1430
        %v1446 = vunpack.c.l.b16 %v1431
        %v1447 = vunpack.c.l.b16 %v1432
        %v1448 = vpack.c.b16 %v1445, %v1444
        %v1449 = vpack.c.b16 %v1447, %v1446
        %v1453 = vsel %vm817, %v1428, 0
        %1455 = vmatprep.subr.bf16.mxu0 0
        %1456 = vmatpush1.bf16.msra.mxu0 %v1448
        %1457 = vmatprep.subr.bf16.mxu0 0
        %1458 = vmatpush1.bf16.msra.mxu0 %v1449
        %1459 = vmatprep.subr.bf16.mxu0 0
        %1460 = vmatpush1.bf16.msra.mxu0 0
        %1461 = vmatprep.subr.bf16.mxu0 0
        %1462 = vmatpush1.bf16.msra.mxu0 0
        %1463 = vmatprep.subr.bf16.mxu0 0
        %1464 = vmatpush1.bf16.msra.mxu0 0
        %1465 = vmatprep.subr.bf16.mxu0 0
        %1466 = vmatpush1.bf16.msra.mxu0 0
        %1467 = vmatprep.subr.bf16.mxu0 0
        %1468 = vmatpush1.bf16.msra.mxu0 0
        %1469 = vmatprep.subr.bf16.mxu0 0
        %1470 = vmatpush1.bf16.msra.mxu0 0
        %1471 = vmatprep.subr.bf16.mxu0 0
        %1472 = vmatpush1.bf16.msra.mxu0 0
        %1473 = vmatprep.subr.bf16.mxu0 0
        %1474 = vmatpush1.bf16.msra.mxu0 0
        %1475 = vmatprep.subr.bf16.mxu0 0
        %1476 = vmatpush1.bf16.msra.mxu0 0
        %1477 = vmatprep.subr.bf16.mxu0 0
        %1478 = vmatpush1.bf16.msra.mxu0 0
        %1479 = vmatprep.subr.bf16.mxu0 0
        %1480 = vmatpush1.bf16.msra.mxu0 0
        %1481 = vmatprep.subr.bf16.mxu0 0
        %1482 = vmatpush1.bf16.msra.mxu0 0
        %1483 = vmatprep.subr.bf16.mxu0 0
        %1484 = vmatpush1.bf16.msra.mxu0 0
        %1485 = vmatprep.subr.bf16.mxu0 0
        %1486 = vmatpush1.bf16.msra.mxu0 0
        %1487 = vmatprep.mubr.bf16.mxu0 0
        %1488 = vmatmul.mubr.bf16.gmra.mrb[0].mxu0 %v1453
        %v1489 = vpop.f32.mrb[0].mxu0
        %v1490 = vadd.f32 %v1438, %v1489
        %v1491 = vpop.f32.mrb[0].mxu0
        %v1492 = vpop.f32.mrb[0].mxu0
        %v1493 = vpop.f32.mrb[0].mxu0
        %1494 = vdwg.mxu0
        %v1495 = vadd.f32 %v1490, %v1104
        %v1496 = vld [vmem:[%s17] sm:$0x1]
        %v1497 = vld [vmem:[%s18] sm:$0x1]
        %v1498 = vsel %vm817, %v1495, 0.0
        %1499 = vadd.xlane.f32.xlu0 %v1498
        %v1500 = vpop.xlane.xlu0 %1499
        %v1501 = vmul.f32 %v1500, %v1110
        %v1502 = vsub.f32 %v1495, %v1501
        %v1503 = vmul.f32 %v1502, %v1502
        %v1504 = vsel %vm817, %v1503, 0.0
        %1505 = vadd.xlane.f32.xlu0 %v1504
        %v1506 = vpop.xlane.xlu0 %1505
        %v1507 = vmul.f32 %v1506, %v1110
        %v1508 = vadd.f32 %v1507, 1e-06
        %v1509 = vrsqrt.pop %v1508
        %v1510 = vmul.f32 %v1502, %v1509
        %v1512 = vlaneseq
        %v1513 = vshrl.u32 %v1512, 7
        %v1514 = vsub.s32 0, %v1513
        %v1515 = vrot.slane %v1496, %v1514
        %v1517 = vmul.f32 %v1510, %v1515
        %v1519 = vlaneseq
        %v1520 = vshrl.u32 %v1519, 7
        %v1521 = vsub.s32 0, %v1520
        %v1522 = vrot.slane %v1497, %v1521
        %v1524 = vadd.f32 %v1517, %v1522
        %v1525 = vpack.c.bf16 %v1524, %v1524
        %v1526 = vld [vmem:[%s19] sm:$0xf]
        %v1527 = vld [vmem:[%s19 + $0x4] sm:$0xf]
        %v1528 = vld [vmem:[%s19 + $0x8] sm:$0xf]
        %v1529 = vld [vmem:[%s19 + $0xc] sm:$0xf]
        %v1530 = vld [vmem:[%s20] sm:$0x1]
        %v1532 = vlaneseq
        %v1533 = vshrl.u32 %v1532, 7
        %v1534 = vsub.s32 0, %v1533
        %v1535 = vrot.slane %v1530, %v1534
        %v1541 = vunpack.c.l.b16 %v1526
        %v1542 = vunpack.c.l.b16 %v1527
        %v1543 = vunpack.c.l.b16 %v1528
        %v1544 = vunpack.c.l.b16 %v1529
        %v1545 = vpack.c.b16 %v1542, %v1541
        %v1546 = vpack.c.b16 %v1544, %v1543
        %v1550 = vsel %vm817, %v1525, 0
        %1552 = vmatprep.subr.bf16.mxu0 0
        %1553 = vmatpush1.bf16.msra.mxu0 %v1545
        %1554 = vmatprep.subr.bf16.mxu0 0
        %1555 = vmatpush1.bf16.msra.mxu0 %v1546
        %1556 = vmatprep.subr.bf16.mxu0 0
        %1557 = vmatpush1.bf16.msra.mxu0 0
        %1558 = vmatprep.subr.bf16.mxu0 0
        %1559 = vmatpush1.bf16.msra.mxu0 0
        %1560 = vmatprep.subr.bf16.mxu0 0
        %1561 = vmatpush1.bf16.msra.mxu0 0
        %1562 = vmatprep.subr.bf16.mxu0 0
        %1563 = vmatpush1.bf16.msra.mxu0 0
        %1564 = vmatprep.subr.bf16.mxu0 0
        %1565 = vmatpush1.bf16.msra.mxu0 0
        %1566 = vmatprep.subr.bf16.mxu0 0
        %1567 = vmatpush1.bf16.msra.mxu0 0
        %1568 = vmatprep.subr.bf16.mxu0 0
        %1569 = vmatpush1.bf16.msra.mxu0 0
        %1570 = vmatprep.subr.bf16.mxu0 0
        %1571 = vmatpush1.bf16.msra.mxu0 0
        %1572 = vmatprep.subr.bf16.mxu0 0
        %1573 = vmatpush1.bf16.msra.mxu0 0
        %1574 = vmatprep.subr.bf16.mxu0 0
        %1575 = vmatpush1.bf16.msra.mxu0 0
        %1576 = vmatprep.subr.bf16.mxu0 0
        %1577 = vmatpush1.bf16.msra.mxu0 0
        %1578 = vmatprep.subr.bf16.mxu0 0
        %1579 = vmatpush1.bf16.msra.mxu0 0
        %1580 = vmatprep.subr.bf16.mxu0 0
        %1581 = vmatpush1.bf16.msra.mxu0 0
        %1582 = vmatprep.subr.bf16.mxu0 0
        %1583 = vmatpush1.bf16.msra.mxu0 0
        %1584 = vmatprep.mubr.bf16.mxu0 0
        %1585 = vmatmul.mubr.bf16.gmra.mrb[0].mxu0 %v1550
        %v1586 = vpop.f32.mrb[0].mxu0
        %v1587 = vadd.f32 %v1535, %v1586
        %v1588 = vpop.f32.mrb[0].mxu0
        %v1589 = vpop.f32.mrb[0].mxu0
        %v1590 = vpop.f32.mrb[0].mxu0
        %1591 = vdwg.mxu0
        %v1592 = vmul.f32 %v1587, 0.5
        %v1593 = vmul.f32 %v1587, 0.044715
        %v1594 = vmul.f32 %v1593, %v1587
        %v1595 = vmul.f32 %v1594, %v1587
        %v1596 = vadd.f32 %v1587, %v1595
        %v1597 = vmul.f32 %v1596, 0.7978846
        %v1598 = vtanh.pop %v1597
        %v1599 = vadd.f32 %v1598, 1.0
        %v1600 = vmul.f32 %v1592, %v1599
        %v1601 = vpack.c.bf16 %v1600, %v1600
        %v1602 = vld [vmem:[%s21] sm:$0xf]
        %v1603 = vld [vmem:[%s21 + $0x4] sm:$0xf]
        %v1604 = vld [vmem:[%s21 + $0x8] sm:$0xf]
        %v1605 = vld [vmem:[%s21 + $0xc] sm:$0xf]
        %v1606 = vld [vmem:[%s21 + $0x10] sm:$0xf]
        %v1607 = vld [vmem:[%s21 + $0x14] sm:$0xf]
        %v1608 = vld [vmem:[%s21 + $0x18] sm:$0xf]
        %v1609 = vld [vmem:[%s21 + $0x1c] sm:$0xf]
        %v1610 = vld [vmem:[%s21 + $0x20] sm:$0xf]
        %v1611 = vld [vmem:[%s21 + $0x24] sm:$0xf]
        %v1612 = vld [vmem:[%s21 + $0x28] sm:$0xf]
        %v1613 = vld [vmem:[%s21 + $0x2c] sm:$0xf]
        %v1614 = vld [vmem:[%s21 + $0x30] sm:$0xf]
        %v1615 = vld [vmem:[%s21 + $0x34] sm:$0xf]
        %v1616 = vld [vmem:[%s21 + $0x38] sm:$0xf]
        %v1617 = vld [vmem:[%s21 + $0x3c] sm:$0xf]
        %v1618 = vld [vmem:[%s22] sm:$0x1]
        %v1620 = vlaneseq
        %v1621 = vshrl.u32 %v1620, 7
        %v1622 = vsub.s32 0, %v1621
        %v1623 = vrot.slane %v1618, %v1622
        %v1641 = vunpack.c.l.b16 %v1602
        %v1642 = vunpack.c.l.b16 %v1603
        %v1643 = vunpack.c.l.b16 %v1604
        %v1644 = vunpack.c.l.b16 %v1605
        %v1645 = vunpack.c.l.b16 %v1606
        %v1646 = vunpack.c.l.b16 %v1607
        %v1647 = vunpack.c.l.b16 %v1608
        %v1648 = vunpack.c.l.b16 %v1609
        %v1649 = vunpack.c.l.b16 %v1610
        %v1650 = vunpack.c.l.b16 %v1611
        %v1651 = vunpack.c.l.b16 %v1612
        %v1652 = vunpack.c.l.b16 %v1613
        %v1653 = vunpack.c.l.b16 %v1614
        %v1654 = vunpack.c.l.b16 %v1615
        %v1655 = vunpack.c.l.b16 %v1616
        %v1656 = vunpack.c.l.b16 %v1617
        %v1657 = vpack.c.b16 %v1642, %v1641
        %v1658 = vpack.c.b16 %v1644, %v1643
        %v1659 = vpack.c.b16 %v1646, %v1645
        %v1660 = vpack.c.b16 %v1648, %v1647
        %v1661 = vpack.c.b16 %v1650, %v1649
        %v1662 = vpack.c.b16 %v1652, %v1651
        %v1663 = vpack.c.b16 %v1654, %v1653
        %v1664 = vpack.c.b16 %v1656, %v1655
        %1673 = vmatprep.subr.bf16.mxu0 0
        %1674 = vmatpush1.bf16.msra.mxu0 %v1657
        %1675 = vmatprep.subr.bf16.mxu0 0
        %1676 = vmatpush1.bf16.msra.mxu0 %v1658
        %1677 = vmatprep.subr.bf16.mxu0 0
        %1678 = vmatpush1.bf16.msra.mxu0 %v1659
        %1679 = vmatprep.subr.bf16.mxu0 0
        %1680 = vmatpush1.bf16.msra.mxu0 %v1660
        %1681 = vmatprep.subr.bf16.mxu0 0
        %1682 = vmatpush1.bf16.msra.mxu0 %v1661
        %1683 = vmatprep.subr.bf16.mxu0 0
        %1684 = vmatpush1.bf16.msra.mxu0 %v1662
        %1685 = vmatprep.subr.bf16.mxu0 0
        %1686 = vmatpush1.bf16.msra.mxu0 %v1663
        %1687 = vmatprep.subr.bf16.mxu0 0
        %1688 = vmatpush1.bf16.msra.mxu0 %v1664
        %1689 = vmatprep.subr.bf16.mxu0 0
        %1690 = vmatpush1.bf16.msra.mxu0 0
        %1691 = vmatprep.subr.bf16.mxu0 0
        %1692 = vmatpush1.bf16.msra.mxu0 0
        %1693 = vmatprep.subr.bf16.mxu0 0
        %1694 = vmatpush1.bf16.msra.mxu0 0
        %1695 = vmatprep.subr.bf16.mxu0 0
        %1696 = vmatpush1.bf16.msra.mxu0 0
        %1697 = vmatprep.subr.bf16.mxu0 0
        %1698 = vmatpush1.bf16.msra.mxu0 0
        %1699 = vmatprep.subr.bf16.mxu0 0
        %1700 = vmatpush1.bf16.msra.mxu0 0
        %1701 = vmatprep.subr.bf16.mxu0 0
        %1702 = vmatpush1.bf16.msra.mxu0 0
        %1703 = vmatprep.subr.bf16.mxu0 0
        %1704 = vmatpush1.bf16.msra.mxu0 0
        %1705 = vmatprep.mubr.bf16.mxu0 0
        %1706 = vmatmul.mubr.bf16.gmra.mrb[0].mxu0 %v1601
        %v1707 = vpop.f32.mrb[0].mxu0
        %v1708 = vadd.f32 %v1623, %v1707
        %v1709 = vpop.f32.mrb[0].mxu0
        %v1710 = vpop.f32.mrb[0].mxu0
        %v1711 = vpop.f32.mrb[0].mxu0
        %1712 = vdwg.mxu0
        %v1713 = vadd.f32 %v1708, %v1495
        %v1714 = vpack.c.bf16 %v1713, %v1713
        %v1715 = vld [vmem:[%s1] sm:$0xf]
        %v1716 = vld [vmem:[%s1 + $0x4] sm:$0xf]
        %v1717 = vld [vmem:[%s1 + $0x8] sm:$0xf]
        %v1718 = vld [vmem:[%s1 + $0xc] sm:$0xf]
        %v1719 = vld [vmem:[%s2] sm:$0xf]
        %v1720 = vld [vmem:[%s2 + $0x4] sm:$0xf]
        %v1721 = vld [vmem:[%s2 + $0x8] sm:$0xf]
        %v1722 = vld [vmem:[%s2 + $0xc] sm:$0xf]
        %v1727 = vunpack.c.l.b16 %v1719
        %v1728 = vunpack.c.l.b16 %v1720
        %v1729 = vunpack.c.l.b16 %v1721
        %v1730 = vunpack.c.l.b16 %v1722
        %v1731 = vpack.c.b16 %v1728, %v1727
        %v1732 = vpack.c.b16 %v1730, %v1729
        %v1736 = vsel %vm817, %v1714, 0
        %1738 = vmatprep.subr.bf16.mxu0 0
        %1739 = vmatpush1.bf16.msra.mxu0 %v1731
        %1740 = vmatprep.subr.bf16.mxu0 0
        %1741 = vmatpush1.bf16.msra.mxu0 %v1732
        %1742 = vmatprep.subr.bf16.mxu0 0
        %1743 = vmatpush1.bf16.msra.mxu0 0
        %1744 = vmatprep.subr.bf16.mxu0 0
        %1745 = vmatpush1.bf16.msra.mxu0 0
        %1746 = vmatprep.subr.bf16.mxu0 0
        %1747 = vmatpush1.bf16.msra.mxu0 0
        %1748 = vmatprep.subr.bf16.mxu0 0
        %1749 = vmatpush1.bf16.msra.mxu0 0
        %1750 = vmatprep.subr.bf16.mxu0 0
        %1751 = vmatpush1.bf16.msra.mxu0 0
        %1752 = vmatprep.subr.bf16.mxu0 0
        %1753 = vmatpush1.bf16.msra.mxu0 0
        %1754 = vmatprep.subr.bf16.mxu0 0
        %1755 = vmatpush1.bf16.msra.mxu0 0
        %1756 = vmatprep.subr.bf16.mxu0 0
        %1757 = vmatpush1.bf16.msra.mxu0 0
        %1758 = vmatprep.subr.bf16.mxu0 0
        %1759 = vmatpush1.bf16.msra.mxu0 0
        %1760 = vmatprep.subr.bf16.mxu0 0
        %1761 = vmatpush1.bf16.msra.mxu0 0
        %1762 = vmatprep.subr.bf16.mxu0 0
        %1763 = vmatpush1.bf16.msra.mxu0 0
        %1764 = vmatprep.subr.bf16.mxu0 0
        %1765 = vmatpush1.bf16.msra.mxu0 0
        %1766 = vmatprep.subr.bf16.mxu0 0
        %1767 = vmatpush1.bf16.msra.mxu0 0
        %1768 = vmatprep.subr.bf16.mxu0 0
        %1769 = vmatpush1.bf16.msra.mxu0 0
        %1770 = vmatprep.mubr.bf16.mxu0 0
        %1771 = vmatmul.mubr.bf16.gmra.mrb[0].mxu0 %v1736
        %v1772 = vpop.f32.mrb[0].mxu0
        %v1773 = vadd.f32 0.0, %v1772
        %v1774 = vpop.f32.mrb[0].mxu0
        %v1775 = vpop.f32.mrb[0].mxu0
        %v1776 = vpop.f32.mrb[0].mxu0
        %1777 = vdwg.mxu0
        %v1782 = vunpack.c.l.b16 %v1715
        %v1783 = vunpack.c.l.b16 %v1716
        %v1784 = vunpack.c.l.b16 %v1717
        %v1785 = vunpack.c.l.b16 %v1718
        %v1786 = vpack.c.b16 %v1783, %v1782
        %v1787 = vpack.c.b16 %v1785, %v1784
        %1790 = vmatprep.subr.bf16.mxu0 0
        %1791 = vmatpush1.bf16.msra.mxu0 %v1786
        %1792 = vmatprep.subr.bf16.mxu0 0
        %1793 = vmatpush1.bf16.msra.mxu0 %v1787
        %1794 = vmatprep.subr.bf16.mxu0 0
        %1795 = vmatpush1.bf16.msra.mxu0 0
        %1796 = vmatprep.subr.bf16.mxu0 0
        %1797 = vmatpush1.bf16.msra.mxu0 0
        %1798 = vmatprep.subr.bf16.mxu0 0
        %1799 = vmatpush1.bf16.msra.mxu0 0
        %1800 = vmatprep.subr.bf16.mxu0 0
        %1801 = vmatpush1.bf16.msra.mxu0 0
        %1802 = vmatprep.subr.bf16.mxu0 0
        %1803 = vmatpush1.bf16.msra.mxu0 0
        %1804 = vmatprep.subr.bf16.mxu0 0
        %1805 = vmatpush1.bf16.msra.mxu0 0
        %1806 = vmatprep.subr.bf16.mxu0 0
        %1807 = vmatpush1.bf16.msra.mxu0 0
        %1808 = vmatprep.subr.bf16.mxu0 0
        %1809 = vmatpush1.bf16.msra.mxu0 0
        %1810 = vmatprep.subr.bf16.mxu0 0
        %1811 = vmatpush1.bf16.msra.mxu0 0
        %1812 = vmatprep.subr.bf16.mxu0 0
        %1813 = vmatpush1.bf16.msra.mxu0 0
        %1814 = vmatprep.subr.bf16.mxu0 0
        %1815 = vmatpush1.bf16.msra.mxu0 0
        %1816 = vmatprep.subr.bf16.mxu0 0
        %1817 = vmatpush1.bf16.msra.mxu0 0
        %1818 = vmatprep.subr.bf16.mxu0 0
        %1819 = vmatpush1.bf16.msra.mxu0 0
        %1820 = vmatprep.subr.bf16.mxu0 0
        %1821 = vmatpush1.bf16.msra.mxu0 0
        %1822 = vmatprep.mubr.bf16.mxu0 0
        %1823 = vmatmul.mubr.bf16.gmra.mrb[0].mxu0 %v1736
        %v1824 = vpop.f32.mrb[0].mxu0
        %v1825 = vadd.f32 %v1773, %v1824
        %v1826 = vpop.f32.mrb[0].mxu0
        %v1827 = vpop.f32.mrb[0].mxu0
        %v1828 = vpop.f32.mrb[0].mxu0
        %1829 = vdwg.mxu0
        %v1830 = vpack.c.bf16 %v1825, %v1825
        %v1831 = vld [vmem:[#allocation11] sm:$0xf]
        %v1832 = vld [vmem:[#allocation12] sm:$0xf]
        %v1833 = vld [vmem:[#allocation14] sm:$0xf]
        %v1834 = vld [vmem:[%s10] sm:$0xf]
        %v1836 = vsel %vm918, %v1832, 0
        %v1839 = vsel %vm922, %v1830, 0
        %1841 = vmatprep.subr.bf16.mxu0 0
        %1842 = vmatpush1.bf16.msra.mxu0 %v1839
        %1843 = vmatprep.subr.bf16.mxu0 0
        %1844 = vmatpush1.bf16.msra.mxu0 0
        %1845 = vmatprep.subr.bf16.mxu0 0
        %1846 = vmatpush1.bf16.msra.mxu0 0
        %1847 = vmatprep.subr.bf16.mxu0 0
        %1848 = vmatpush1.bf16.msra.mxu0 0
        %1849 = vmatprep.subr.bf16.mxu0 0
        %1850 = vmatpush1.bf16.msra.mxu0 0
        %1851 = vmatprep.subr.bf16.mxu0 0
        %1852 = vmatpush1.bf16.msra.mxu0 0
        %1853 = vmatprep.subr.bf16.mxu0 0
        %1854 = vmatpush1.bf16.msra.mxu0 0
        %1855 = vmatprep.subr.bf16.mxu0 0
        %1856 = vmatpush1.bf16.msra.mxu0 0
        %1857 = vmatprep.subr.bf16.mxu0 0
        %1858 = vmatpush1.bf16.msra.mxu0 0
        %1859 = vmatprep.subr.bf16.mxu0 0
        %1860 = vmatpush1.bf16.msra.mxu0 0
        %1861 = vmatprep.subr.bf16.mxu0 0
        %1862 = vmatpush1.bf16.msra.mxu0 0
        %1863 = vmatprep.subr.bf16.mxu0 0
        %1864 = vmatpush1.bf16.msra.mxu0 0
        %1865 = vmatprep.subr.bf16.mxu0 0
        %1866 = vmatpush1.bf16.msra.mxu0 0
        %1867 = vmatprep.subr.bf16.mxu0 0
        %1868 = vmatpush1.bf16.msra.mxu0 0
        %1869 = vmatprep.subr.bf16.mxu0 0
        %1870 = vmatpush1.bf16.msra.mxu0 0
        %1871 = vmatprep.subr.bf16.mxu0 0
        %1872 = vmatpush1.bf16.msra.mxu0 0
        %1873 = vmatprep.mubr.bf16.mxu0 0
        %1874 = vmatmul.mubr.bf16.gmra.mrb[0].mxu0 %v1836
        %v1875 = vpop.f32.mrb[0].mxu0
        %v1876 = vadd.f32 0.0, %v1875
        %v1877 = vpop.f32.mrb[0].mxu0
        %v1878 = vpop.f32.mrb[0].mxu0
        %v1879 = vpop.f32.mrb[0].mxu0
        %1880 = vdwg.mxu0
        %v1882 = vsel %vm918, %v1831, 0
        %1884 = vmatprep.subr.bf16.mxu0 0
        %1885 = vmatpush1.bf16.msra.mxu0 %v1839
        %1886 = vmatprep.subr.bf16.mxu0 0
        %1887 = vmatpush1.bf16.msra.mxu0 0
        %1888 = vmatprep.subr.bf16.mxu0 0
        %1889 = vmatpush1.bf16.msra.mxu0 0
        %1890 = vmatprep.subr.bf16.mxu0 0
        %1891 = vmatpush1.bf16.msra.mxu0 0
        %1892 = vmatprep.subr.bf16.mxu0 0
        %1893 = vmatpush1.bf16.msra.mxu0 0
        %1894 = vmatprep.subr.bf16.mxu0 0
        %1895 = vmatpush1.bf16.msra.mxu0 0
        %1896 = vmatprep.subr.bf16.mxu0 0
        %1897 = vmatpush1.bf16.msra.mxu0 0
        %1898 = vmatprep.subr.bf16.mxu0 0
        %1899 = vmatpush1.bf16.msra.mxu0 0
        %1900 = vmatprep.subr.bf16.mxu0 0
        %1901 = vmatpush1.bf16.msra.mxu0 0
        %1902 = vmatprep.subr.bf16.mxu0 0
        %1903 = vmatpush1.bf16.msra.mxu0 0
        %1904 = vmatprep.subr.bf16.mxu0 0
        %1905 = vmatpush1.bf16.msra.mxu0 0
        %1906 = vmatprep.subr.bf16.mxu0 0
        %1907 = vmatpush1.bf16.msra.mxu0 0
        %1908 = vmatprep.subr.bf16.mxu0 0
        %1909 = vmatpush1.bf16.msra.mxu0 0
        %1910 = vmatprep.subr.bf16.mxu0 0
        %1911 = vmatpush1.bf16.msra.mxu0 0
        %1912 = vmatprep.subr.bf16.mxu0 0
        %1913 = vmatpush1.bf16.msra.mxu0 0
        %1914 = vmatprep.subr.bf16.mxu0 0
        %1915 = vmatpush1.bf16.msra.mxu0 0
        %1916 = vmatprep.mubr.bf16.mxu0 0
        %1917 = vmatmul.mubr.bf16.gmra.mrb[0].mxu0 %v1882
        %v1918 = vpop.f32.mrb[0].mxu0
        %v1919 = vadd.f32 %v1876, %v1918
        %v1920 = vpop.f32.mrb[0].mxu0
        %v1921 = vpop.f32.mrb[0].mxu0
        %v1922 = vpop.f32.mrb[0].mxu0
        %1923 = vdwg.mxu0
        %1925 = vrot.lane.b32.xlu0 %v1830, 96
        %v1926 = vpop.permute.xlu0 %1925
        %v1928 = vsel %vm918, %v1833, 0
        %v1931 = vsel %vm922, %v1926, 0
        %1933 = vmatprep.subr.bf16.mxu0 0
        %1934 = vmatpush1.bf16.msra.mxu0 %v1931
        %1935 = vmatprep.subr.bf16.mxu0 0
        %1936 = vmatpush1.bf16.msra.mxu0 0
        %1937 = vmatprep.subr.bf16.mxu0 0
        %1938 = vmatpush1.bf16.msra.mxu0 0
        %1939 = vmatprep.subr.bf16.mxu0 0
        %1940 = vmatpush1.bf16.msra.mxu0 0
        %1941 = vmatprep.subr.bf16.mxu0 0
        %1942 = vmatpush1.bf16.msra.mxu0 0
        %1943 = vmatprep.subr.bf16.mxu0 0
        %1944 = vmatpush1.bf16.msra.mxu0 0
        %1945 = vmatprep.subr.bf16.mxu0 0
        %1946 = vmatpush1.bf16.msra.mxu0 0
        %1947 = vmatprep.subr.bf16.mxu0 0
        %1948 = vmatpush1.bf16.msra.mxu0 0
        %1949 = vmatprep.subr.bf16.mxu0 0
        %1950 = vmatpush1.bf16.msra.mxu0 0
        %1951 = vmatprep.subr.bf16.mxu0 0
        %1952 = vmatpush1.bf16.msra.mxu0 0
        %1953 = vmatprep.subr.bf16.mxu0 0
        %1954 = vmatpush1.bf16.msra.mxu0 0
        %1955 = vmatprep.subr.bf16.mxu0 0
        %1956 = vmatpush1.bf16.msra.mxu0 0
        %1957 = vmatprep.subr.bf16.mxu0 0
        %1958 = vmatpush1.bf16.msra.mxu0 0
        %1959 = vmatprep.subr.bf16.mxu0 0
        %1960 = vmatpush1.bf16.msra.mxu0 0
        %1961 = vmatprep.subr.bf16.mxu0 0
        %1962 = vmatpush1.bf16.msra.mxu0 0
        %1963 = vmatprep.subr.bf16.mxu0 0
        %1964 = vmatpush1.bf16.msra.mxu0 0
        %1965 = vmatprep.mubr.bf16.mxu0 0
        %1966 = vmatmul.mubr.bf16.gmra.mrb[0].mxu0 %v1928
        %v1967 = vpop.f32.mrb[0].mxu0
        %v1968 = vadd.f32 0.0, %v1967
        %v1969 = vpop.f32.mrb[0].mxu0
        %v1970 = vpop.f32.mrb[0].mxu0
        %v1971 = vpop.f32.mrb[0].mxu0
        %1972 = vdwg.mxu0
        %v1973 = vsub.f32 %v1919, %v1968
        %v1975 = vsel %vm918, %v1834, 0
        %1977 = vmatprep.subr.bf16.mxu0 0
        %1978 = vmatpush1.bf16.msra.mxu0 %v1931
        %1979 = vmatprep.subr.bf16.mxu0 0
        %1980 = vmatpush1.bf16.msra.mxu0 0
        %1981 = vmatprep.subr.bf16.mxu0 0
        %1982 = vmatpush1.bf16.msra.mxu0 0
        %1983 = vmatprep.subr.bf16.mxu0 0
        %1984 = vmatpush1.bf16.msra.mxu0 0
        %1985 = vmatprep.subr.bf16.mxu0 0
        %1986 = vmatpush1.bf16.msra.mxu0 0
        %1987 = vmatprep.subr.bf16.mxu0 0
        %1988 = vmatpush1.bf16.msra.mxu0 0
        %1989 = vmatprep.subr.bf16.mxu0 0
        %1990 = vmatpush1.bf16.msra.mxu0 0
        %1991 = vmatprep.subr.bf16.mxu0 0
        %1992 = vmatpush1.bf16.msra.mxu0 0
        %1993 = vmatprep.subr.bf16.mxu0 0
        %1994 = vmatpush1.bf16.msra.mxu0 0
        %1995 = vmatprep.subr.bf16.mxu0 0
        %1996 = vmatpush1.bf16.msra.mxu0 0
        %1997 = vmatprep.subr.bf16.mxu0 0
        %1998 = vmatpush1.bf16.msra.mxu0 0
        %1999 = vmatprep.subr.bf16.mxu0 0
        %2000 = vmatpush1.bf16.msra.mxu0 0
        %2001 = vmatprep.subr.bf16.mxu0 0
        %2002 = vmatpush1.bf16.msra.mxu0 0
        %2003 = vmatprep.subr.bf16.mxu0 0
        %2004 = vmatpush1.bf16.msra.mxu0 0
        %2005 = vmatprep.subr.bf16.mxu0 0
        %2006 = vmatpush1.bf16.msra.mxu0 0
        %2007 = vmatprep.subr.bf16.mxu0 0
        %2008 = vmatpush1.bf16.msra.mxu0 0
        %2009 = vmatprep.mubr.bf16.mxu0 0
        %2010 = vmatmul.mubr.bf16.gmra.mrb[0].mxu0 %v1975
        %v2011 = vpop.f32.mrb[0].mxu0
        %v2012 = vadd.f32 0.0, %v2011
        %v2013 = vpop.f32.mrb[0].mxu0
        %v2014 = vpop.f32.mrb[0].mxu0
        %v2015 = vpop.f32.mrb[0].mxu0
        %2016 = vdwg.mxu0
        %v2017 = vsub.f32 %v1973, %v2012
        %2018 = vst.msk [vmem:[%s789] sm:$0xff] %vm817, %v2017
        %s2019 = sand.u32 %s537, 1
        %s2020 = scalar_lea.sflag [#allocation5], %s2019
        %s2021 = sand.u32 %s537, 1
        %s2022 = smul.addr %s2021, 8
        %s2023 = scalar_lea.vmem [#allocation15], %s2022
        // Predicated region
        $region141: #{tpu_custom_call.1} parent=111 // pred_check
          %p2024 = pneg %p547
        $region142: #{tpu_custom_call.1} parent=111 // pred_check_branch
          %2026 = sbr.rel (%p2024) target = $region144
        $region143: #{tpu_custom_call.1} parent=111 // pred_region
          %s2028 = ssub.s32 128, 128
          %2029 = vsyncadd %s2020, %s2028
          %s2030 = smul.addr %s41, 128
          %s2031 = scalar_lea.hbm %s23, %s2030
          %s2033 = sshll.u32 %s2023, 4
          %s2034 = int_to_ptr.vmem [resolvable:$true] %s2033
          %2036 = dma.vmem_to_hbm [thread:$0]  %s2034, 128, %s2031, %s2020
        $region144: #{tpu_custom_call.1} parent=111 // pred_fallthru
          _
      $region112: #{tpu_custom_call.1} parent=5 // pred_fallthru
        _
      %p2037 = scmp.le.s32.totalorder 2, %s36
      // Predicated region
      $region145: #{tpu_custom_call.1} parent=5 // pred_check
        %p2038 = pneg %p2037
      $region146: #{tpu_custom_call.1} parent=5 // pred_check_branch
        %2040 = sbr.rel (%p2038) target = $region148
      $region147: #{tpu_custom_call.1} parent=5 // pred_region
        %s2041 = ssub.s32 %s36, 2
        // Predicated region
        $region149: #{tpu_custom_call.1} parent=147 // pred_check
          %p2042 = pneg %p553
        $region150: #{tpu_custom_call.1} parent=147 // pred_check_branch
          %2044 = sbr.rel (%p2042) target = $region152
        $region151: #{tpu_custom_call.1} parent=147 // pred_region
          %s2045 = sand.u32 %s538, 1
          %s2046 = scalar_lea.sflag [#allocation5], %s2045
          %s2047 = sand.u32 %s538, 1
          %s2048 = smul.addr %s2047, 8
          %s2049 = scalar_lea.vmem [#allocation15], %s2048
          %2050 = dma.done %s2046, 128
        $region152: #{tpu_custom_call.1} parent=147 // pred_fallthru
          _
      $region148: #{tpu_custom_call.1} parent=5 // pred_fallthru
        _
    $region6: #{tpu_custom_call.1} parent=1 // loop_footer
      %s40 = sadd.s32 1, %s36
    $region7: #{tpu_custom_call.1} parent=1 // loop_footer_branch
      %35 = sbr.rel target = $region3
    $region8: #{tpu_custom_call.1} parent=1 // loop_exit
      _
    %2051 = vsyncpa [#allocation4], 1
    %s2052 = scalar_lea.sflag [#allocation4], 1
    %2053 = vsyncpa %s2052, 1
    %2054 = vsyncpa [#allocation7], 1
    %2055 = vsyncpa [#allocation10], 1
    %2056 = vsyncpa [#allocation13], 1
    %2057 = vsyncpa [#allocation5], 1
    %s2058 = scalar_lea.sflag [#allocation5], 1
    %2059 = vsyncpa %s2058, 1

// kernel: tpu_custom_call.1
$region0: #{tpu_custom_call.1}
  #allocation0 [shape = 'u32[]', space=smem, size = 0x4, offset = 0x4, fixed_abs, tag = 'smem constant byte address 0x4 - core index']
  #allocation1 [shape = 'u32[144,128]{1,0:T(1,128)}', space=vmem, size = 0x12000, scoped, tag = 'internal scratch']
  #allocation2 [shape = 'f32[1,8,32]{2,1,0:T(8,128)}', space=vmem, size = 0x1000, scoped, tag = 'scratch operand']
  %s0 = inlined_call_operand.vmem [shape: f32[2,8,32], index: 0, kind: input, shape index: {}]
  %s1 = inlined_call_operand.vmem [shape: bf16[32,64], index: 1, kind: input, shape index: {}]
  %s2 = inlined_call_operand.vmem [shape: bf16[32,64], index: 2, kind: input, shape index: {}]
  %s3 = inlined_call_operand.hbm [shape: bf16[8,8], index: 3, kind: input, shape index: {}]
  %s4 = inlined_call_operand.hbm [shape: bf16[8,8], index: 4, kind: input, shape index: {}]
  %s5 = inlined_call_operand.hbm [shape: bf16[8,8], index: 5, kind: input, shape index: {}]
  %s6 = inlined_call_operand.hbm [shape: bf16[8,8], index: 6, kind: input, shape index: {}]
  %s7 = inlined_call_operand.hbm [shape: bf16[8,8], index: 7, kind: input, shape index: {}]
  %s8 = inlined_call_operand.hbm [shape: bf16[8,8], index: 8, kind: input, shape index: {}]
  %s9 = inlined_call_operand.hbm [shape: bf16[8,8], index: 9, kind: input, shape index: {}]
  %s10 = inlined_call_operand.vmem [shape: bf16[8,8], index: 10, kind: input, shape index: {}]
  %s11 = inlined_call_operand.vmem [shape: f32[1,32], index: 11, kind: input, shape index: {}]
  %s12 = inlined_call_operand.vmem [shape: f32[1,32], index: 12, kind: input, shape index: {}]
  %s13 = inlined_call_operand.vmem [shape: bf16[32,96], index: 13, kind: input, shape index: {}]
  %s14 = inlined_call_operand.vmem [shape: f32[1,96], index: 14, kind: input, shape index: {}]
  %s15 = inlined_call_operand.vmem [shape: bf16[32,32], index: 15, kind: input, shape index: {}]
  %s16 = inlined_call_operand.vmem [shape: f32[1,32], index: 16, kind: input, shape index: {}]
  %s17 = inlined_call_operand.vmem [shape: f32[1,32], index: 17, kind: input, shape index: {}]
  %s18 = inlined_call_operand.vmem [shape: f32[1,32], index: 18, kind: input, shape index: {}]
  %s19 = inlined_call_operand.vmem [shape: bf16[32,128], index: 19, kind: input, shape index: {}]
  %s20 = inlined_call_operand.vmem [shape: f32[1,128], index: 20, kind: input, shape index: {}]
  %s21 = inlined_call_operand.vmem [shape: bf16[128,32], index: 21, kind: input, shape index: {}]
  %s22 = inlined_call_operand.vmem [shape: f32[1,32], index: 22, kind: input, shape index: {}]
  %s23 = inlined_call_operand.hbm [shape: f32[2,8,32], index: 23, kind: output, shape index: {}]
  %s24 = sld [smem:[#allocation0]]
  $region153: #{tpu_custom_call.1} parent=0
    _
  %s26 = ssub.s32 1, %s24
  %s27 = scalar_select 0, %s26, %s24
  $region1: #{tpu_custom_call.1} parent=0
    #allocation3 [shape = 'u8[2048]{0}', space=vmem, size = 0x800, scoped, tag = 'input window, operand 3, single buffered']
    #allocation4 [shape = 's32[2]{0}', space=sflag, size = 0x8, scoped, tag = 'scoped memory for tpu_custom_call.1']
    #allocation5 [shape = 's32[2]{0}', space=sflag, size = 0x8, scoped, tag = 'scoped memory for tpu_custom_call.1']
    #allocation6 [shape = 'u8[2048]{0}', space=vmem, size = 0x800, scoped, tag = 'input window, operand 4, single buffered']
    #allocation7 [shape = 's32[1]{0}', space=sflag, size = 0x4, scoped, tag = 'scoped memory for tpu_custom_call.1']
    #allocation8 [shape = 'u8[2048]{0}', space=vmem, size = 0x800, scoped, tag = 'input window, operand 5, single buffered']
    #allocation9 [shape = 'u8[2048]{0}', space=vmem, size = 0x800, scoped, tag = 'input window, operand 6, single buffered']
    #allocation10 [shape = 's32[1]{0}', space=sflag, size = 0x4, scoped, tag = 'scoped memory for tpu_custom_call.1']
    #allocation11 [shape = 'u8[2048]{0}', space=vmem, size = 0x800, scoped, tag = 'input window, operand 7, single buffered']
    #allocation12 [shape = 'u8[2048]{0}', space=vmem, size = 0x800, scoped, tag = 'input window, operand 8, single buffered']
    #allocation13 [shape = 's32[1]{0}', space=sflag, size = 0x4, scoped, tag = 'scoped memory for tpu_custom_call.1']
    #allocation14 [shape = 'u8[2048]{0}', space=vmem, size = 0x800, scoped, tag = 'input window, operand 9, single buffered']
    #allocation15 [shape = 'u8[8192]{0}', space=vmem, size = 0x2000, scoped, tag = 'output window, operand 0']
    %28 = vsyncpa [#allocation4], 0
    %29 = vsyncpa [#allocation7], 0
    %30 = vsyncpa [#allocation10], 0
    %31 = vsyncpa [#allocation13], 0
    %32 = vsyncpa [#allocation5], 0
    %s33 = scalar_lea.sflag [#allocation5], 1
    %34 = vsyncpa %s33, 0
    loop: start=0, step=1, limit=4
    $region2: #{tpu_custom_call.1} parent=1 // loop_pre_header
      _
    $region3: #{tpu_custom_call.1} parent=1 // loop_header
      %s36 = sphi 0, %s40
      %p37 = scmp.ge.s32.totalorder %s36, 4
      %s46 = sphi 0, %s48
      %s49 = sphi 0, %s46
      %s50 = sphi 0, %s49
      %s66 = sphi 0, %s50
      %s70 = sphi 0, %s70
      %s72 = sphi 0, %s70
      %s73 = sphi 0, %s72
      %s87 = sphi 0, %s73
      %s91 = sphi 0, %s91
      %s93 = sphi 0, %s91
      %s94 = sphi 0, %s93
      %s108 = sphi 0, %s94
      %s112 = sphi 0, %s112
      %s114 = sphi 0, %s112
      %s115 = sphi 0, %s114
      %s129 = sphi 0, %s115
      %s133 = sphi 0, %s133
      %s135 = sphi 0, %s133
      %s136 = sphi 0, %s135
      %s150 = sphi 0, %s136
      %s154 = sphi 0, %s154
      %s156 = sphi 0, %s154
      %s157 = sphi 0, %s156
      %s171 = sphi 0, %s157
      %s175 = sphi 0, %s175
      %s177 = sphi 0, %s175
      %s178 = sphi 0, %s177
      %s192 = sphi 0, %s178
      %s196 = sphi 0, %s196
      %s198 = sphi 0, %s196
      %s199 = sphi 0, %s198
      %s213 = sphi 0, %s199
      %s217 = sphi 0, %s217
      %s219 = sphi 0, %s217
      %s220 = sphi 0, %s219
      %s234 = sphi 0, %s220
      %s238 = sphi 0, %s238
      %s240 = sphi 0, %s238
      %s241 = sphi 0, %s240
      %s255 = sphi 0, %s241
      %s259 = sphi 0, %s259
      %s261 = sphi 0, %s259
      %s262 = sphi 0, %s261
      %s276 = sphi 0, %s262
      %s280 = sphi 0, %s280
      %s282 = sphi 0, %s280
      %s283 = sphi 0, %s282
      %s297 = sphi 0, %s283
      %s301 = sphi 0, %s301
      %s303 = sphi 0, %s301
      %s304 = sphi 0, %s303
      %s318 = sphi 0, %s304
      %s322 = sphi 0, %s322
      %s324 = sphi 0, %s322
      %s325 = sphi 0, %s324
      %s339 = sphi 0, %s325
      %s343 = sphi 0, %s343
      %s345 = sphi 0, %s343
      %s346 = sphi 0, %s345
      %s360 = sphi 0, %s346
      %s364 = sphi 0, %s364
      %s366 = sphi 0, %s364
      %s367 = sphi 0, %s366
      %s381 = sphi 0, %s367
      %s385 = sphi 0, %s385
      %s387 = sphi 0, %s385
      %s388 = sphi 0, %s387
      %s402 = sphi 0, %s388
      %s406 = sphi 0, %s406
      %s408 = sphi 0, %s406
      %s409 = sphi 0, %s408
      %s423 = sphi 0, %s409
      %s427 = sphi 0, %s427
      %s429 = sphi 0, %s427
      %s430 = sphi 0, %s429
      %s444 = sphi 0, %s430
      %s448 = sphi 0, %s448
      %s450 = sphi 0, %s448
      %s451 = sphi 0, %s450
      %s465 = sphi 0, %s451
      %s469 = sphi 0, %s469
      %s471 = sphi 0, %s469
      %s472 = sphi 0, %s471
      %s486 = sphi 0, %s472
      %s490 = sphi 0, %s490
      %s492 = sphi 0, %s490
      %s493 = sphi 0, %s492
      %s507 = sphi 0, %s493
      %s511 = sphi 0, %s511
      %s513 = sphi 0, %s511
      %s514 = sphi 0, %s513
      %s528 = sphi 0, %s514
      %s534 = sphi 0, %s536
      %s537 = sphi 0, %s534
      %s538 = sphi 0, %s537
      %s554 = sphi 0, %s538
    $region4: #{tpu_custom_call.1} parent=1 // loop_header_branch
      %39 = sbr.rel (%p37) target = $region8
    $region5: #{tpu_custom_call.1} parent=1 // loop_body
      %s41 = ssub.s32 %s36, 1
      %s42 = ssub.s32 %s36, 2
      %s43 = sadd.s32 %s36, 1
      %s44 = ssub.s32 %s36, %s43
      %p45 = scmp.eq.s32.totalorder %s44, 0
      %s47 = sadd.s32 %s46, 1
      %s48 = scalar_select %p45, %s46, %s47
      %p51 = pneg %p45
      %p52 = scmp.eq.s32.totalorder %s36, 1
      %p53 = por %p51, %p52
      %p54 = scmp.ne.s32.totalorder %s46, %s49
      %p55 = scmp.eq.s32.totalorder %s36, 0
      %p56 = por %p54, %p55
      %p57 = scmp.ne.s32.totalorder %s46, %s49
      %p58 = scmp.eq.s32.totalorder %s41, 1
      %p59 = por %p57, %p58
      %p60 = scmp.ne.s32.totalorder %s49, %s50
      %p61 = scmp.eq.s32.totalorder %s41, 0
      %p62 = por %p60, %p61
      %p63 = scmp.ne.s32.totalorder %s49, %s50
      %p64 = scmp.eq.s32.totalorder %s42, 1
      %p65 = por %p63, %p64
      %p67 = scmp.ne.s32.totalorder %s50, %s66
      %p68 = scmp.eq.s32.totalorder %s42, 0
      %p69 = por %p67, %p68
      %s71 = sadd.s32 %s70, 1
      %p74 = scmp.eq.s32.totalorder %s36, 1
      %p75 = scmp.ne.s32.totalorder %s70, %s72
      %p76 = scmp.eq.s32.totalorder %s36, 0
      %p77 = por %p75, %p76
      %p78 = scmp.ne.s32.totalorder %s70, %s72
      %p79 = scmp.eq.s32.totalorder %s41, 1
      %p80 = por %p78, %p79
      %p81 = scmp.ne.s32.totalorder %s72, %s73
      %p82 = scmp.eq.s32.totalorder %s41, 0
      %p83 = por %p81, %p82
      %p84 = scmp.ne.s32.totalorder %s72, %s73
      %p85 = scmp.eq.s32.totalorder %s42, 1
      %p86 = por %p84, %p85
      %p88 = scmp.ne.s32.totalorder %s73, %s87
      %p89 = scmp.eq.s32.totalorder %s42, 0
      %p90 = por %p88, %p89
      %s92 = sadd.s32 %s91, 1
      %p95 = scmp.eq.s32.totalorder %s36, 1
      %p96 = scmp.ne.s32.totalorder %s91, %s93
      %p97 = scmp.eq.s32.totalorder %s36, 0
      %p98 = por %p96, %p97
      %p99 = scmp.ne.s32.totalorder %s91, %s93
      %p100 = scmp.eq.s32.totalorder %s41, 1
      %p101 = por %p99, %p100
      %p102 = scmp.ne.s32.totalorder %s93, %s94
      %p103 = scmp.eq.s32.totalorder %s41, 0
      %p104 = por %p102, %p103
      %p105 = scmp.ne.s32.totalorder %s93, %s94
      %p106 = scmp.eq.s32.totalorder %s42, 1
      %p107 = por %p105, %p106
      %p109 = scmp.ne.s32.totalorder %s94, %s108
      %p110 = scmp.eq.s32.totalorder %s42, 0
      %p111 = por %p109, %p110
      %s113 = sadd.s32 %s112, 1
      %p116 = scmp.eq.s32.totalorder %s36, 1
      %p117 = scmp.ne.s32.totalorder %s112, %s114
      %p118 = scmp.eq.s32.totalorder %s36, 0
      %p119 = por %p117, %p118
      %p120 = scmp.ne.s32.totalorder %s112, %s114
      %p121 = scmp.eq.s32.totalorder %s41, 1
      %p122 = por %p120, %p121
      %p123 = scmp.ne.s32.totalorder %s114, %s115
      %p124 = scmp.eq.s32.totalorder %s41, 0
      %p125 = por %p123, %p124
      %p126 = scmp.ne.s32.totalorder %s114, %s115
      %p127 = scmp.eq.s32.totalorder %s42, 1
      %p128 = por %p126, %p127
      %p130 = scmp.ne.s32.totalorder %s115, %s129
      %p131 = scmp.eq.s32.totalorder %s42, 0
      %p132 = por %p130, %p131
      %s134 = sadd.s32 %s133, 1
      %p137 = scmp.eq.s32.totalorder %s36, 1
      %p138 = scmp.ne.s32.totalorder %s133, %s135
      %p139 = scmp.eq.s32.totalorder %s36, 0
      %p140 = por %p138, %p139
      %p141 = scmp.ne.s32.totalorder %s133, %s135
      %p142 = scmp.eq.s32.totalorder %s41, 1
      %p143 = por %p141, %p142
      %p144 = scmp.ne.s32.totalorder %s135, %s136
      %p145 = scmp.eq.s32.totalorder %s41, 0
      %p146 = por %p144, %p145
      %p147 = scmp.ne.s32.totalorder %s135, %s136
      %p148 = scmp.eq.s32.totalorder %s42, 1
      %p149 = por %p147, %p148
      %p151 = scmp.ne.s32.totalorder %s136, %s150
      %p152 = scmp.eq.s32.totalorder %s42, 0
      %p153 = por %p151, %p152
      %s155 = sadd.s32 %s154, 1
      %p158 = scmp.eq.s32.totalorder %s36, 1
      %p159 = scmp.ne.s32.totalorder %s154, %s156
      %p160 = scmp.eq.s32.totalorder %s36, 0
      %p161 = por %p159, %p160
      %p162 = scmp.ne.s32.totalorder %s154, %s156
      %p163 = scmp.eq.s32.totalorder %s41, 1
      %p164 = por %p162, %p163
      %p165 = scmp.ne.s32.totalorder %s156, %s157
      %p166 = scmp.eq.s32.totalorder %s41, 0
      %p167 = por %p165, %p166
      %p168 = scmp.ne.s32.totalorder %s156, %s157
      %p169 = scmp.eq.s32.totalorder %s42, 1
      %p170 = por %p168, %p169
      %p172 = scmp.ne.s32.totalorder %s157, %s171
      %p173 = scmp.eq.s32.totalorder %s42, 0
      %p174 = por %p172, %p173
      %s176 = sadd.s32 %s175, 1
      %p179 = scmp.eq.s32.totalorder %s36, 1
      %p180 = scmp.ne.s32.totalorder %s175, %s177
      %p181 = scmp.eq.s32.totalorder %s36, 0
      %p182 = por %p180, %p181
      %p183 = scmp.ne.s32.totalorder %s175, %s177
      %p184 = scmp.eq.s32.totalorder %s41, 1
      %p185 = por %p183, %p184
      %p186 = scmp.ne.s32.totalorder %s177, %s178
      %p187 = scmp.eq.s32.totalorder %s41, 0
      %p188 = por %p186, %p187
      %p189 = scmp.ne.s32.totalorder %s177, %s178
      %p190 = scmp.eq.s32.totalorder %s42, 1
      %p191 = por %p189, %p190
      %p193 = scmp.ne.s32.totalorder %s178, %s192
      %p194 = scmp.eq.s32.totalorder %s42, 0
      %p195 = por %p193, %p194
      %s197 = sadd.s32 %s196, 1
      %p200 = scmp.eq.s32.totalorder %s36, 1
      %p201 = scmp.ne.s32.totalorder %s196, %s198
      %p202 = scmp.eq.s32.totalorder %s36, 0
      %p203 = por %p201, %p202
      %p204 = scmp.ne.s32.totalorder %s196, %s198
      %p205 = scmp.eq.s32.totalorder %s41, 1
      %p206 = por %p204, %p205
      %p207 = scmp.ne.s32.totalorder %s198, %s199
      %p208 = scmp.eq.s32.totalorder %s41, 0
      %p209 = por %p207, %p208
      %p210 = scmp.ne.s32.totalorder %s198, %s199
      %p211 = scmp.eq.s32.totalorder %s42, 1
      %p212 = por %p210, %p211
      %p214 = scmp.ne.s32.totalorder %s199, %s213
      %p215 = scmp.eq.s32.totalorder %s42, 0
      %p216 = por %p214, %p215
      %s218 = sadd.s32 %s217, 1
      %p221 = scmp.eq.s32.totalorder %s36, 1
      %p222 = scmp.ne.s32.totalorder %s217, %s219
      %p223 = scmp.eq.s32.totalorder %s36, 0
      %p224 = por %p222, %p223
      %p225 = scmp.ne.s32.totalorder %s217, %s219
      %p226 = scmp.eq.s32.totalorder %s41, 1
      %p227 = por %p225, %p226
      %p228 = scmp.ne.s32.totalorder %s219, %s220
      %p229 = scmp.eq.s32.totalorder %s41, 0
      %p230 = por %p228, %p229
      %p231 = scmp.ne.s32.totalorder %s219, %s220
      %p232 = scmp.eq.s32.totalorder %s42, 1
      %p233 = por %p231, %p232
      %p235 = scmp.ne.s32.totalorder %s220, %s234
      %p236 = scmp.eq.s32.totalorder %s42, 0
      %p237 = por %p235, %p236
      %s239 = sadd.s32 %s238, 1
      %p242 = scmp.eq.s32.totalorder %s36, 1
      %p243 = scmp.ne.s32.totalorder %s238, %s240
      %p244 = scmp.eq.s32.totalorder %s36, 0
      %p245 = por %p243, %p244
      %p246 = scmp.ne.s32.totalorder %s238, %s240
      %p247 = scmp.eq.s32.totalorder %s41, 1
      %p248 = por %p246, %p247
      %p249 = scmp.ne.s32.totalorder %s240, %s241
      %p250 = scmp.eq.s32.totalorder %s41, 0
      %p251 = por %p249, %p250
      %p252 = scmp.ne.s32.totalorder %s240, %s241
      %p253 = scmp.eq.s32.totalorder %s42, 1
      %p254 = por %p252, %p253
      %p256 = scmp.ne.s32.totalorder %s241, %s255
      %p257 = scmp.eq.s32.totalorder %s42, 0
      %p258 = por %p256, %p257
      %s260 = sadd.s32 %s259, 1
      %p263 = scmp.eq.s32.totalorder %s36, 1
      %p264 = scmp.ne.s32.totalorder %s259, %s261
      %p265 = scmp.eq.s32.totalorder %s36, 0
      %p266 = por %p264, %p265
      %p267 = scmp.ne.s32.totalorder %s259, %s261
      %p268 = scmp.eq.s32.totalorder %s41, 1
      %p269 = por %p267, %p268
      %p270 = scmp.ne.s32.totalorder %s261, %s262
      %p271 = scmp.eq.s32.totalorder %s41, 0
      %p272 = por %p270, %p271
      %p273 = scmp.ne.s32.totalorder %s261, %s262
      %p274 = scmp.eq.s32.totalorder %s42, 1
      %p275 = por %p273, %p274
      %p277 = scmp.ne.s32.totalorder %s262, %s276
      %p278 = scmp.eq.s32.totalorder %s42, 0
      %p279 = por %p277, %p278
      %s281 = sadd.s32 %s280, 1
      %p284 = scmp.eq.s32.totalorder %s36, 1
      %p285 = scmp.ne.s32.totalorder %s280, %s282
      %p286 = scmp.eq.s32.totalorder %s36, 0
      %p287 = por %p285, %p286
      %p288 = scmp.ne.s32.totalorder %s280, %s282
      %p289 = scmp.eq.s32.totalorder %s41, 1
      %p290 = por %p288, %p289
      %p291 = scmp.ne.s32.totalorder %s282, %s283
      %p292 = scmp.eq.s32.totalorder %s41, 0
      %p293 = por %p291, %p292
      %p294 = scmp.ne.s32.totalorder %s282, %s283
      %p295 = scmp.eq.s32.totalorder %s42, 1
      %p296 = por %p294, %p295
      %p298 = scmp.ne.s32.totalorder %s283, %s297
      %p299 = scmp.eq.s32.totalorder %s42, 0
      %p300 = por %p298, %p299
      %s302 = sadd.s32 %s301, 1
      %p305 = scmp.eq.s32.totalorder %s36, 1
      %p306 = scmp.ne.s32.totalorder %s301, %s303
      %p307 = scmp.eq.s32.totalorder %s36, 0
      %p308 = por %p306, %p307
      %p309 = scmp.ne.s32.totalorder %s301, %s303
      %p310 = scmp.eq.s32.totalorder %s41, 1
      %p311 = por %p309, %p310
      %p312 = scmp.ne.s32.totalorder %s303, %s304
      %p313 = scmp.eq.s32.totalorder %s41, 0
      %p314 = por %p312, %p313
      %p315 = scmp.ne.s32.totalorder %s303, %s304
      %p316 = scmp.eq.s32.totalorder %s42, 1
      %p317 = por %p315, %p316
      %p319 = scmp.ne.s32.totalorder %s304, %s318
      %p320 = scmp.eq.s32.totalorder %s42, 0
      %p321 = por %p319, %p320
      %s323 = sadd.s32 %s322, 1
      %p326 = scmp.eq.s32.totalorder %s36, 1
      %p327 = scmp.ne.s32.totalorder %s322, %s324
      %p328 = scmp.eq.s32.totalorder %s36, 0
      %p329 = por %p327, %p328
      %p330 = scmp.ne.s32.totalorder %s322, %s324
      %p331 = scmp.eq.s32.totalorder %s41, 1
      %p332 = por %p330, %p331
      %p333 = scmp.ne.s32.totalorder %s324, %s325
      %p334 = scmp.eq.s32.totalorder %s41, 0
      %p335 = por %p333, %p334
      %p336 = scmp.ne.s32.totalorder %s324, %s325
      %p337 = scmp.eq.s32.totalorder %s42, 1
      %p338 = por %p336, %p337
      %p340 = scmp.ne.s32.totalorder %s325, %s339
      %p341 = scmp.eq.s32.totalorder %s42, 0
      %p342 = por %p340, %p341
      %s344 = sadd.s32 %s343, 1
      %p347 = scmp.eq.s32.totalorder %s36, 1
      %p348 = scmp.ne.s32.totalorder %s343, %s345
      %p349 = scmp.eq.s32.totalorder %s36, 0
      %p350 = por %p348, %p349
      %p351 = scmp.ne.s32.totalorder %s343, %s345
      %p352 = scmp.eq.s32.totalorder %s41, 1
      %p353 = por %p351, %p352
      %p354 = scmp.ne.s32.totalorder %s345, %s346
      %p355 = scmp.eq.s32.totalorder %s41, 0
      %p356 = por %p354, %p355
      %p357 = scmp.ne.s32.totalorder %s345, %s346
      %p358 = scmp.eq.s32.totalorder %s42, 1
      %p359 = por %p357, %p358
      %p361 = scmp.ne.s32.totalorder %s346, %s360
      %p362 = scmp.eq.s32.totalorder %s42, 0
      %p363 = por %p361, %p362
      %s365 = sadd.s32 %s364, 1
      %p368 = scmp.eq.s32.totalorder %s36, 1
      %p369 = scmp.ne.s32.totalorder %s364, %s366
      %p370 = scmp.eq.s32.totalorder %s36, 0
      %p371 = por %p369, %p370
      %p372 = scmp.ne.s32.totalorder %s364, %s366
      %p373 = scmp.eq.s32.totalorder %s41, 1
      %p374 = por %p372, %p373
      %p375 = scmp.ne.s32.totalorder %s366, %s367
      %p376 = scmp.eq.s32.totalorder %s41, 0
      %p377 = por %p375, %p376
      %p378 = scmp.ne.s32.totalorder %s366, %s367
      %p379 = scmp.eq.s32.totalorder %s42, 1
      %p380 = por %p378, %p379
      %p382 = scmp.ne.s32.totalorder %s367, %s381
      %p383 = scmp.eq.s32.totalorder %s42, 0
      %p384 = por %p382, %p383
      %s386 = sadd.s32 %s385, 1
      %p389 = scmp.eq.s32.totalorder %s36, 1
      %p390 = scmp.ne.s32.totalorder %s385, %s387
      %p391 = scmp.eq.s32.totalorder %s36, 0
      %p392 = por %p390, %p391
      %p393 = scmp.ne.s32.totalorder %s385, %s387
      %p394 = scmp.eq.s32.totalorder %s41, 1
      %p395 = por %p393, %p394
      %p396 = scmp.ne.s32.totalorder %s387, %s388
      %p397 = scmp.eq.s32.totalorder %s41, 0
      %p398 = por %p396, %p397
      %p399 = scmp.ne.s32.totalorder %s387, %s388
      %p400 = scmp.eq.s32.totalorder %s42, 1
      %p401 = por %p399, %p400
      %p403 = scmp.ne.s32.totalorder %s388, %s402
      %p404 = scmp.eq.s32.totalorder %s42, 0
      %p405 = por %p403, %p404
      %s407 = sadd.s32 %s406, 1
      %p410 = scmp.eq.s32.totalorder %s36, 1
      %p411 = scmp.ne.s32.totalorder %s406, %s408
      %p412 = scmp.eq.s32.totalorder %s36, 0
      %p413 = por %p411, %p412
      %p414 = scmp.ne.s32.totalorder %s406, %s408
      %p415 = scmp.eq.s32.totalorder %s41, 1
      %p416 = por %p414, %p415
      %p417 = scmp.ne.s32.totalorder %s408, %s409
      %p418 = scmp.eq.s32.totalorder %s41, 0
      %p419 = por %p417, %p418
      %p420 = scmp.ne.s32.totalorder %s408, %s409
      %p421 = scmp.eq.s32.totalorder %s42, 1
      %p422 = por %p420, %p421
      %p424 = scmp.ne.s32.totalorder %s409, %s423
      %p425 = scmp.eq.s32.totalorder %s42, 0
      %p426 = por %p424, %p425
      %s428 = sadd.s32 %s427, 1
      %p431 = scmp.eq.s32.totalorder %s36, 1
      %p432 = scmp.ne.s32.totalorder %s427, %s429
      %p433 = scmp.eq.s32.totalorder %s36, 0
      %p434 = por %p432, %p433
      %p435 = scmp.ne.s32.totalorder %s427, %s429
      %p436 = scmp.eq.s32.totalorder %s41, 1
      %p437 = por %p435, %p436
      %p438 = scmp.ne.s32.totalorder %s429, %s430
      %p439 = scmp.eq.s32.totalorder %s41, 0
      %p440 = por %p438, %p439
      %p441 = scmp.ne.s32.totalorder %s429, %s430
      %p442 = scmp.eq.s32.totalorder %s42, 1
      %p443 = por %p441, %p442
      %p445 = scmp.ne.s32.totalorder %s430, %s444
      %p446 = scmp.eq.s32.totalorder %s42, 0
      %p447 = por %p445, %p446
      %s449 = sadd.s32 %s448, 1
      %p452 = scmp.eq.s32.totalorder %s36, 1
      %p453 = scmp.ne.s32.totalorder %s448, %s450
      %p454 = scmp.eq.s32.totalorder %s36, 0
      %p455 = por %p453, %p454
      %p456 = scmp.ne.s32.totalorder %s448, %s450
      %p457 = scmp.eq.s32.totalorder %s41, 1
      %p458 = por %p456, %p457
      %p459 = scmp.ne.s32.totalorder %s450, %s451
      %p460 = scmp.eq.s32.totalorder %s41, 0
      %p461 = por %p459, %p460
      %p462 = scmp.ne.s32.totalorder %s450, %s451
      %p463 = scmp.eq.s32.totalorder %s42, 1
      %p464 = por %p462, %p463
      %p466 = scmp.ne.s32.totalorder %s451, %s465
      %p467 = scmp.eq.s32.totalorder %s42, 0
      %p468 = por %p466, %p467
      %s470 = sadd.s32 %s469, 1
      %p473 = scmp.eq.s32.totalorder %s36, 1
      %p474 = scmp.ne.s32.totalorder %s469, %s471
      %p475 = scmp.eq.s32.totalorder %s36, 0
      %p476 = por %p474, %p475
      %p477 = scmp.ne.s32.totalorder %s469, %s471
      %p478 = scmp.eq.s32.totalorder %s41, 1
      %p479 = por %p477, %p478
      %p480 = scmp.ne.s32.totalorder %s471, %s472
      %p481 = scmp.eq.s32.totalorder %s41, 0
      %p482 = por %p480, %p481
      %p483 = scmp.ne.s32.totalorder %s471, %s472
      %p484 = scmp.eq.s32.totalorder %s42, 1
      %p485 = por %p483, %p484
      %p487 = scmp.ne.s32.totalorder %s472, %s486
      %p488 = scmp.eq.s32.totalorder %s42, 0
      %p489 = por %p487, %p488
      %s491 = sadd.s32 %s490, 1
      %p494 = scmp.eq.s32.totalorder %s36, 1
      %p495 = scmp.ne.s32.totalorder %s490, %s492
      %p496 = scmp.eq.s32.totalorder %s36, 0
      %p497 = por %p495, %p496
      %p498 = scmp.ne.s32.totalorder %s490, %s492
      %p499 = scmp.eq.s32.totalorder %s41, 1
      %p500 = por %p498, %p499
      %p501 = scmp.ne.s32.totalorder %s492, %s493
      %p502 = scmp.eq.s32.totalorder %s41, 0
      %p503 = por %p501, %p502
      %p504 = scmp.ne.s32.totalorder %s492, %s493
      %p505 = scmp.eq.s32.totalorder %s42, 1
      %p506 = por %p504, %p505
      %p508 = scmp.ne.s32.totalorder %s493, %s507
      %p509 = scmp.eq.s32.totalorder %s42, 0
      %p510 = por %p508, %p509
      %s512 = sadd.s32 %s511, 1
      %p515 = scmp.eq.s32.totalorder %s36, 1
      %p516 = scmp.ne.s32.totalorder %s511, %s513
      %p517 = scmp.eq.s32.totalorder %s36, 0
      %p518 = por %p516, %p517
      %p519 = scmp.ne.s32.totalorder %s511, %s513
      %p520 = scmp.eq.s32.totalorder %s41, 1
      %p521 = por %p519, %p520
      %p522 = scmp.ne.s32.totalorder %s513, %s514
      %p523 = scmp.eq.s32.totalorder %s41, 0
      %p524 = por %p522, %p523
      %p525 = scmp.ne.s32.totalorder %s513, %s514
      %p526 = scmp.eq.s32.totalorder %s42, 1
      %p527 = por %p525, %p526
      %p529 = scmp.ne.s32.totalorder %s514, %s528
      %p530 = scmp.eq.s32.totalorder %s42, 0
      %p531 = por %p529, %p530
      %s532 = ssub.s32 %s36, %s43
      %p533 = scmp.eq.s32.totalorder %s532, 0
      %s535 = sadd.s32 %s534, 1
      %s536 = scalar_select %p533, %s534, %s535
      %p539 = pneg %p533
      %p540 = scmp.eq.s32.totalorder %s36, 1
      %p541 = por %p539, %p540
      %p542 = scmp.ne.s32.totalorder %s534, %s537
      %p543 = scmp.eq.s32.totalorder %s36, 0
      %p544 = por %p542, %p543
      %p545 = scmp.ne.s32.totalorder %s534, %s537
      %p546 = scmp.eq.s32.totalorder %s41, 1
      %p547 = por %p545, %p546
      %p548 = scmp.ne.s32.totalorder %s537, %s538
      %p549 = scmp.eq.s32.totalorder %s41, 0
      %p550 = por %p548, %p549
      %p551 = scmp.ne.s32.totalorder %s537, %s538
      %p552 = scmp.eq.s32.totalorder %s42, 1
      %p553 = por %p551, %p552
      %p555 = scmp.ne.s32.totalorder %s538, %s554
      %p556 = scmp.eq.s32.totalorder %s42, 0
      %p557 = por %p555, %p556
      %p558 = scmp.le.s32.totalorder 1, %s36
      %p559 = scmp.lt.s32.totalorder %s36, 3
      %p560 = pnand %p558, %p559
      %p561 = pneg %p560
      // Predicated region
      $region9: #{tpu_custom_call.1} parent=5 // pred_check
        _
      $region10: #{tpu_custom_call.1} parent=5 // pred_check_branch
        %563 = sbr.rel (%p560) target = $region12
      $region11: #{tpu_custom_call.1} parent=5 // pred_region
        %s564 = ssub.s32 %s36, 1
        // Predicated region
        $region13: #{tpu_custom_call.1} parent=11 // pred_check
          %p565 = pneg %p83
        $region14: #{tpu_custom_call.1} parent=11 // pred_check_branch
          %567 = sbr.rel (%p565) target = $region16
        $region15: #{tpu_custom_call.1} parent=11 // pred_region
          _
        $region16: #{tpu_custom_call.1} parent=11 // pred_fallthru
          _
        // Predicated region
        $region17: #{tpu_custom_call.1} parent=11 // pred_check
          %p568 = pneg %p104
        $region18: #{tpu_custom_call.1} parent=11 // pred_check_branch
          %570 = sbr.rel (%p568) target = $region20
        $region19: #{tpu_custom_call.1} parent=11 // pred_region
          _
        $region20: #{tpu_custom_call.1} parent=11 // pred_fallthru
          _
        // Predicated region
        $region21: #{tpu_custom_call.1} parent=11 // pred_check
          %p571 = pneg %p125
        $region22: #{tpu_custom_call.1} parent=11 // pred_check_branch
          %573 = sbr.rel (%p571) target = $region24
        $region23: #{tpu_custom_call.1} parent=11 // pred_region
          %s575 = ssub.s32 64, 64
          %576 = vsyncadd [#allocation4], %s575
          %s578 = sshll.u32 [#allocation3], 4
          %s579 = int_to_ptr.vmem [resolvable:$true] %s578
          %581 = dma.hbm_to_vmem [thread:$0]  %s3, 64, %s579, [#allocation4]
        $region24: #{tpu_custom_call.1} parent=11 // pred_fallthru
          _
        // Predicated region
        $region25: #{tpu_custom_call.1} parent=11 // pred_check
          %p582 = pneg %p146
        $region26: #{tpu_custom_call.1} parent=11 // pred_check_branch
          %584 = sbr.rel (%p582) target = $region28
        $region27: #{tpu_custom_call.1} parent=11 // pred_region
          %s586 = ssub.s32 64, 64
          %587 = vsyncadd [#allocation7], %s586
          %s589 = sshll.u32 [#allocation6], 4
          %s590 = int_to_ptr.vmem [resolvable:$true] %s589
          %592 = dma.hbm_to_vmem [thread:$0]  %s4, 64, %s590, [#allocation7]
        $region28: #{tpu_custom_call.1} parent=11 // pred_fallthru
          _
        // Predicated region
        $region29: #{tpu_custom_call.1} parent=11 // pred_check
          %p593 = pneg %p167
        $region30: #{tpu_custom_call.1} parent=11 // pred_check_branch
          %595 = sbr.rel (%p593) target = $region32
        $region31: #{tpu_custom_call.1} parent=11 // pred_region
          %s597 = ssub.s32 64, 64
          %598 = vsyncadd [#allocation7], %s597
          %s600 = sshll.u32 [#allocation8], 4
          %s601 = int_to_ptr.vmem [resolvable:$true] %s600
          %603 = dma.hbm_to_vmem [thread:$0]  %s5, 64, %s601, [#allocation7]
        $region32: #{tpu_custom_call.1} parent=11 // pred_fallthru
          _
        // Predicated region
        $region33: #{tpu_custom_call.1} parent=11 // pred_check
          %p604 = pneg %p188
        $region34: #{tpu_custom_call.1} parent=11 // pred_check_branch
          %606 = sbr.rel (%p604) target = $region36
        $region35: #{tpu_custom_call.1} parent=11 // pred_region
          %s608 = ssub.s32 64, 64
          %609 = vsyncadd [#allocation10], %s608
          %s611 = sshll.u32 [#allocation9], 4
          %s612 = int_to_ptr.vmem [resolvable:$true] %s611
          %614 = dma.hbm_to_vmem [thread:$0]  %s6, 64, %s612, [#allocation10]
        $region36: #{tpu_custom_call.1} parent=11 // pred_fallthru
          _
        // Predicated region
        $region37: #{tpu_custom_call.1} parent=11 // pred_check
          %p615 = pneg %p209
        $region38: #{tpu_custom_call.1} parent=11 // pred_check_branch
          %617 = sbr.rel (%p615) target = $region40
        $region39: #{tpu_custom_call.1} parent=11 // pred_region
          %s619 = ssub.s32 64, 64
          %620 = vsyncadd [#allocation10], %s619
          %s622 = sshll.u32 [#allocation11], 4
          %s623 = int_to_ptr.vmem [resolvable:$true] %s622
          %625 = dma.hbm_to_vmem [thread:$0]  %s7, 64, %s623, [#allocation10]
        $region40: #{tpu_custom_call.1} parent=11 // pred_fallthru
          _
        // Predicated region
        $region41: #{tpu_custom_call.1} parent=11 // pred_check
          %p626 = pneg %p230
        $region42: #{tpu_custom_call.1} parent=11 // pred_check_branch
          %628 = sbr.rel (%p626) target = $region44
        $region43: #{tpu_custom_call.1} parent=11 // pred_region
          %s630 = ssub.s32 64, 64
          %631 = vsyncadd [#allocation13], %s630
          %s633 = sshll.u32 [#allocation12], 4
          %s634 = int_to_ptr.vmem [resolvable:$true] %s633
          %636 = dma.hbm_to_vmem [thread:$0]  %s8, 64, %s634, [#allocation13]
        $region44: #{tpu_custom_call.1} parent=11 // pred_fallthru
          _
        // Predicated region
        $region45: #{tpu_custom_call.1} parent=11 // pred_check
          %p637 = pneg %p251
        $region46: #{tpu_custom_call.1} parent=11 // pred_check_branch
          %639 = sbr.rel (%p637) target = $region48
        $region47: #{tpu_custom_call.1} parent=11 // pred_region
          %s641 = ssub.s32 64, 64
          %642 = vsyncadd [#allocation13], %s641
          %s644 = sshll.u32 [#allocation14], 4
          %s645 = int_to_ptr.vmem [resolvable:$true] %s644
          %647 = dma.hbm_to_vmem [thread:$0]  %s9, 64, %s645, [#allocation13]
        $region48: #{tpu_custom_call.1} parent=11 // pred_fallthru
          _
        // Predicated region
        $region49: #{tpu_custom_call.1} parent=11 // pred_check
          %p648 = pneg %p272
        $region50: #{tpu_custom_call.1} parent=11 // pred_check_branch
          %650 = sbr.rel (%p648) target = $region52
        $region51: #{tpu_custom_call.1} parent=11 // pred_region
          _
        $region52: #{tpu_custom_call.1} parent=11 // pred_fallthru
          _
        // Predicated region
        $region53: #{tpu_custom_call.1} parent=11 // pred_check
          %p651 = pneg %p293
        $region54: #{tpu_custom_call.1} parent=11 // pred_check_branch
          %653 = sbr.rel (%p651) target = $region56
        $region55: #{tpu_custom_call.1} parent=11 // pred_region
          _
        $region56: #{tpu_custom_call.1} parent=11 // pred_fallthru
          _
        // Predicated region
        $region57: #{tpu_custom_call.1} parent=11 // pred_check
          %p654 = pneg %p314
        $region58: #{tpu_custom_call.1} parent=11 // pred_check_branch
          %656 = sbr.rel (%p654) target = $region60
        $region59: #{tpu_custom_call.1} parent=11 // pred_region
          _
        $region60: #{tpu_custom_call.1} parent=11 // pred_fallthru
          _
        // Predicated region
        $region61: #{tpu_custom_call.1} parent=11 // pred_check
          %p657 = pneg %p335
        $region62: #{tpu_custom_call.1} parent=11 // pred_check_branch
          %659 = sbr.rel (%p657) target = $region64
        $region63: #{tpu_custom_call.1} parent=11 // pred_region
          _
        $region64: #{tpu_custom_call.1} parent=11 // pred_fallthru
          _
        // Predicated region
        $region65: #{tpu_custom_call.1} parent=11 // pred_check
          %p660 = pneg %p356
        $region66: #{tpu_custom_call.1} parent=11 // pred_check_branch
          %662 = sbr.rel (%p660) target = $region68
        $region67: #{tpu_custom_call.1} parent=11 // pred_region
          _
        $region68: #{tpu_custom_call.1} parent=11 // pred_fallthru
          _
        // Predicated region
        $region69: #{tpu_custom_call.1} parent=11 // pred_check
          %p663 = pneg %p377
        $region70: #{tpu_custom_call.1} parent=11 // pred_check_branch
          %665 = sbr.rel (%p663) target = $region72
        $region71: #{tpu_custom_call.1} parent=11 // pred_region
          _
        $region72: #{tpu_custom_call.1} parent=11 // pred_fallthru
          _
        // Predicated region
        $region73: #{tpu_custom_call.1} parent=11 // pred_check
          %p666 = pneg %p398
        $region74: #{tpu_custom_call.1} parent=11 // pred_check_branch
          %668 = sbr.rel (%p666) target = $region76
        $region75: #{tpu_custom_call.1} parent=11 // pred_region
          _
        $region76: #{tpu_custom_call.1} parent=11 // pred_fallthru
          _
        // Predicated region
        $region77: #{tpu_custom_call.1} parent=11 // pred_check
          %p669 = pneg %p419
        $region78: #{tpu_custom_call.1} parent=11 // pred_check_branch
          %671 = sbr.rel (%p669) target = $region80
        $region79: #{tpu_custom_call.1} parent=11 // pred_region
          _
        $region80: #{tpu_custom_call.1} parent=11 // pred_fallthru
          _
        // Predicated region
        $region81: #{tpu_custom_call.1} parent=11 // pred_check
          %p672 = pneg %p440
        $region82: #{tpu_custom_call.1} parent=11 // pred_check_branch
          %674 = sbr.rel (%p672) target = $region84
        $region83: #{tpu_custom_call.1} parent=11 // pred_region
          _
        $region84: #{tpu_custom_call.1} parent=11 // pred_fallthru
          _
        // Predicated region
        $region85: #{tpu_custom_call.1} parent=11 // pred_check
          %p675 = pneg %p461
        $region86: #{tpu_custom_call.1} parent=11 // pred_check_branch
          %677 = sbr.rel (%p675) target = $region88
        $region87: #{tpu_custom_call.1} parent=11 // pred_region
          _
        $region88: #{tpu_custom_call.1} parent=11 // pred_fallthru
          _
        // Predicated region
        $region89: #{tpu_custom_call.1} parent=11 // pred_check
          %p678 = pneg %p482
        $region90: #{tpu_custom_call.1} parent=11 // pred_check_branch
          %680 = sbr.rel (%p678) target = $region92
        $region91: #{tpu_custom_call.1} parent=11 // pred_region
          _
        $region92: #{tpu_custom_call.1} parent=11 // pred_fallthru
          _
        // Predicated region
        $region93: #{tpu_custom_call.1} parent=11 // pred_check
          %p681 = pneg %p503
        $region94: #{tpu_custom_call.1} parent=11 // pred_check_branch
          %683 = sbr.rel (%p681) target = $region96
        $region95: #{tpu_custom_call.1} parent=11 // pred_region
          _
        $region96: #{tpu_custom_call.1} parent=11 // pred_fallthru
          _
        // Predicated region
        $region97: #{tpu_custom_call.1} parent=11 // pred_check
          %p684 = pneg %p524
        $region98: #{tpu_custom_call.1} parent=11 // pred_check_branch
          %686 = sbr.rel (%p684) target = $region100
        $region99: #{tpu_custom_call.1} parent=11 // pred_region
          _
        $region100: #{tpu_custom_call.1} parent=11 // pred_fallthru
          _
      $region12: #{tpu_custom_call.1} parent=5 // pred_fallthru
        _
      %p687 = scmp.lt.s32.totalorder %s36, 2
      // Predicated region
      $region101: #{tpu_custom_call.1} parent=5 // pred_check
        %p688 = pneg %p687
      $region102: #{tpu_custom_call.1} parent=5 // pred_check_branch
        %690 = sbr.rel (%p688) target = $region104
      $region103: #{tpu_custom_call.1} parent=5 // pred_region
        // Predicated region
        $region105: #{tpu_custom_call.1} parent=103 // pred_check
          %p691 = pneg %p56
        $region106: #{tpu_custom_call.1} parent=103 // pred_check_branch
          %693 = sbr.rel (%p691) target = $region108
        $region107: #{tpu_custom_call.1} parent=103 // pred_region
          %p694 = scmp.lt.s32.totalorder %s36, 1
          %s695 = scalar_select %p694, %s36, 1
          %s696 = smul.addr %s695, 8
          %s697 = scalar_lea.vmem %s0, %s696
        $region108: #{tpu_custom_call.1} parent=103 // pred_fallthru
          _
      $region104: #{tpu_custom_call.1} parent=5 // pred_fallthru
        _
      %p698 = scmp.le.s32.totalorder 1, %s36
      %p699 = scmp.lt.s32.totalorder %s36, 3
      %p700 = pnand %p698, %p699
      %p701 = pneg %p700
      // Predicated region
      $region109: #{tpu_custom_call.1} parent=5 // pred_check
        _
      $region110: #{tpu_custom_call.1} parent=5 // pred_check_branch
        %703 = sbr.rel (%p700) target = $region112
      $region111: #{tpu_custom_call.1} parent=5 // pred_region
        %s704 = ssub.s32 %s36, 1
        // Predicated region
        $region113: #{tpu_custom_call.1} parent=111 // pred_check
          %p705 = pneg %p125
        $region114: #{tpu_custom_call.1} parent=111 // pred_check_branch
          %707 = sbr.rel (%p705) target = $region116
        $region115: #{tpu_custom_call.1} parent=111 // pred_region
          %708 = dma.done [#allocation4], 64
        $region116: #{tpu_custom_call.1} parent=111 // pred_fallthru
          _
        // Predicated region
        $region117: #{tpu_custom_call.1} parent=111 // pred_check
          %p709 = pneg %p146
        $region118: #{tpu_custom_call.1} parent=111 // pred_check_branch
          %711 = sbr.rel (%p709) target = $region120
        $region119: #{tpu_custom_call.1} parent=111 // pred_region
          %712 = dma.done [#allocation7], 64
        $region120: #{tpu_custom_call.1} parent=111 // pred_fallthru
          _
        // Predicated region
        $region121: #{tpu_custom_call.1} parent=111 // pred_check
          %p713 = pneg %p167
        $region122: #{tpu_custom_call.1} parent=111 // pred_check_branch
          %715 = sbr.rel (%p713) target = $region124
        $region123: #{tpu_custom_call.1} parent=111 // pred_region
          %716 = dma.done [#allocation7], 64
        $region124: #{tpu_custom_call.1} parent=111 // pred_fallthru
          _
        // Predicated region
        $region125: #{tpu_custom_call.1} parent=111 // pred_check
          %p717 = pneg %p188
        $region126: #{tpu_custom_call.1} parent=111 // pred_check_branch
          %719 = sbr.rel (%p717) target = $region128
        $region127: #{tpu_custom_call.1} parent=111 // pred_region
          %720 = dma.done [#allocation10], 64
        $region128: #{tpu_custom_call.1} parent=111 // pred_fallthru
          _
        // Predicated region
        $region129: #{tpu_custom_call.1} parent=111 // pred_check
          %p721 = pneg %p209
        $region130: #{tpu_custom_call.1} parent=111 // pred_check_branch
          %723 = sbr.rel (%p721) target = $region132
        $region131: #{tpu_custom_call.1} parent=111 // pred_region
          %724 = dma.done [#allocation10], 64
        $region132: #{tpu_custom_call.1} parent=111 // pred_fallthru
          _
        // Predicated region
        $region133: #{tpu_custom_call.1} parent=111 // pred_check
          %p725 = pneg %p230
        $region134: #{tpu_custom_call.1} parent=111 // pred_check_branch
          %727 = sbr.rel (%p725) target = $region136
        $region135: #{tpu_custom_call.1} parent=111 // pred_region
          %728 = dma.done [#allocation13], 64
        $region136: #{tpu_custom_call.1} parent=111 // pred_fallthru
          _
        // Predicated region
        $region137: #{tpu_custom_call.1} parent=111 // pred_check
          %p729 = pneg %p251
        $region138: #{tpu_custom_call.1} parent=111 // pred_check_branch
          %731 = sbr.rel (%p729) target = $region140
        $region139: #{tpu_custom_call.1} parent=111 // pred_region
          %732 = dma.done [#allocation13], 64
        $region140: #{tpu_custom_call.1} parent=111 // pred_fallthru
          _
        %p733 = scmp.lt.s32.totalorder %s41, 1
        %s734 = scalar_select %p733, %s41, 1
        %s735 = smul.addr %s734, 8
        %s736 = scalar_lea.vmem %s0, %s735
        %p737 = pneg %p62
        %p738 = pneg %p59
        %p739 = pneg %p83
        %p740 = pneg %p80
        %p741 = pneg %p104
        %p742 = pneg %p101
        %p743 = pneg %p125
        %p744 = pneg %p122
        %p745 = pneg %p146
        %p746 = pneg %p143
        %p747 = pneg %p167
        %p748 = pneg %p164
        %p749 = pneg %p188
        %p750 = pneg %p185
        %p751 = pneg %p209
        %p752 = pneg %p206
        %p753 = pneg %p230
        %p754 = pneg %p227
        %p755 = pneg %p251
        %p756 = pneg %p248
        %p757 = pneg %p272
        %p758 = pneg %p269
        %p759 = pneg %p293
        %p760 = pneg %p290
        %p761 = pneg %p314
        %p762 = pneg %p311
        %p763 = pneg %p335
        %p764 = pneg %p332
        %p765 = pneg %p356
        %p766 = pneg %p353
        %p767 = pneg %p377
        %p768 = pneg %p374
        %p769 = pneg %p398
        %p770 = pneg %p395
        %p771 = pneg %p419
        %p772 = pneg %p416
        %p773 = pneg %p440
        %p774 = pneg %p437
        %p775 = pneg %p461
        %p776 = pneg %p458
        %p777 = pneg %p482
        %p778 = pneg %p479
        %p779 = pneg %p503
        %p780 = pneg %p500
        %p781 = pneg %p524
        %p782 = pneg %p521
        %p783 = pneg %p550
        %p784 = pneg %p547
        %s785 = sand.u32 %s537, 1
        %s786 = scalar_lea.sflag [#allocation5], %s785
        %s787 = sand.u32 %s537, 1
        %s788 = smul.addr %s787, 8
        %s789 = scalar_lea.vmem [#allocation15], %s788
        %p790 = scmp.lt.s32.totalorder %s41, 1
        %s791 = scalar_select %p790, %s41, 1
        %s792 = smul.addr %s791, 8
        %s793 = scalar_lea.vmem %s0, %s792
        %v795 = vld [vmem:[%s793] sm:$0xff]
        %v796 = vpack.c.bf16 %v795, %v795
        %v797 = vld [vmem:[%s1] sm:$0xf]
        %v798 = vld [vmem:[%s1 + $0x4] sm:$0xf]
        %v799 = vld [vmem:[%s1 + $0x8] sm:$0xf]
        %v800 = vld [vmem:[%s1 + $0xc] sm:$0xf]
        %v801 = vld [vmem:[%s2] sm:$0xf]
        %v802 = vld [vmem:[%s2 + $0x4] sm:$0xf]
        %v803 = vld [vmem:[%s2 + $0x8] sm:$0xf]
        %v804 = vld [vmem:[%s2 + $0xc] sm:$0xf]
        %v809 = vunpack.c.l.b16 %v801
        %v810 = vunpack.c.l.b16 %v802
        %v811 = vunpack.c.l.b16 %v803
        %v812 = vunpack.c.l.b16 %v804
        %v813 = vpack.c.b16 %v810, %v809
        %v814 = vpack.c.b16 %v812, %v811
        %vm817 = vcmask 261120
        %v819 = vsel %vm817, %v796, 0
        %821 = vmatprep.subr.bf16.mxu0 0
        %822 = vmatpush1.bf16.msra.mxu0 %v813
        %823 = vmatprep.subr.bf16.mxu0 0
        %824 = vmatpush1.bf16.msra.mxu0 %v814
        %825 = vmatprep.subr.bf16.mxu0 0
        %826 = vmatpush1.bf16.msra.mxu0 0
        %827 = vmatprep.subr.bf16.mxu0 0
        %828 = vmatpush1.bf16.msra.mxu0 0
        %829 = vmatprep.subr.bf16.mxu0 0
        %830 = vmatpush1.bf16.msra.mxu0 0
        %831 = vmatprep.subr.bf16.mxu0 0
        %832 = vmatpush1.bf16.msra.mxu0 0
        %833 = vmatprep.subr.bf16.mxu0 0
        %834 = vmatpush1.bf16.msra.mxu0 0
        %835 = vmatprep.subr.bf16.mxu0 0
        %836 = vmatpush1.bf16.msra.mxu0 0
        %837 = vmatprep.subr.bf16.mxu0 0
        %838 = vmatpush1.bf16.msra.mxu0 0
        %839 = vmatprep.subr.bf16.mxu0 0
        %840 = vmatpush1.bf16.msra.mxu0 0
        %841 = vmatprep.subr.bf16.mxu0 0
        %842 = vmatpush1.bf16.msra.mxu0 0
        %843 = vmatprep.subr.bf16.mxu0 0
        %844 = vmatpush1.bf16.msra.mxu0 0
        %845 = vmatprep.subr.bf16.mxu0 0
        %846 = vmatpush1.bf16.msra.mxu0 0
        %847 = vmatprep.subr.bf16.mxu0 0
        %848 = vmatpush1.bf16.msra.mxu0 0
        %849 = vmatprep.subr.bf16.mxu0 0
        %850 = vmatpush1.bf16.msra.mxu0 0
        %851 = vmatprep.subr.bf16.mxu0 0
        %852 = vmatpush1.bf16.msra.mxu0 0
        %853 = vmatprep.mubr.bf16.mxu0 0
        %854 = vmatmul.mubr.bf16.gmra.mrb[0].mxu0 %v819
        %v855 = vpop.f32.mrb[0].mxu0
        %v856 = vadd.f32 0.0, %v855
        %v857 = vpop.f32.mrb[0].mxu0
        %v858 = vpop.f32.mrb[0].mxu0
        %v859 = vpop.f32.mrb[0].mxu0
        %860 = vdwg.mxu0
        %v865 = vunpack.c.l.b16 %v797
        %v866 = vunpack.c.l.b16 %v798
        %v867 = vunpack.c.l.b16 %v799
        %v868 = vunpack.c.l.b16 %v800
        %v869 = vpack.c.b16 %v866, %v865
        %v870 = vpack.c.b16 %v868, %v867
        %873 = vmatprep.subr.bf16.mxu0 0
        %874 = vmatpush1.bf16.msra.mxu0 %v869
        %875 = vmatprep.subr.bf16.mxu0 0
        %876 = vmatpush1.bf16.msra.mxu0 %v870
        %877 = vmatprep.subr.bf16.mxu0 0
        %878 = vmatpush1.bf16.msra.mxu0 0
        %879 = vmatprep.subr.bf16.mxu0 0
        %880 = vmatpush1.bf16.msra.mxu0 0
        %881 = vmatprep.subr.bf16.mxu0 0
        %882 = vmatpush1.bf16.msra.mxu0 0
        %883 = vmatprep.subr.bf16.mxu0 0
        %884 = vmatpush1.bf16.msra.mxu0 0
        %885 = vmatprep.subr.bf16.mxu0 0
        %886 = vmatpush1.bf16.msra.mxu0 0
        %887 = vmatprep.subr.bf16.mxu0 0
        %888 = vmatpush1.bf16.msra.mxu0 0
        %889 = vmatprep.subr.bf16.mxu0 0
        %890 = vmatpush1.bf16.msra.mxu0 0
        %891 = vmatprep.subr.bf16.mxu0 0
        %892 = vmatpush1.bf16.msra.mxu0 0
        %893 = vmatprep.subr.bf16.mxu0 0
        %894 = vmatpush1.bf16.msra.mxu0 0
        %895 = vmatprep.subr.bf16.mxu0 0
        %896 = vmatpush1.bf16.msra.mxu0 0
        %897 = vmatprep.subr.bf16.mxu0 0
        %898 = vmatpush1.bf16.msra.mxu0 0
        %899 = vmatprep.subr.bf16.mxu0 0
        %900 = vmatpush1.bf16.msra.mxu0 0
        %901 = vmatprep.subr.bf16.mxu0 0
        %902 = vmatpush1.bf16.msra.mxu0 0
        %903 = vmatprep.subr.bf16.mxu0 0
        %904 = vmatpush1.bf16.msra.mxu0 0
        %905 = vmatprep.mubr.bf16.mxu0 0
        %906 = vmatmul.mubr.bf16.gmra.mrb[0].mxu0 %v819
        %v907 = vpop.f32.mrb[0].mxu0
        %v908 = vadd.f32 %v856, %v907
        %v909 = vpop.f32.mrb[0].mxu0
        %v910 = vpop.f32.mrb[0].mxu0
        %v911 = vpop.f32.mrb[0].mxu0
        %912 = vdwg.mxu0
        %v913 = vpack.c.bf16 %v908, %v908
        %v914 = vld [vmem:[#allocation3] sm:$0xf]
        %v915 = vld [vmem:[#allocation6] sm:$0xf]
        %v916 = vld [vmem:[#allocation8] sm:$0xf]
        %v917 = vld [vmem:[#allocation9] sm:$0xf]
        %vm918 = vcmask 64512
        %v920 = vsel %vm918, %v915, 0
        %vm922 = vcmask 1043456
        %v924 = vsel %vm922, %v913, 0
        %926 = vmatprep.subr.bf16.mxu0 0
        %927 = vmatpush1.bf16.msra.mxu0 %v924
        %928 = vmatprep.subr.bf16.mxu0 0
        %929 = vmatpush1.bf16.msra.mxu0 0
        %930 = vmatprep.subr.bf16.mxu0 0
        %931 = vmatpush1.bf16.msra.mxu0 0
        %932 = vmatprep.subr.bf16.mxu0 0
        %933 = vmatpush1.bf16.msra.mxu0 0
        %934 = vmatprep.subr.bf16.mxu0 0
        %935 = vmatpush1.bf16.msra.mxu0 0
        %936 = vmatprep.subr.bf16.mxu0 0
        %937 = vmatpush1.bf16.msra.mxu0 0
        %938 = vmatprep.subr.bf16.mxu0 0
        %939 = vmatpush1.bf16.msra.mxu0 0
        %940 = vmatprep.subr.bf16.mxu0 0
        %941 = vmatpush1.bf16.msra.mxu0 0
        %942 = vmatprep.subr.bf16.mxu0 0
        %943 = vmatpush1.bf16.msra.mxu0 0
        %944 = vmatprep.subr.bf16.mxu0 0
        %945 = vmatpush1.bf16.msra.mxu0 0
        %946 = vmatprep.subr.bf16.mxu0 0
        %947 = vmatpush1.bf16.msra.mxu0 0
        %948 = vmatprep.subr.bf16.mxu0 0
        %949 = vmatpush1.bf16.msra.mxu0 0
        %950 = vmatprep.subr.bf16.mxu0 0
        %951 = vmatpush1.bf16.msra.mxu0 0
        %952 = vmatprep.subr.bf16.mxu0 0
        %953 = vmatpush1.bf16.msra.mxu0 0
        %954 = vmatprep.subr.bf16.mxu0 0
        %955 = vmatpush1.bf16.msra.mxu0 0
        %956 = vmatprep.subr.bf16.mxu0 0
        %957 = vmatpush1.bf16.msra.mxu0 0
        %958 = vmatprep.mubr.bf16.mxu0 0
        %959 = vmatmul.mubr.bf16.gmra.mrb[0].mxu0 %v920
        %v960 = vpop.f32.mrb[0].mxu0
        %v961 = vadd.f32 0.0, %v960
        %v962 = vpop.f32.mrb[0].mxu0
        %v963 = vpop.f32.mrb[0].mxu0
        %v964 = vpop.f32.mrb[0].mxu0
        %965 = vdwg.mxu0
        %v967 = vsel %vm918, %v914, 0
        %969 = vmatprep.subr.bf16.mxu0 0
        %970 = vmatpush1.bf16.msra.mxu0 %v924
        %971 = vmatprep.subr.bf16.mxu0 0
        %972 = vmatpush1.bf16.msra.mxu0 0
        %973 = vmatprep.subr.bf16.mxu0 0
        %974 = vmatpush1.bf16.msra.mxu0 0
        %975 = vmatprep.subr.bf16.mxu0 0
        %976 = vmatpush1.bf16.msra.mxu0 0
        %977 = vmatprep.subr.bf16.mxu0 0
        %978 = vmatpush1.bf16.msra.mxu0 0
        %979 = vmatprep.subr.bf16.mxu0 0
        %980 = vmatpush1.bf16.msra.mxu0 0
        %981 = vmatprep.subr.bf16.mxu0 0
        %982 = vmatpush1.bf16.msra.mxu0 0
        %983 = vmatprep.subr.bf16.mxu0 0
        %984 = vmatpush1.bf16.msra.mxu0 0
        %985 = vmatprep.subr.bf16.mxu0 0
        %986 = vmatpush1.bf16.msra.mxu0 0
        %987 = vmatprep.subr.bf16.mxu0 0
        %988 = vmatpush1.bf16.msra.mxu0 0
        %989 = vmatprep.subr.bf16.mxu0 0
        %990 = vmatpush1.bf16.msra.mxu0 0
        %991 = vmatprep.subr.bf16.mxu0 0
        %992 = vmatpush1.bf16.msra.mxu0 0
        %993 = vmatprep.subr.bf16.mxu0 0
        %994 = vmatpush1.bf16.msra.mxu0 0
        %995 = vmatprep.subr.bf16.mxu0 0
        %996 = vmatpush1.bf16.msra.mxu0 0
        %997 = vmatprep.subr.bf16.mxu0 0
        %998 = vmatpush1.bf16.msra.mxu0 0
        %999 = vmatprep.subr.bf16.mxu0 0
        %1000 = vmatpush1.bf16.msra.mxu0 0
        %1001 = vmatprep.mubr.bf16.mxu0 0
        %1002 = vmatmul.mubr.bf16.gmra.mrb[0].mxu0 %v967
        %v1003 = vpop.f32.mrb[0].mxu0
        %v1004 = vadd.f32 %v961, %v1003
        %v1005 = vpop.f32.mrb[0].mxu0
        %v1006 = vpop.f32.mrb[0].mxu0
        %v1007 = vpop.f32.mrb[0].mxu0
        %1008 = vdwg.mxu0
        %1010 = vrot.lane.b32.xlu0 %v913, 96
        %v1011 = vpop.permute.xlu0 %1010
        %v1013 = vsel %vm918, %v916, 0
        %v1016 = vsel %vm922, %v1011, 0
        %1018 = vmatprep.subr.bf16.mxu0 0
        %1019 = vmatpush1.bf16.msra.mxu0 %v1016
        %1020 = vmatprep.subr.bf16.mxu0 0
        %1021 = vmatpush1.bf16.msra.mxu0 0
        %1022 = vmatprep.subr.bf16.mxu0 0
        %1023 = vmatpush1.bf16.msra.mxu0 0
        %1024 = vmatprep.subr.bf16.mxu0 0
        %1025 = vmatpush1.bf16.msra.mxu0 0
        %1026 = vmatprep.subr.bf16.mxu0 0
        %1027 = vmatpush1.bf16.msra.mxu0 0
        %1028 = vmatprep.subr.bf16.mxu0 0
        %1029 = vmatpush1.bf16.msra.mxu0 0
        %1030 = vmatprep.subr.bf16.mxu0 0
        %1031 = vmatpush1.bf16.msra.mxu0 0
        %1032 = vmatprep.subr.bf16.mxu0 0
        %1033 = vmatpush1.bf16.msra.mxu0 0
        %1034 = vmatprep.subr.bf16.mxu0 0
        %1035 = vmatpush1.bf16.msra.mxu0 0
        %1036 = vmatprep.subr.bf16.mxu0 0
        %1037 = vmatpush1.bf16.msra.mxu0 0
        %1038 = vmatprep.subr.bf16.mxu0 0
        %1039 = vmatpush1.bf16.msra.mxu0 0
        %1040 = vmatprep.subr.bf16.mxu0 0
        %1041 = vmatpush1.bf16.msra.mxu0 0
        %1042 = vmatprep.subr.bf16.mxu0 0
        %1043 = vmatpush1.bf16.msra.mxu0 0
        %1044 = vmatprep.subr.bf16.mxu0 0
        %1045 = vmatpush1.bf16.msra.mxu0 0
        %1046 = vmatprep.subr.bf16.mxu0 0
        %1047 = vmatpush1.bf16.msra.mxu0 0
        %1048 = vmatprep.subr.bf16.mxu0 0
        %1049 = vmatpush1.bf16.msra.mxu0 0
        %1050 = vmatprep.mubr.bf16.mxu0 0
        %1051 = vmatmul.mubr.bf16.gmra.mrb[0].mxu0 %v1013
        %v1052 = vpop.f32.mrb[0].mxu0
        %v1053 = vadd.f32 0.0, %v1052
        %v1054 = vpop.f32.mrb[0].mxu0
        %v1055 = vpop.f32.mrb[0].mxu0
        %v1056 = vpop.f32.mrb[0].mxu0
        %1057 = vdwg.mxu0
        %v1058 = vsub.f32 %v1004, %v1053
        %v1060 = vsel %vm918, %v917, 0
        %1062 = vmatprep.subr.bf16.mxu0 0
        %1063 = vmatpush1.bf16.msra.mxu0 %v1016
        %1064 = vmatprep.subr.bf16.mxu0 0
        %1065 = vmatpush1.bf16.msra.mxu0 0
        %1066 = vmatprep.subr.bf16.mxu0 0
        %1067 = vmatpush1.bf16.msra.mxu0 0
        %1068 = vmatprep.subr.bf16.mxu0 0
        %1069 = vmatpush1.bf16.msra.mxu0 0
        %1070 = vmatprep.subr.bf16.mxu0 0
        %1071 = vmatpush1.bf16.msra.mxu0 0
        %1072 = vmatprep.subr.bf16.mxu0 0
        %1073 = vmatpush1.bf16.msra.mxu0 0
        %1074 = vmatprep.subr.bf16.mxu0 0
        %1075 = vmatpush1.bf16.msra.mxu0 0
        %1076 = vmatprep.subr.bf16.mxu0 0
        %1077 = vmatpush1.bf16.msra.mxu0 0
        %1078 = vmatprep.subr.bf16.mxu0 0
        %1079 = vmatpush1.bf16.msra.mxu0 0
        %1080 = vmatprep.subr.bf16.mxu0 0
        %1081 = vmatpush1.bf16.msra.mxu0 0
        %1082 = vmatprep.subr.bf16.mxu0 0
        %1083 = vmatpush1.bf16.msra.mxu0 0
        %1084 = vmatprep.subr.bf16.mxu0 0
        %1085 = vmatpush1.bf16.msra.mxu0 0
        %1086 = vmatprep.subr.bf16.mxu0 0
        %1087 = vmatpush1.bf16.msra.mxu0 0
        %1088 = vmatprep.subr.bf16.mxu0 0
        %1089 = vmatpush1.bf16.msra.mxu0 0
        %1090 = vmatprep.subr.bf16.mxu0 0
        %1091 = vmatpush1.bf16.msra.mxu0 0
        %1092 = vmatprep.subr.bf16.mxu0 0
        %1093 = vmatpush1.bf16.msra.mxu0 0
        %1094 = vmatprep.mubr.bf16.mxu0 0
        %1095 = vmatmul.mubr.bf16.gmra.mrb[0].mxu0 %v1060
        %v1096 = vpop.f32.mrb[0].mxu0
        %v1097 = vadd.f32 0.0, %v1096
        %v1098 = vpop.f32.mrb[0].mxu0
        %v1099 = vpop.f32.mrb[0].mxu0
        %v1100 = vpop.f32.mrb[0].mxu0
        %1101 = vdwg.mxu0
        %v1102 = vsub.f32 %v1058, %v1097
        %1103 = vst.msk [vmem:[#allocation2] sm:$0xff] %vm817, %v1102
        %v1104 = vld [vmem:[#allocation2] sm:$0xff]
        %v1105 = vld [vmem:[%s11] sm:$0x1]
        %v1106 = vld [vmem:[%s12] sm:$0x1]
        %v1107 = vsel %vm817, %v1104, 0.0
        %1108 = vadd.xlane.f32.xlu0 %v1107
        %v1109 = vpop.xlane.xlu0 %1108
        %v1110 = vrcp.pop 32.0
        %v1111 = vmul.f32 %v1109, %v1110
        %v1112 = vsub.f32 %v1104, %v1111
        %v1113 = vmul.f32 %v1112, %v1112
        %v1114 = vsel %vm817, %v1113, 0.0
        %1115 = vadd.xlane.f32.xlu0 %v1114
        %v1116 = vpop.xlane.xlu0 %1115
        %v1117 = vmul.f32 %v1116, %v1110
        %v1118 = vadd.f32 %v1117, 1e-06
        %v1119 = vrsqrt.pop %v1118
        %v1120 = vmul.f32 %v1112, %v1119
        %v1122 = vlaneseq
        %v1123 = vshrl.u32 %v1122, 7
        %v1124 = vsub.s32 0, %v1123
        %v1125 = vrot.slane %v1105, %v1124
        %v1127 = vmul.f32 %v1120, %v1125
        %v1129 = vlaneseq
        %v1130 = vshrl.u32 %v1129, 7
        %v1131 = vsub.s32 0, %v1130
        %v1132 = vrot.slane %v1106, %v1131
        %v1134 = vadd.f32 %v1127, %v1132
        %v1135 = vpack.c.bf16 %v1134, %v1134
        %v1136 = vld [vmem:[%s13] sm:$0xf]
        %v1137 = vld [vmem:[%s13 + $0x4] sm:$0xf]
        %v1138 = vld [vmem:[%s13 + $0x8] sm:$0xf]
        %v1139 = vld [vmem:[%s13 + $0xc] sm:$0xf]
        %v1140 = vld [vmem:[%s14] sm:$0x1]
        %v1142 = vlaneseq
        %v1143 = vshrl.u32 %v1142, 7
        %v1144 = vsub.s32 0, %v1143
        %v1145 = vrot.slane %v1140, %v1144
        %v1151 = vunpack.c.l.b16 %v1136
        %v1152 = vunpack.c.l.b16 %v1137
        %v1153 = vunpack.c.l.b16 %v1138
        %v1154 = vunpack.c.l.b16 %v1139
        %v1155 = vpack.c.b16 %v1152, %v1151
        %v1156 = vpack.c.b16 %v1154, %v1153
        %v1160 = vsel %vm817, %v1135, 0
        %1162 = vmatprep.subr.bf16.mxu0 0
        %1163 = vmatpush1.bf16.msra.mxu0 %v1155
        %1164 = vmatprep.subr.bf16.mxu0 0
        %1165 = vmatpush1.bf16.msra.mxu0 %v1156
        %1166 = vmatprep.subr.bf16.mxu0 0
        %1167 = vmatpush1.bf16.msra.mxu0 0
        %1168 = vmatprep.subr.bf16.mxu0 0
        %1169 = vmatpush1.bf16.msra.mxu0 0
        %1170 = vmatprep.subr.bf16.mxu0 0
        %1171 = vmatpush1.bf16.msra.mxu0 0
        %1172 = vmatprep.subr.bf16.mxu0 0
        %1173 = vmatpush1.bf16.msra.mxu0 0
        %1174 = vmatprep.subr.bf16.mxu0 0
        %1175 = vmatpush1.bf16.msra.mxu0 0
        %1176 = vmatprep.subr.bf16.mxu0 0
        %1177 = vmatpush1.bf16.msra.mxu0 0
        %1178 = vmatprep.subr.bf16.mxu0 0
        %1179 = vmatpush1.bf16.msra.mxu0 0
        %1180 = vmatprep.subr.bf16.mxu0 0
        %1181 = vmatpush1.bf16.msra.mxu0 0
        %1182 = vmatprep.subr.bf16.mxu0 0
        %1183 = vmatpush1.bf16.msra.mxu0 0
        %1184 = vmatprep.subr.bf16.mxu0 0
        %1185 = vmatpush1.bf16.msra.mxu0 0
        %1186 = vmatprep.subr.bf16.mxu0 0
        %1187 = vmatpush1.bf16.msra.mxu0 0
        %1188 = vmatprep.subr.bf16.mxu0 0
        %1189 = vmatpush1.bf16.msra.mxu0 0
        %1190 = vmatprep.subr.bf16.mxu0 0
        %1191 = vmatpush1.bf16.msra.mxu0 0
        %1192 = vmatprep.subr.bf16.mxu0 0
        %1193 = vmatpush1.bf16.msra.mxu0 0
        %1194 = vmatprep.mubr.bf16.mxu0 0
        %1195 = vmatmul.mubr.bf16.gmra.mrb[0].mxu0 %v1160
        %v1196 = vpop.f32.mrb[0].mxu0
        %v1197 = vadd.f32 %v1145, %v1196
        %v1198 = vpop.f32.mrb[0].mxu0
        %v1199 = vpop.f32.mrb[0].mxu0
        %v1200 = vpop.f32.mrb[0].mxu0
        %1201 = vdwg.mxu0
        %v1202 = vpack.c.bf16 %v1197, %v1197
        %1204 = vrot.lane.b32.xlu0 %v1202, 112
        %v1205 = vpop.permute.xlu0 %1204
        %1206 = vrot.lane.b32.xlu0 %v1202, 96
        %v1207 = vpop.permute.xlu0 %1206
        %vm1208 = vcmask 130048
        %v1210 = vsel %vm1208, %v1202, 0
        %v1213 = vsel %vm1208, %v1207, 0
        %1215 = vmatprep.subr.bf16.mxu0 0
        %1216 = vmatpush1.bf16.xpose.msra.mxu0 %v1213
        %1217 = vmatprep.subr.bf16.mxu0 0
        %1218 = vmatpush1.bf16.xpose.msra.mxu0 0
        %1219 = vmatprep.subr.bf16.mxu0 0
        %1220 = vmatpush1.bf16.xpose.msra.mxu0 0
        %1221 = vmatprep.subr.bf16.mxu0 0
        %1222 = vmatpush1.bf16.xpose.msra.mxu0 0
        %1223 = vmatprep.subr.bf16.mxu0 0
        %1224 = vmatpush1.bf16.xpose.msra.mxu0 0
        %1225 = vmatprep.subr.bf16.mxu0 0
        %1226 = vmatpush1.bf16.xpose.msra.mxu0 0
        %1227 = vmatprep.subr.bf16.mxu0 0
        %1228 = vmatpush1.bf16.xpose.msra.mxu0 0
        %1229 = vmatprep.subr.bf16.mxu0 0
        %1230 = vmatpush1.bf16.xpose.msra.mxu0 0
        %1231 = vmatprep.subr.bf16.mxu0 0
        %1232 = vmatpush1.bf16.xpose.msra.mxu0 0
        %1233 = vmatprep.subr.bf16.mxu0 0
        %1234 = vmatpush1.bf16.xpose.msra.mxu0 0
        %1235 = vmatprep.subr.bf16.mxu0 0
        %1236 = vmatpush1.bf16.xpose.msra.mxu0 0
        %1237 = vmatprep.subr.bf16.mxu0 0
        %1238 = vmatpush1.bf16.xpose.msra.mxu0 0
        %1239 = vmatprep.subr.bf16.mxu0 0
        %1240 = vmatpush1.bf16.xpose.msra.mxu0 0
        %1241 = vmatprep.subr.bf16.mxu0 0
        %1242 = vmatpush1.bf16.xpose.msra.mxu0 0
        %1243 = vmatprep.subr.bf16.mxu0 0
        %1244 = vmatpush1.bf16.xpose.msra.mxu0 0
        %1245 = vmatprep.subr.bf16.mxu0 0
        %1246 = vmatpush1.bf16.xpose.msra.mxu0 0
        %1247 = vmatprep.mubr.bf16.mxu0 0
        %1248 = vmatmul.mubr.bf16.gmra.mrb[0].mxu0 %v1210
        %v1249 = vpop.f32.mrb[0].mxu0
        %v1250 = vadd.f32 0.0, %v1249
        %v1251 = vpop.f32.mrb[0].mxu0
        %v1252 = vpop.f32.mrb[0].mxu0
        %v1253 = vpop.f32.mrb[0].mxu0
        %1254 = vdwg.mxu0
        %1255 = vrot.lane.b32.xlu0 %v1205, 96
        %v1256 = vpop.permute.xlu0 %1255
        %v1258 = vsel %vm1208, %v1205, 0
        %v1261 = vsel %vm1208, %v1256, 0
        %1263 = vmatprep.subr.bf16.mxu0 0
        %1264 = vmatpush1.bf16.xpose.msra.mxu0 %v1261
        %1265 = vmatprep.subr.bf16.mxu0 0
        %1266 = vmatpush1.bf16.xpose.msra.mxu0 0
        %1267 = vmatprep.subr.bf16.mxu0 0
        %1268 = vmatpush1.bf16.xpose.msra.mxu0 0
        %1269 = vmatprep.subr.bf16.mxu0 0
        %1270 = vmatpush1.bf16.xpose.msra.mxu0 0
        %1271 = vmatprep.subr.bf16.mxu0 0
        %1272 = vmatpush1.bf16.xpose.msra.mxu0 0
        %1273 = vmatprep.subr.bf16.mxu0 0
        %1274 = vmatpush1.bf16.xpose.msra.mxu0 0
        %1275 = vmatprep.subr.bf16.mxu0 0
        %1276 = vmatpush1.bf16.xpose.msra.mxu0 0
        %1277 = vmatprep.subr.bf16.mxu0 0
        %1278 = vmatpush1.bf16.xpose.msra.mxu0 0
        %1279 = vmatprep.subr.bf16.mxu0 0
        %1280 = vmatpush1.bf16.xpose.msra.mxu0 0
        %1281 = vmatprep.subr.bf16.mxu0 0
        %1282 = vmatpush1.bf16.xpose.msra.mxu0 0
        %1283 = vmatprep.subr.bf16.mxu0 0
        %1284 = vmatpush1.bf16.xpose.msra.mxu0 0
        %1285 = vmatprep.subr.bf16.mxu0 0
        %1286 = vmatpush1.bf16.xpose.msra.mxu0 0
        %1287 = vmatprep.subr.bf16.mxu0 0
        %1288 = vmatpush1.bf16.xpose.msra.mxu0 0
        %1289 = vmatprep.subr.bf16.mxu0 0
        %1290 = vmatpush1.bf16.xpose.msra.mxu0 0
        %1291 = vmatprep.subr.bf16.mxu0 0
        %1292 = vmatpush1.bf16.xpose.msra.mxu0 0
        %1293 = vmatprep.subr.bf16.mxu0 0
        %1294 = vmatpush1.bf16.xpose.msra.mxu0 0
        %1295 = vmatprep.mubr.bf16.mxu0 0
        %1296 = vmatmul.mubr.bf16.gmra.mrb[0].mxu0 %v1258
        %v1297 = vpop.f32.mrb[0].mxu0
        %v1298 = vadd.f32 0.0, %v1297
        %v1299 = vpop.f32.mrb[0].mxu0
        %v1300 = vpop.f32.mrb[0].mxu0
        %v1301 = vpop.f32.mrb[0].mxu0
        %1302 = vdwg.mxu0
        %v1303 = vsel %vm918, %v1250, -inf
        %1304 = vmax.xlane.f32.xlu0 %v1303
        %v1305 = vpop.xlane.xlu0 %1304
        %v1306 = vsel %vm918, %v1298, -inf
        %1307 = vmax.xlane.f32.xlu0 %v1306
        %v1308 = vpop.xlane.xlu0 %1307
        %v1309 = vsub.f32 %v1250, %v1305
        %v1310 = vsub.f32 %v1298, %v1308
        %v1311 = vmul.f32 %v1309, 1.442695
        %v1312 = vpow.pop %v1311
        %v1313 = vmul.f32 %v1310, 1.442695
        %v1314 = vpow.pop %v1313
        %v1315 = vsel %vm918, %v1312, 0.0
        %1316 = vadd.xlane.f32.xlu0 %v1315
        %v1317 = vpop.xlane.xlu0 %1316
        %v1318 = vsel %vm918, %v1314, 0.0
        %1319 = vadd.xlane.f32.xlu0 %v1318
        %v1320 = vpop.xlane.xlu0 %1319
        %v1321 = vrcp.pop %v1317
        %v1322 = vrcp.pop %v1320
        %v1323 = vmul.f32 %v1312, %v1321
        %v1324 = vmul.f32 %v1314, %v1322
        %v1325 = vpack.c.bf16 %v1323, %v1323
        %v1326 = vpack.c.bf16 %v1324, %v1324
        %1327 = vrot.lane.b32.xlu0 %v1202, 64
        %v1328 = vpop.permute.xlu0 %1327
        %v1330 = vsel %vm918, %v1325, 0
        %v1333 = vsel %vm922, %v1328, 0
        %1335 = vmatprep.subr.bf16.mxu0 0
        %1336 = vmatpush1.bf16.msra.mxu0 %v1333
        %1337 = vmatprep.subr.bf16.mxu0 0
        %1338 = vmatpush1.bf16.msra.mxu0 0
        %1339 = vmatprep.subr.bf16.mxu0 0
        %1340 = vmatpush1.bf16.msra.mxu0 0
        %1341 = vmatprep.subr.bf16.mxu0 0
        %1342 = vmatpush1.bf16.msra.mxu0 0
        %1343 = vmatprep.subr.bf16.mxu0 0
        %1344 = vmatpush1.bf16.msra.mxu0 0
        %1345 = vmatprep.subr.bf16.mxu0 0
        %1346 = vmatpush1.bf16.msra.mxu0 0
        %1347 = vmatprep.subr.bf16.mxu0 0
        %1348 = vmatpush1.bf16.msra.mxu0 0
        %1349 = vmatprep.subr.bf16.mxu0 0
        %1350 = vmatpush1.bf16.msra.mxu0 0
        %1351 = vmatprep.subr.bf16.mxu0 0
        %1352 = vmatpush1.bf16.msra.mxu0 0
        %1353 = vmatprep.subr.bf16.mxu0 0
        %1354 = vmatpush1.bf16.msra.mxu0 0
        %1355 = vmatprep.subr.bf16.mxu0 0
        %1356 = vmatpush1.bf16.msra.mxu0 0
        %1357 = vmatprep.subr.bf16.mxu0 0
        %1358 = vmatpush1.bf16.msra.mxu0 0
        %1359 = vmatprep.subr.bf16.mxu0 0
        %1360 = vmatpush1.bf16.msra.mxu0 0
        %1361 = vmatprep.subr.bf16.mxu0 0
        %1362 = vmatpush1.bf16.msra.mxu0 0
        %1363 = vmatprep.subr.bf16.mxu0 0
        %1364 = vmatpush1.bf16.msra.mxu0 0
        %1365 = vmatprep.subr.bf16.mxu0 0
        %1366 = vmatpush1.bf16.msra.mxu0 0
        %1367 = vmatprep.mubr.bf16.mxu0 0
        %1368 = vmatmul.mubr.bf16.gmra.mrb[0].mxu0 %v1330
        %v1369 = vpop.f32.mrb[0].mxu0
        %v1370 = vadd.f32 0.0, %v1369
        %v1371 = vpop.f32.mrb[0].mxu0
        %v1372 = vpop.f32.mrb[0].mxu0
        %v1373 = vpop.f32.mrb[0].mxu0
        %1374 = vdwg.mxu0
        %1375 = vrot.lane.b32.xlu0 %v1205, 64
        %v1376 = vpop.permute.xlu0 %1375
        %v1378 = vsel %vm918, %v1326, 0
        %v1381 = vsel %vm922, %v1376, 0
        %1383 = vmatprep.subr.bf16.mxu0 0
        %1384 = vmatpush1.bf16.msra.mxu0 %v1381
        %1385 = vmatprep.subr.bf16.mxu0 0
        %1386 = vmatpush1.bf16.msra.mxu0 0
        %1387 = vmatprep.subr.bf16.mxu0 0
        %1388 = vmatpush1.bf16.msra.mxu0 0
        %1389 = vmatprep.subr.bf16.mxu0 0
        %1390 = vmatpush1.bf16.msra.mxu0 0
        %1391 = vmatprep.subr.bf16.mxu0 0
        %1392 = vmatpush1.bf16.msra.mxu0 0
        %1393 = vmatprep.subr.bf16.mxu0 0
        %1394 = vmatpush1.bf16.msra.mxu0 0
        %1395 = vmatprep.subr.bf16.mxu0 0
        %1396 = vmatpush1.bf16.msra.mxu0 0
        %1397 = vmatprep.subr.bf16.mxu0 0
        %1398 = vmatpush1.bf16.msra.mxu0 0
        %1399 = vmatprep.subr.bf16.mxu0 0
        %1400 = vmatpush1.bf16.msra.mxu0 0
        %1401 = vmatprep.subr.bf16.mxu0 0
        %1402 = vmatpush1.bf16.msra.mxu0 0
        %1403 = vmatprep.subr.bf16.mxu0 0
        %1404 = vmatpush1.bf16.msra.mxu0 0
        %1405 = vmatprep.subr.bf16.mxu0 0
        %1406 = vmatpush1.bf16.msra.mxu0 0
        %1407 = vmatprep.subr.bf16.mxu0 0
        %1408 = vmatpush1.bf16.msra.mxu0 0
        %1409 = vmatprep.subr.bf16.mxu0 0
        %1410 = vmatpush1.bf16.msra.mxu0 0
        %1411 = vmatprep.subr.bf16.mxu0 0
        %1412 = vmatpush1.bf16.msra.mxu0 0
        %1413 = vmatprep.subr.bf16.mxu0 0
        %1414 = vmatpush1.bf16.msra.mxu0 0
        %1415 = vmatprep.mubr.bf16.mxu0 0
        %1416 = vmatmul.mubr.bf16.gmra.mrb[0].mxu0 %v1378
        %v1417 = vpop.f32.mrb[0].mxu0
        %v1418 = vadd.f32 0.0, %v1417
        %v1419 = vpop.f32.mrb[0].mxu0
        %v1420 = vpop.f32.mrb[0].mxu0
        %v1421 = vpop.f32.mrb[0].mxu0
        %1422 = vdwg.mxu0
        %1424 = vrot.lane.b32.xlu0 %v1418, 16
        %v1425 = vpop.permute.xlu0 %1424
        %v1427 = vsel %vm1208, %v1370, %v1425
        %v1428 = vpack.c.bf16 %v1427, %v1427
        %v1429 = vld [vmem:[%s15] sm:$0xf]
        %v1430 = vld [vmem:[%s15 + $0x4] sm:$0xf]
        %v1431 = vld [vmem:[%s15 + $0x8] sm:$0xf]
        %v1432 = vld [vmem:[%s15 + $0xc] sm:$0xf]
        %v1433 = vld [vmem:[%s16] sm:$0x1]
        %v1435 = vlaneseq
        %v1436 = vshrl.u32 %v1435, 7
        %v1437 = vsub.s32 0, %v1436
        %v1438 = vrot.slane %v1433, %v1437
        %v1444 = vunpack.c.l.b16 %v1429
        %v1445 = vunpack.c.l.b16 %v1430
        %v1446 = vunpack.c.l.b16 %v1431
        %v1447 = vunpack.c.l.b16 %v1432
        %v1448 = vpack.c.b16 %v1445, %v1444
        %v1449 = vpack.c.b16 %v1447, %v1446
        %v1453 = vsel %vm817, %v1428, 0
        %1455 = vmatprep.subr.bf16.mxu0 0
        %1456 = vmatpush1.bf16.msra.mxu0 %v1448
        %1457 = vmatprep.subr.bf16.mxu0 0
        %1458 = vmatpush1.bf16.msra.mxu0 %v1449
        %1459 = vmatprep.subr.bf16.mxu0 0
        %1460 = vmatpush1.bf16.msra.mxu0 0
        %1461 = vmatprep.subr.bf16.mxu0 0
        %1462 = vmatpush1.bf16.msra.mxu0 0
        %1463 = vmatprep.subr.bf16.mxu0 0
        %1464 = vmatpush1.bf16.msra.mxu0 0
        %1465 = vmatprep.subr.bf16.mxu0 0
        %1466 = vmatpush1.bf16.msra.mxu0 0
        %1467 = vmatprep.subr.bf16.mxu0 0
        %1468 = vmatpush1.bf16.msra.mxu0 0
        %1469 = vmatprep.subr.bf16.mxu0 0
        %1470 = vmatpush1.bf16.msra.mxu0 0
        %1471 = vmatprep.subr.bf16.mxu0 0
        %1472 = vmatpush1.bf16.msra.mxu0 0
        %1473 = vmatprep.subr.bf16.mxu0 0
        %1474 = vmatpush1.bf16.msra.mxu0 0
        %1475 = vmatprep.subr.bf16.mxu0 0
        %1476 = vmatpush1.bf16.msra.mxu0 0
        %1477 = vmatprep.subr.bf16.mxu0 0
        %1478 = vmatpush1.bf16.msra.mxu0 0
        %1479 = vmatprep.subr.bf16.mxu0 0
        %1480 = vmatpush1.bf16.msra.mxu0 0
        %1481 = vmatprep.subr.bf16.mxu0 0
        %1482 = vmatpush1.bf16.msra.mxu0 0
        %1483 = vmatprep.subr.bf16.mxu0 0
        %1484 = vmatpush1.bf16.msra.mxu0 0
        %1485 = vmatprep.subr.bf16.mxu0 0
        %1486 = vmatpush1.bf16.msra.mxu0 0
        %1487 = vmatprep.mubr.bf16.mxu0 0
        %1488 = vmatmul.mubr.bf16.gmra.mrb[0].mxu0 %v1453
        %v1489 = vpop.f32.mrb[0].mxu0
        %v1490 = vadd.f32 %v1438, %v1489
        %v1491 = vpop.f32.mrb[0].mxu0
        %v1492 = vpop.f32.mrb[0].mxu0
        %v1493 = vpop.f32.mrb[0].mxu0
        %1494 = vdwg.mxu0
        %v1495 = vadd.f32 %v1490, %v1104
        %v1496 = vld [vmem:[%s17] sm:$0x1]
        %v1497 = vld [vmem:[%s18] sm:$0x1]
        %v1498 = vsel %vm817, %v1495, 0.0
        %1499 = vadd.xlane.f32.xlu0 %v1498
        %v1500 = vpop.xlane.xlu0 %1499
        %v1501 = vmul.f32 %v1500, %v1110
        %v1502 = vsub.f32 %v1495, %v1501
        %v1503 = vmul.f32 %v1502, %v1502
        %v1504 = vsel %vm817, %v1503, 0.0
        %1505 = vadd.xlane.f32.xlu0 %v1504
        %v1506 = vpop.xlane.xlu0 %1505
        %v1507 = vmul.f32 %v1506, %v1110
        %v1508 = vadd.f32 %v1507, 1e-06
        %v1509 = vrsqrt.pop %v1508
        %v1510 = vmul.f32 %v1502, %v1509
        %v1512 = vlaneseq
        %v1513 = vshrl.u32 %v1512, 7
        %v1514 = vsub.s32 0, %v1513
        %v1515 = vrot.slane %v1496, %v1514
        %v1517 = vmul.f32 %v1510, %v1515
        %v1519 = vlaneseq
        %v1520 = vshrl.u32 %v1519, 7
        %v1521 = vsub.s32 0, %v1520
        %v1522 = vrot.slane %v1497, %v1521
        %v1524 = vadd.f32 %v1517, %v1522
        %v1525 = vpack.c.bf16 %v1524, %v1524
        %v1526 = vld [vmem:[%s19] sm:$0xf]
        %v1527 = vld [vmem:[%s19 + $0x4] sm:$0xf]
        %v1528 = vld [vmem:[%s19 + $0x8] sm:$0xf]
        %v1529 = vld [vmem:[%s19 + $0xc] sm:$0xf]
        %v1530 = vld [vmem:[%s20] sm:$0x1]
        %v1532 = vlaneseq
        %v1533 = vshrl.u32 %v1532, 7
        %v1534 = vsub.s32 0, %v1533
        %v1535 = vrot.slane %v1530, %v1534
        %v1541 = vunpack.c.l.b16 %v1526
        %v1542 = vunpack.c.l.b16 %v1527
        %v1543 = vunpack.c.l.b16 %v1528
        %v1544 = vunpack.c.l.b16 %v1529
        %v1545 = vpack.c.b16 %v1542, %v1541
        %v1546 = vpack.c.b16 %v1544, %v1543
        %v1550 = vsel %vm817, %v1525, 0
        %1552 = vmatprep.subr.bf16.mxu0 0
        %1553 = vmatpush1.bf16.msra.mxu0 %v1545
        %1554 = vmatprep.subr.bf16.mxu0 0
        %1555 = vmatpush1.bf16.msra.mxu0 %v1546
        %1556 = vmatprep.subr.bf16.mxu0 0
        %1557 = vmatpush1.bf16.msra.mxu0 0
        %1558 = vmatprep.subr.bf16.mxu0 0
        %1559 = vmatpush1.bf16.msra.mxu0 0
        %1560 = vmatprep.subr.bf16.mxu0 0
        %1561 = vmatpush1.bf16.msra.mxu0 0
        %1562 = vmatprep.subr.bf16.mxu0 0
        %1563 = vmatpush1.bf16.msra.mxu0 0
        %1564 = vmatprep.subr.bf16.mxu0 0
        %1565 = vmatpush1.bf16.msra.mxu0 0
        %1566 = vmatprep.subr.bf16.mxu0 0
        %1567 = vmatpush1.bf16.msra.mxu0 0
        %1568 = vmatprep.subr.bf16.mxu0 0
        %1569 = vmatpush1.bf16.msra.mxu0 0
        %1570 = vmatprep.subr.bf16.mxu0 0
        %1571 = vmatpush1.bf16.msra.mxu0 0
        %1572 = vmatprep.subr.bf16.mxu0 0
        %1573 = vmatpush1.bf16.msra.mxu0 0
        %1574 = vmatprep.subr.bf16.mxu0 0
        %1575 = vmatpush1.bf16.msra.mxu0 0
        %1576 = vmatprep.subr.bf16.mxu0 0
        %1577 = vmatpush1.bf16.msra.mxu0 0
        %1578 = vmatprep.subr.bf16.mxu0 0
        %1579 = vmatpush1.bf16.msra.mxu0 0
        %1580 = vmatprep.subr.bf16.mxu0 0
        %1581 = vmatpush1.bf16.msra.mxu0 0
        %1582 = vmatprep.subr.bf16.mxu0 0
        %1583 = vmatpush1.bf16.msra.mxu0 0
        %1584 = vmatprep.mubr.bf16.mxu0 0
        %1585 = vmatmul.mubr.bf16.gmra.mrb[0].mxu0 %v1550
        %v1586 = vpop.f32.mrb[0].mxu0
        %v1587 = vadd.f32 %v1535, %v1586
        %v1588 = vpop.f32.mrb[0].mxu0
        %v1589 = vpop.f32.mrb[0].mxu0
        %v1590 = vpop.f32.mrb[0].mxu0
        %1591 = vdwg.mxu0
        %v1592 = vmul.f32 %v1587, 0.5
        %v1593 = vmul.f32 %v1587, 0.044715
        %v1594 = vmul.f32 %v1593, %v1587
        %v1595 = vmul.f32 %v1594, %v1587
        %v1596 = vadd.f32 %v1587, %v1595
        %v1597 = vmul.f32 %v1596, 0.7978846
        %v1598 = vtanh.pop %v1597
        %v1599 = vadd.f32 %v1598, 1.0
        %v1600 = vmul.f32 %v1592, %v1599
        %v1601 = vpack.c.bf16 %v1600, %v1600
        %v1602 = vld [vmem:[%s21] sm:$0xf]
        %v1603 = vld [vmem:[%s21 + $0x4] sm:$0xf]
        %v1604 = vld [vmem:[%s21 + $0x8] sm:$0xf]
        %v1605 = vld [vmem:[%s21 + $0xc] sm:$0xf]
        %v1606 = vld [vmem:[%s21 + $0x10] sm:$0xf]
        %v1607 = vld [vmem:[%s21 + $0x14] sm:$0xf]
        %v1608 = vld [vmem:[%s21 + $0x18] sm:$0xf]
        %v1609 = vld [vmem:[%s21 + $0x1c] sm:$0xf]
        %v1610 = vld [vmem:[%s21 + $0x20] sm:$0xf]
        %v1611 = vld [vmem:[%s21 + $0x24] sm:$0xf]
        %v1612 = vld [vmem:[%s21 + $0x28] sm:$0xf]
        %v1613 = vld [vmem:[%s21 + $0x2c] sm:$0xf]
        %v1614 = vld [vmem:[%s21 + $0x30] sm:$0xf]
        %v1615 = vld [vmem:[%s21 + $0x34] sm:$0xf]
        %v1616 = vld [vmem:[%s21 + $0x38] sm:$0xf]
        %v1617 = vld [vmem:[%s21 + $0x3c] sm:$0xf]
        %v1618 = vld [vmem:[%s22] sm:$0x1]
        %v1620 = vlaneseq
        %v1621 = vshrl.u32 %v1620, 7
        %v1622 = vsub.s32 0, %v1621
        %v1623 = vrot.slane %v1618, %v1622
        %v1641 = vunpack.c.l.b16 %v1602
        %v1642 = vunpack.c.l.b16 %v1603
        %v1643 = vunpack.c.l.b16 %v1604
        %v1644 = vunpack.c.l.b16 %v1605
        %v1645 = vunpack.c.l.b16 %v1606
        %v1646 = vunpack.c.l.b16 %v1607
        %v1647 = vunpack.c.l.b16 %v1608
        %v1648 = vunpack.c.l.b16 %v1609
        %v1649 = vunpack.c.l.b16 %v1610
        %v1650 = vunpack.c.l.b16 %v1611
        %v1651 = vunpack.c.l.b16 %v1612
        %v1652 = vunpack.c.l.b16 %v1613
        %v1653 = vunpack.c.l.b16 %v1614
        %v1654 = vunpack.c.l.b16 %v1615
        %v1655 = vunpack.c.l.b16 %v1616
        %v1656 = vunpack.c.l.b16 %v1617
        %v1657 = vpack.c.b16 %v1642, %v1641
        %v1658 = vpack.c.b16 %v1644, %v1643
        %v1659 = vpack.c.b16 %v1646, %v1645
        %v1660 = vpack.c.b16 %v1648, %v1647
        %v1661 = vpack.c.b16 %v1650, %v1649
        %v1662 = vpack.c.b16 %v1652, %v1651
        %v1663 = vpack.c.b16 %v1654, %v1653
        %v1664 = vpack.c.b16 %v1656, %v1655
        %1673 = vmatprep.subr.bf16.mxu0 0
        %1674 = vmatpush1.bf16.msra.mxu0 %v1657
        %1675 = vmatprep.subr.bf16.mxu0 0
        %1676 = vmatpush1.bf16.msra.mxu0 %v1658
        %1677 = vmatprep.subr.bf16.mxu0 0
        %1678 = vmatpush1.bf16.msra.mxu0 %v1659
        %1679 = vmatprep.subr.bf16.mxu0 0
        %1680 = vmatpush1.bf16.msra.mxu0 %v1660
        %1681 = vmatprep.subr.bf16.mxu0 0
        %1682 = vmatpush1.bf16.msra.mxu0 %v1661
        %1683 = vmatprep.subr.bf16.mxu0 0
        %1684 = vmatpush1.bf16.msra.mxu0 %v1662
        %1685 = vmatprep.subr.bf16.mxu0 0
        %1686 = vmatpush1.bf16.msra.mxu0 %v1663
        %1687 = vmatprep.subr.bf16.mxu0 0
        %1688 = vmatpush1.bf16.msra.mxu0 %v1664
        %1689 = vmatprep.subr.bf16.mxu0 0
        %1690 = vmatpush1.bf16.msra.mxu0 0
        %1691 = vmatprep.subr.bf16.mxu0 0
        %1692 = vmatpush1.bf16.msra.mxu0 0
        %1693 = vmatprep.subr.bf16.mxu0 0
        %1694 = vmatpush1.bf16.msra.mxu0 0
        %1695 = vmatprep.subr.bf16.mxu0 0
        %1696 = vmatpush1.bf16.msra.mxu0 0
        %1697 = vmatprep.subr.bf16.mxu0 0
        %1698 = vmatpush1.bf16.msra.mxu0 0
        %1699 = vmatprep.subr.bf16.mxu0 0
        %1700 = vmatpush1.bf16.msra.mxu0 0
        %1701 = vmatprep.subr.bf16.mxu0 0
        %1702 = vmatpush1.bf16.msra.mxu0 0
        %1703 = vmatprep.subr.bf16.mxu0 0
        %1704 = vmatpush1.bf16.msra.mxu0 0
        %1705 = vmatprep.mubr.bf16.mxu0 0
        %1706 = vmatmul.mubr.bf16.gmra.mrb[0].mxu0 %v1601
        %v1707 = vpop.f32.mrb[0].mxu0
        %v1708 = vadd.f32 %v1623, %v1707
        %v1709 = vpop.f32.mrb[0].mxu0
        %v1710 = vpop.f32.mrb[0].mxu0
        %v1711 = vpop.f32.mrb[0].mxu0
        %1712 = vdwg.mxu0
        %v1713 = vadd.f32 %v1708, %v1495
        %v1714 = vpack.c.bf16 %v1713, %v1713
        %v1715 = vld [vmem:[%s1] sm:$0xf]
        %v1716 = vld [vmem:[%s1 + $0x4] sm:$0xf]
        %v1717 = vld [vmem:[%s1 + $0x8] sm:$0xf]
        %v1718 = vld [vmem:[%s1 + $0xc] sm:$0xf]
        %v1719 = vld [vmem:[%s2] sm:$0xf]
        %v1720 = vld [vmem:[%s2 + $0x4] sm:$0xf]
        %v1721 = vld [vmem:[%s2 + $0x8] sm:$0xf]
        %v1722 = vld [vmem:[%s2 + $0xc] sm:$0xf]
        %v1727 = vunpack.c.l.b16 %v1719
        %v1728 = vunpack.c.l.b16 %v1720
        %v1729 = vunpack.c.l.b16 %v1721
        %v1730 = vunpack.c.l.b16 %v1722
        %v1731 = vpack.c.b16 %v1728, %v1727
        %v1732 = vpack.c.b16 %v1730, %v1729
        %v1736 = vsel %vm817, %v1714, 0
        %1738 = vmatprep.subr.bf16.mxu0 0
        %1739 = vmatpush1.bf16.msra.mxu0 %v1731
        %1740 = vmatprep.subr.bf16.mxu0 0
        %1741 = vmatpush1.bf16.msra.mxu0 %v1732
        %1742 = vmatprep.subr.bf16.mxu0 0
        %1743 = vmatpush1.bf16.msra.mxu0 0
        %1744 = vmatprep.subr.bf16.mxu0 0
        %1745 = vmatpush1.bf16.msra.mxu0 0
        %1746 = vmatprep.subr.bf16.mxu0 0
        %1747 = vmatpush1.bf16.msra.mxu0 0
        %1748 = vmatprep.subr.bf16.mxu0 0
        %1749 = vmatpush1.bf16.msra.mxu0 0
        %1750 = vmatprep.subr.bf16.mxu0 0
        %1751 = vmatpush1.bf16.msra.mxu0 0
        %1752 = vmatprep.subr.bf16.mxu0 0
        %1753 = vmatpush1.bf16.msra.mxu0 0
        %1754 = vmatprep.subr.bf16.mxu0 0
        %1755 = vmatpush1.bf16.msra.mxu0 0
        %1756 = vmatprep.subr.bf16.mxu0 0
        %1757 = vmatpush1.bf16.msra.mxu0 0
        %1758 = vmatprep.subr.bf16.mxu0 0
        %1759 = vmatpush1.bf16.msra.mxu0 0
        %1760 = vmatprep.subr.bf16.mxu0 0
        %1761 = vmatpush1.bf16.msra.mxu0 0
        %1762 = vmatprep.subr.bf16.mxu0 0
        %1763 = vmatpush1.bf16.msra.mxu0 0
        %1764 = vmatprep.subr.bf16.mxu0 0
        %1765 = vmatpush1.bf16.msra.mxu0 0
        %1766 = vmatprep.subr.bf16.mxu0 0
        %1767 = vmatpush1.bf16.msra.mxu0 0
        %1768 = vmatprep.subr.bf16.mxu0 0
        %1769 = vmatpush1.bf16.msra.mxu0 0
        %1770 = vmatprep.mubr.bf16.mxu0 0
        %1771 = vmatmul.mubr.bf16.gmra.mrb[0].mxu0 %v1736
        %v1772 = vpop.f32.mrb[0].mxu0
        %v1773 = vadd.f32 0.0, %v1772
        %v1774 = vpop.f32.mrb[0].mxu0
        %v1775 = vpop.f32.mrb[0].mxu0
        %v1776 = vpop.f32.mrb[0].mxu0
        %1777 = vdwg.mxu0
        %v1782 = vunpack.c.l.b16 %v1715
        %v1783 = vunpack.c.l.b16 %v1716
        %v1784 = vunpack.c.l.b16 %v1717
        %v1785 = vunpack.c.l.b16 %v1718
        %v1786 = vpack.c.b16 %v1783, %v1782
        %v1787 = vpack.c.b16 %v1785, %v1784
        %1790 = vmatprep.subr.bf16.mxu0 0
        %1791 = vmatpush1.bf16.msra.mxu0 %v1786
        %1792 = vmatprep.subr.bf16.mxu0 0
        %1793 = vmatpush1.bf16.msra.mxu0 %v1787
        %1794 = vmatprep.subr.bf16.mxu0 0
        %1795 = vmatpush1.bf16.msra.mxu0 0
        %1796 = vmatprep.subr.bf16.mxu0 0
        %1797 = vmatpush1.bf16.msra.mxu0 0
        %1798 = vmatprep.subr.bf16.mxu0 0
        %1799 = vmatpush1.bf16.msra.mxu0 0
        %1800 = vmatprep.subr.bf16.mxu0 0
        %1801 = vmatpush1.bf16.msra.mxu0 0
        %1802 = vmatprep.subr.bf16.mxu0 0
        %1803 = vmatpush1.bf16.msra.mxu0 0
        %1804 = vmatprep.subr.bf16.mxu0 0
        %1805 = vmatpush1.bf16.msra.mxu0 0
        %1806 = vmatprep.subr.bf16.mxu0 0
        %1807 = vmatpush1.bf16.msra.mxu0 0
        %1808 = vmatprep.subr.bf16.mxu0 0
        %1809 = vmatpush1.bf16.msra.mxu0 0
        %1810 = vmatprep.subr.bf16.mxu0 0
        %1811 = vmatpush1.bf16.msra.mxu0 0
        %1812 = vmatprep.subr.bf16.mxu0 0
        %1813 = vmatpush1.bf16.msra.mxu0 0
        %1814 = vmatprep.subr.bf16.mxu0 0
        %1815 = vmatpush1.bf16.msra.mxu0 0
        %1816 = vmatprep.subr.bf16.mxu0 0
        %1817 = vmatpush1.bf16.msra.mxu0 0
        %1818 = vmatprep.subr.bf16.mxu0 0
        %1819 = vmatpush1.bf16.msra.mxu0 0
        %1820 = vmatprep.subr.bf16.mxu0 0
        %1821 = vmatpush1.bf16.msra.mxu0 0
        %1822 = vmatprep.mubr.bf16.mxu0 0
        %1823 = vmatmul.mubr.bf16.gmra.mrb[0].mxu0 %v1736
        %v1824 = vpop.f32.mrb[0].mxu0
        %v1825 = vadd.f32 %v1773, %v1824
        %v1826 = vpop.f32.mrb[0].mxu0
        %v1827 = vpop.f32.mrb[0].mxu0
        %v1828 = vpop.f32.mrb[0].mxu0
        %1829 = vdwg.mxu0
        %v1830 = vpack.c.bf16 %v1825, %v1825
        %v1831 = vld [vmem:[#allocation11] sm:$0xf]
        %v1832 = vld [vmem:[#allocation12] sm:$0xf]
        %v1833 = vld [vmem:[#allocation14] sm:$0xf]
        %v1834 = vld [vmem:[%s10] sm:$0xf]
        %v1836 = vsel %vm918, %v1832, 0
        %v1839 = vsel %vm922, %v1830, 0
        %1841 = vmatprep.subr.bf16.mxu0 0
        %1842 = vmatpush1.bf16.msra.mxu0 %v1839
        %1843 = vmatprep.subr.bf16.mxu0 0
        %1844 = vmatpush1.bf16.msra.mxu0 0
        %1845 = vmatprep.subr.bf16.mxu0 0
        %1846 = vmatpush1.bf16.msra.mxu0 0
        %1847 = vmatprep.subr.bf16.mxu0 0
        %1848 = vmatpush1.bf16.msra.mxu0 0
        %1849 = vmatprep.subr.bf16.mxu0 0
        %1850 = vmatpush1.bf16.msra.mxu0 0
        %1851 = vmatprep.subr.bf16.mxu0 0
        %1852 = vmatpush1.bf16.msra.mxu0 0
        %1853 = vmatprep.subr.bf16.mxu0 0
        %1854 = vmatpush1.bf16.msra.mxu0 0
        %1855 = vmatprep.subr.bf16.mxu0 0
        %1856 = vmatpush1.bf16.msra.mxu0 0
        %1857 = vmatprep.subr.bf16.mxu0 0
        %1858 = vmatpush1.bf16.msra.mxu0 0
        %1859 = vmatprep.subr.bf16.mxu0 0
        %1860 = vmatpush1.bf16.msra.mxu0 0
        %1861 = vmatprep.subr.bf16.mxu0 0
        %1862 = vmatpush1.bf16.msra.mxu0 0
        %1863 = vmatprep.subr.bf16.mxu0 0
        %1864 = vmatpush1.bf16.msra.mxu0 0
        %1865 = vmatprep.subr.bf16.mxu0 0
        %1866 = vmatpush1.bf16.msra.mxu0 0
        %1867 = vmatprep.subr.bf16.mxu0 0
        %1868 = vmatpush1.bf16.msra.mxu0 0
        %1869 = vmatprep.subr.bf16.mxu0 0
        %1870 = vmatpush1.bf16.msra.mxu0 0
        %1871 = vmatprep.subr.bf16.mxu0 0
        %1872 = vmatpush1.bf16.msra.mxu0 0
        %1873 = vmatprep.mubr.bf16.mxu0 0
        %1874 = vmatmul.mubr.bf16.gmra.mrb[0].mxu0 %v1836
        %v1875 = vpop.f32.mrb[0].mxu0
        %v1876 = vadd.f32 0.0, %v1875
        %v1877 = vpop.f32.mrb[0].mxu0
        %v1878 = vpop.f32.mrb[0].mxu0
        %v1879 = vpop.f32.mrb[0].mxu0
        %1880 = vdwg.mxu0
        %v1882 = vsel %vm918, %v1831, 0
        %1884 = vmatprep.subr.bf16.mxu0 0
        %1885 = vmatpush1.bf16.msra.mxu0 %v1839
        %1886 = vmatprep.subr.bf16.mxu0 0
        %1887 = vmatpush1.bf16.msra.mxu0 0
        %1888 = vmatprep.subr.bf16.mxu0 0
        %1889 = vmatpush1.bf16.msra.mxu0 0
        %1890 = vmatprep.subr.bf16.mxu0 0
        %1891 = vmatpush1.bf16.msra.mxu0 0
        %1892 = vmatprep.subr.bf16.mxu0 0
        %1893 = vmatpush1.bf16.msra.mxu0 0
        %1894 = vmatprep.subr.bf16.mxu0 0
        %1895 = vmatpush1.bf16.msra.mxu0 0
        %1896 = vmatprep.subr.bf16.mxu0 0
        %1897 = vmatpush1.bf16.msra.mxu0 0
        %1898 = vmatprep.subr.bf16.mxu0 0
        %1899 = vmatpush1.bf16.msra.mxu0 0
        %1900 = vmatprep.subr.bf16.mxu0 0
        %1901 = vmatpush1.bf16.msra.mxu0 0
        %1902 = vmatprep.subr.bf16.mxu0 0
        %1903 = vmatpush1.bf16.msra.mxu0 0
        %1904 = vmatprep.subr.bf16.mxu0 0
        %1905 = vmatpush1.bf16.msra.mxu0 0
        %1906 = vmatprep.subr.bf16.mxu0 0
        %1907 = vmatpush1.bf16.msra.mxu0 0
        %1908 = vmatprep.subr.bf16.mxu0 0
        %1909 = vmatpush1.bf16.msra.mxu0 0
        %1910 = vmatprep.subr.bf16.mxu0 0
        %1911 = vmatpush1.bf16.msra.mxu0 0
        %1912 = vmatprep.subr.bf16.mxu0 0
        %1913 = vmatpush1.bf16.msra.mxu0 0
        %1914 = vmatprep.subr.bf16.mxu0 0
        %1915 = vmatpush1.bf16.msra.mxu0 0
        %1916 = vmatprep.mubr.bf16.mxu0 0
        %1917 = vmatmul.mubr.bf16.gmra.mrb[0].mxu0 %v1882
        %v1918 = vpop.f32.mrb[0].mxu0
        %v1919 = vadd.f32 %v1876, %v1918
        %v1920 = vpop.f32.mrb[0].mxu0
        %v1921 = vpop.f32.mrb[0].mxu0
        %v1922 = vpop.f32.mrb[0].mxu0
        %1923 = vdwg.mxu0
        %1925 = vrot.lane.b32.xlu0 %v1830, 96
        %v1926 = vpop.permute.xlu0 %1925
        %v1928 = vsel %vm918, %v1833, 0
        %v1931 = vsel %vm922, %v1926, 0
        %1933 = vmatprep.subr.bf16.mxu0 0
        %1934 = vmatpush1.bf16.msra.mxu0 %v1931
        %1935 = vmatprep.subr.bf16.mxu0 0
        %1936 = vmatpush1.bf16.msra.mxu0 0
        %1937 = vmatprep.subr.bf16.mxu0 0
        %1938 = vmatpush1.bf16.msra.mxu0 0
        %1939 = vmatprep.subr.bf16.mxu0 0
        %1940 = vmatpush1.bf16.msra.mxu0 0
        %1941 = vmatprep.subr.bf16.mxu0 0
        %1942 = vmatpush1.bf16.msra.mxu0 0
        %1943 = vmatprep.subr.bf16.mxu0 0
        %1944 = vmatpush1.bf16.msra.mxu0 0
        %1945 = vmatprep.subr.bf16.mxu0 0
        %1946 = vmatpush1.bf16.msra.mxu0 0
        %1947 = vmatprep.subr.bf16.mxu0 0
        %1948 = vmatpush1.bf16.msra.mxu0 0
        %1949 = vmatprep.subr.bf16.mxu0 0
        %1950 = vmatpush1.bf16.msra.mxu0 0
        %1951 = vmatprep.subr.bf16.mxu0 0
        %1952 = vmatpush1.bf16.msra.mxu0 0
        %1953 = vmatprep.subr.bf16.mxu0 0
        %1954 = vmatpush1.bf16.msra.mxu0 0
        %1955 = vmatprep.subr.bf16.mxu0 0
        %1956 = vmatpush1.bf16.msra.mxu0 0
        %1957 = vmatprep.subr.bf16.mxu0 0
        %1958 = vmatpush1.bf16.msra.mxu0 0
        %1959 = vmatprep.subr.bf16.mxu0 0
        %1960 = vmatpush1.bf16.msra.mxu0 0
        %1961 = vmatprep.subr.bf16.mxu0 0
        %1962 = vmatpush1.bf16.msra.mxu0 0
        %1963 = vmatprep.subr.bf16.mxu0 0
        %1964 = vmatpush1.bf16.msra.mxu0 0
        %1965 = vmatprep.mubr.bf16.mxu0 0
        %1966 = vmatmul.mubr.bf16.gmra.mrb[0].mxu0 %v1928
        %v1967 = vpop.f32.mrb[0].mxu0
        %v1968 = vadd.f32 0.0, %v1967
        %v1969 = vpop.f32.mrb[0].mxu0
        %v1970 = vpop.f32.mrb[0].mxu0
        %v1971 = vpop.f32.mrb[0].mxu0
        %1972 = vdwg.mxu0
        %v1973 = vsub.f32 %v1919, %v1968
        %v1975 = vsel %vm918, %v1834, 0
        %1977 = vmatprep.subr.bf16.mxu0 0
        %1978 = vmatpush1.bf16.msra.mxu0 %v1931
        %1979 = vmatprep.subr.bf16.mxu0 0
        %1980 = vmatpush1.bf16.msra.mxu0 0
        %1981 = vmatprep.subr.bf16.mxu0 0
        %1982 = vmatpush1.bf16.msra.mxu0 0
        %1983 = vmatprep.subr.bf16.mxu0 0
        %1984 = vmatpush1.bf16.msra.mxu0 0
        %1985 = vmatprep.subr.bf16.mxu0 0
        %1986 = vmatpush1.bf16.msra.mxu0 0
        %1987 = vmatprep.subr.bf16.mxu0 0
        %1988 = vmatpush1.bf16.msra.mxu0 0
        %1989 = vmatprep.subr.bf16.mxu0 0
        %1990 = vmatpush1.bf16.msra.mxu0 0
        %1991 = vmatprep.subr.bf16.mxu0 0
        %1992 = vmatpush1.bf16.msra.mxu0 0
        %1993 = vmatprep.subr.bf16.mxu0 0
        %1994 = vmatpush1.bf16.msra.mxu0 0
        %1995 = vmatprep.subr.bf16.mxu0 0
        %1996 = vmatpush1.bf16.msra.mxu0 0
        %1997 = vmatprep.subr.bf16.mxu0 0
        %1998 = vmatpush1.bf16.msra.mxu0 0
        %1999 = vmatprep.subr.bf16.mxu0 0
        %2000 = vmatpush1.bf16.msra.mxu0 0
        %2001 = vmatprep.subr.bf16.mxu0 0
        %2002 = vmatpush1.bf16.msra.mxu0 0
        %2003 = vmatprep.subr.bf16.mxu0 0
        %2004 = vmatpush1.bf16.msra.mxu0 0
        %2005 = vmatprep.subr.bf16.mxu0 0
        %2006 = vmatpush1.bf16.msra.mxu0 0
        %2007 = vmatprep.subr.bf16.mxu0 0
        %2008 = vmatpush1.bf16.msra.mxu0 0
        %2009 = vmatprep.mubr.bf16.mxu0 0
        %2010 = vmatmul.mubr.bf16.gmra.mrb[0].mxu0 %v1975
        %v2011 = vpop.f32.mrb[0].mxu0
        %v2012 = vadd.f32 0.0, %v2011
        %v2013 = vpop.f32.mrb[0].mxu0
        %v2014 = vpop.f32.mrb[0].mxu0
        %v2015 = vpop.f32.mrb[0].mxu0
        %2016 = vdwg.mxu0
        %v2017 = vsub.f32 %v1973, %v2012
        %2018 = vst.msk [vmem:[%s789] sm:$0xff] %vm817, %v2017
        %s2019 = sand.u32 %s537, 1
        %s2020 = scalar_lea.sflag [#allocation5], %s2019
        %s2021 = sand.u32 %s537, 1
        %s2022 = smul.addr %s2021, 8
        %s2023 = scalar_lea.vmem [#allocation15], %s2022
        // Predicated region
        $region141: #{tpu_custom_call.1} parent=111 // pred_check
          %p2024 = pneg %p547
        $region142: #{tpu_custom_call.1} parent=111 // pred_check_branch
          %2026 = sbr.rel (%p2024) target = $region144
        $region143: #{tpu_custom_call.1} parent=111 // pred_region
          %s2028 = ssub.s32 128, 128
          %2029 = vsyncadd %s2020, %s2028
          %s2030 = smul.addr %s41, 128
          %s2031 = scalar_lea.hbm %s23, %s2030
          %s2033 = sshll.u32 %s2023, 4
          %s2034 = int_to_ptr.vmem [resolvable:$true] %s2033
          %2036 = dma.vmem_to_hbm [thread:$0]  %s2034, 128, %s2031, %s2020
        $region144: #{tpu_custom_call.1} parent=111 // pred_fallthru
          _
      $region112: #{tpu_custom_call.1} parent=5 // pred_fallthru
        _
      %p2037 = scmp.le.s32.totalorder 2, %s36
      // Predicated region
      $region145: #{tpu_custom_call.1} parent=5 // pred_check
        %p2038 = pneg %p2037
      $region146: #{tpu_custom_call.1} parent=5 // pred_check_branch
        %2040 = sbr.rel (%p2038) target = $region148
      $region147: #{tpu_custom_call.1} parent=5 // pred_region
        %s2041 = ssub.s32 %s36, 2
        // Predicated region
        $region149: #{tpu_custom_call.1} parent=147 // pred_check
          %p2042 = pneg %p553
        $region150: #{tpu_custom_call.1} parent=147 // pred_check_branch
          %2044 = sbr.rel (%p2042) target = $region152
        $region151: #{tpu_custom_call.1} parent=147 // pred_region
          %s2045 = sand.u32 %s538, 1
          %s2046 = scalar_lea.sflag [#allocation5], %s2045
          %s2047 = sand.u32 %s538, 1
          %s2048 = smul.addr %s2047, 8
          %s2049 = scalar_lea.vmem [#allocation15], %s2048
          %2050 = dma.done %s2046, 128
        $region152: #{tpu_custom_call.1} parent=147 // pred_fallthru
          _
      $region148: #{tpu_custom_call.1} parent=5 // pred_fallthru
        _
    $region6: #{tpu_custom_call.1} parent=1 // loop_footer
      %s40 = sadd.s32 1, %s36
    $region7: #{tpu_custom_call.1} parent=1 // loop_footer_branch
      %35 = sbr.rel target = $region3
    $region8: #{tpu_custom_call.1} parent=1 // loop_exit
      _
    %2051 = vsyncpa [#allocation4], 1
    %s2052 = scalar_lea.sflag [#allocation4], 1
    %2053 = vsyncpa %s2052, 1
    %2054 = vsyncpa [#allocation7], 1
    %2055 = vsyncpa [#allocation10], 1
    %2056 = vsyncpa [#allocation13], 1
    %2057 = vsyncpa [#allocation5], 1
    %s2058 = scalar_lea.sflag [#allocation5], 1
    %2059 = vsyncpa %s2058, 1

</llo_original>
